<compile_context>
chip_gen: v7x
topology: tpu7x:2x2x1
jax: 0.10.0
libtpu: 0.0.40
codegen_flags: <defaults>
</compile_context>

<pallas_src>
import functools

import jax
import jax.numpy as jnp
import numpy as np
from jax.experimental import pallas as pl
from jax.experimental.pallas import tpu as pltpu

KERNEL_SIZE = 6
HAAR_OUT = 14
HIDDEN = (32, 16)
NUM_CLASSES = 2
BN_EPS = 1e-5
PAD_LO = (KERNEL_SIZE - 1) // 2      # 2  ('same' padding for the even kernel)
PAD_HI = KERNEL_SIZE // 2            # 3


def _round_up(x, m):
    return (x + m - 1) // m * m


def _filters_1d(k=KERNEL_SIZE):
    """The three distinct 1-D Haar building blocks."""
    o = np.ones((k,), np.float32)
    e = np.concatenate([np.ones((k // 2,)), -np.ones((k - k // 2,))]).astype(np.float32)
    l = -np.ones((k,), np.float32)
    l[k // 4: k - k // 4] = 1.0
    return {"o": o, "e": e, "l": l}


# (depth, height, width) 1-D filter ids of the 14 Haar output channels.
COMBOS = [
    ("o", "o", "o"),
    ("e", "o", "o"), ("o", "e", "o"), ("o", "o", "e"),
    ("l", "o", "o"), ("o", "l", "o"), ("o", "o", "l"),
    ("o", "e", "e"), ("e", "o", "e"), ("e", "e", "o"),
    ("e", "e", "e"),
    ("l", "l", "o"), ("l", "o", "l"), ("o", "l", "l"),
]
# Distinct (height, width) filter pairs -> the 7 second-pass feature maps.
PAIRS = [("o", "o"), ("e", "o"), ("o", "e"), ("l", "o"), ("o", "l"),
         ("e", "e"), ("l", "l")]


# ----------------------------- parameter setup ------------------------------
def init_params(key, *, td):
    """Returns (kernel-ready folded/batched params, pure-JAX reference params)."""
    k1, k2, k3 = jax.random.split(key, 3)

    def kaiming_fan_in_relu(k, cin, cout):
        # nn.init.kaiming_normal_(mode='fan_in', nonlinearity='relu')
        return jax.random.normal(k, (cin, cout), jnp.float32) * np.sqrt(2.0 / cin)

    # Eval-mode BatchNorm3d fold: gamma=1, beta=0, running_mean=0, running_var=1
    bn_scale = float(1.0 / np.sqrt(1.0 + BN_EPS))

    w1 = kaiming_fan_in_relu(k1, HAAR_OUT, HIDDEN[0])      # (14, 32)
    w2 = kaiming_fan_in_relu(k2, HIDDEN[0], HIDDEN[1])     # (32, 16)
    w3 = kaiming_fan_in_relu(k3, HIDDEN[1], NUM_CLASSES)   # (16, 2)
    b3 = jnp.zeros((NUM_CLASSES,), jnp.float32)            # final conv bias (init 0)

    filt = _filters_1d()
    norm = 1.0 / float(KERNEL_SIZE ** 3)

    w1_np = np.asarray(w1, np.float32) * bn_scale          # (14, 32)
    w2_np = np.asarray(w2, np.float32) * bn_scale          # (32, 16)
    w3_np = np.asarray(w3, np.float32)                     # (16, 2)
    b3_np = np.asarray(b3, np.float32)                     # (2,)

    # Fold (1/k^3) * depth-Haar-filter * BN-scaled conv1 into per-pair (32, 6)
    # slabs:  h1[c, t] = sum_p sum_kd w1m[p, c, kd] * z_p[t + kd].
    w1m = np.zeros((len(PAIRS), HIDDEN[0], KERNEL_SIZE), np.float32)
    for c, (dc, hc, wc) in enumerate(COMBOS):
        p = PAIRS.index((hc, wc))
        w1m[p] += np.outer(w1_np[c, :], filt[dc] * norm)

    rrows = _round_up(td + KERNEL_SIZE - 1, 8)      # padded z rows per pair

    # Layer 1 block-Toeplitz weight: rows (t, c1), cols (pair, z-row).
    w1toe = np.zeros((HIDDEN[0] * td, len(PAIRS) * rrows), np.float32)
    for t in range(td):
        for p in range(len(PAIRS)):
            w1toe[t * HIDDEN[0]:(t + 1) * HIDDEN[0],
                  p * rrows + t: p * rrows + t + KERNEL_SIZE] = w1m[p]

    # Layer 2 block-diagonal weight (+BN fold): rows (t, c2), cols (t, c1).
    w2big = np.zeros((HIDDEN[1] * td, HIDDEN[0] * td), np.float32)
    for t in range(td):
        w2big[t * HIDDEN[1]:(t + 1) * HIDDEN[1],
              t * HIDDEN[0]:(t + 1) * HIDDEN[0]] = w2_np.T

    # Layer 3 block weight with rows in (class, t) order -> dense output store.
    w3big = np.zeros((NUM_CLASSES * td, HIDDEN[1] * td), np.float32)
    for t in range(td):
        for cls in range(NUM_CLASSES):
            w3big[cls * td + t, t * HIDDEN[1]:(t + 1) * HIDDEN[1]] = w3_np[:, cls]
    b3big = np.repeat(b3_np, td).reshape(NUM_CLASSES * td, 1).astype(np.float32)

    kparams = (jnp.asarray(w1toe),    # (32*td, 7*rrows)
               jnp.asarray(w2big),    # (16*td, 32*td)
               jnp.asarray(w3big),    # ( 2*td, 16*td)
               jnp.asarray(b3big))    # ( 2*td, 1)

    # Unfused reference params (same random draws) for the correctness check.
    kers = np.stack([np.einsum("i,j,k->ijk", filt[d], filt[h], filt[w])
                     for d, h, w in COMBOS]).astype(np.float32) * norm   # (14,6,6,6)
    wh_flat = jnp.asarray(kers.reshape(HAAR_OUT, KERNEL_SIZE ** 3).T)    # (216, 14)
    rparams = (wh_flat, w1 * bn_scale, w2 * bn_scale, w3, b3)
    return kparams, rparams


# ------------------------------ Pallas kernel -------------------------------
def _fused_haar_mlp_kernel(x_ref, w1_ref, w2_ref, w3_ref, b3_ref, out_ref, z_scr,
                           *, td, rrows, wpl, l_out):
    """One grid step = one batch element x one slab of `td` output depth slices.

    x_ref   : (1, Drows, LP)            zero-padded volume (plane flattened on
                                        lanes: lane = h' * wpl + w').
    out_ref : (1, C, td, l_out)         channel-major logits for the slab.
    z_scr   : (7 * rrows, l_out) VMEM   per-(H,W)-pair Haar maps, (pair, z-row).
    """
    k = KERNEL_SIZE
    l_y = l_out + (k - 1) * wpl
    d0 = pl.multiple_of(pl.program_id(1) * td, td)
    rows = x_ref[0, pl.ds(d0, rrows), :]                 # (rrows, LP)

    # ---- pass 1: 1-D Haar filters along W (lane shifts by kw) ----
    s = [rows[:, kw:kw + l_y] for kw in range(k)]
    sa = s[0] + s[1] + s[2]
    sb = s[3] + s[4] + s[5]
    y_o = sa + sb                       # ones  [ 1  1  1  1  1  1]
    y_e = sa - sb                       # edge  [ 1  1  1 -1 -1 -1]
    y_l = y_o - 2.0 * (s[0] + s[5])     # line  [-1  1  1  1  1 -1]

    # ---- pass 2: 1-D Haar filters along H (lane shifts by kh * wpl) ----
    def hsplit(y):
        t = [y[:, kh * wpl: kh * wpl + l_out] for kh in range(k)]
        return t[0] + t[1] + t[2], t[3] + t[4] + t[5], t[0] + t[5]

    ao, bo, eo = hsplit(y_o)
    ae, be, _ = hsplit(y_e)
    al, bl, el = hsplit(y_l)
    z_oo = ao + bo
    z_ol = al + bl
    # Order must match PAIRS: (o,o),(e,o),(o,e),(l,o),(o,l),(e,e),(l,l)
    zmaps = [z_oo, ao - bo, ae + be, z_oo - 2.0 * eo, z_ol, ae - be,
             z_ol - 2.0 * el]
    for p, zp in enumerate(zmaps):
        # rrows is a multiple of 8 and l_out a multiple of 128 -> dense stores.
        z_scr[p * rrows:(p + 1) * rrows, :] = zp

    # ---- pass 3 (Haar along D) + conv1 + the 1x1x1 MLP: 3 matmuls total ----
    # Depth is batched into M via block-Toeplitz / block-diagonal weights built
    # at init; N = l_out stays lane-dense, K lives on the z-scratch sublanes.
    h1 = jnp.maximum(
        jnp.dot(w1_ref[...], z_scr[...], preferred_element_type=jnp.float32), 0.0)
    h2 = jnp.maximum(
        jnp.dot(w2_ref[...], h1, preferred_element_type=jnp.float32), 0.0)
    y = jnp.dot(w3_ref[...], h2, preferred_element_type=jnp.float32) + b3_ref[...]

    # y rows are (class, t): one dense (td, l_out) store per class.
    for cls in range(NUM_CLASSES):
        out_ref[0, cls, :, :] = y[cls * td:(cls + 1) * td, :]


# ------------------------------- forward pass -------------------------------
def online_model_forward(x, kparams, *, td=16):
    """x: (N, 1, D, H, W) float32 -> (N, NUM_CLASSES, D, H, W) float32."""
    w1toe, w2big, w3big, b3big = kparams
    n, c, d, h, w = x.shape
    assert c == 1
    assert w1toe.shape[0] == HIDDEN[0] * td, "params were built for a different td"
    k = KERNEL_SIZE

    d_pad = pl.cdiv(d, td) * td
    rrows = _round_up(td + k - 1, 8)       # depth rows processed per slab
    d_rows = d_pad + (rrows - td)          # padded depth rows in HBM
    wpl = _round_up(w + k - 1, 8)          # plane row stride on the lane axis
    hpl = h + k                            # padded plane rows (+1 spare)
    l_out = h * wpl                        # lanes per output depth slice
    lp = hpl * wpl                         # lanes per input plane row
    n_slab = d_pad // td

    # Single zero-pad of the raw volume (4 B/voxel), then flatten each padded
    # (H', W') plane onto the lane axis.
    xp = jnp.pad(x[:, 0],
                 ((0, 0),
                  (PAD_LO, d_rows - d - PAD_LO),
                  (PAD_LO, hpl - h - PAD_LO),
                  (PAD_LO, wpl - w - PAD_LO)))
    x2 = xp.reshape(n, d_rows, lp)

    kernel = functools.partial(_fused_haar_mlp_kernel, td=td, rrows=rrows,
                               wpl=wpl, l_out=l_out)

    flops = 2 * n * n_slab * l_out * (
        w1toe.shape[0] * w1toe.shape[1]
        + w2big.shape[0] * w2big.shape[1]
        + w3big.shape[0] * w3big.shape[1])
    bytes_accessed = 4 * (x2.size + n * NUM_CLASSES * d_pad * l_out
                          + w1toe.size + w2big.size + w3big.size + b3big.size)

    out = pl.pallas_call(
        kernel,
        out_shape=jax.ShapeDtypeStruct((n, NUM_CLASSES, d_pad, l_out), jnp.float32),
        grid_spec=pltpu.PrefetchScalarGridSpec(
            num_scalar_prefetch=0,
            grid=(n, n_slab),
            in_specs=[
                # Full padded volume of batch element b; block index constant
                # across the depth-slab axis -> fetched from HBM once per batch.
                # TODO(synk): switch to a manually double-buffered depth window
                # (pl.ANY + make_async_copy) for large volumes on v7x.
                pl.BlockSpec((1, d_rows, lp), lambda b, j: (b, 0, 0)),
                pl.BlockSpec(w1toe.shape, lambda b, j: (0, 0)),
                pl.BlockSpec(w2big.shape, lambda b, j: (0, 0)),
                pl.BlockSpec(w3big.shape, lambda b, j: (0, 0)),
                pl.BlockSpec(b3big.shape, lambda b, j: (0, 0)),
            ],
            out_specs=pl.BlockSpec((1, NUM_CLASSES, td, l_out),
                                   lambda b, j: (b, 0, j, 0)),
            scratch_shapes=[pltpu.VMEM((len(PAIRS) * rrows, l_out), jnp.float32)],
        ),
        compiler_params=pltpu.CompilerParams(
            dimension_semantics=("parallel", "parallel")),
        cost_estimate=pl.CostEstimate(flops=int(flops), transcendentals=0,
                                      bytes_accessed=int(bytes_accessed)),
    )(x2, w1toe, w2big, w3big, b3big)

    # Channel-major already: (N, 2, D_pad, h*wpl) -> crop to (N, 2, D, H, W).
    out = out.reshape(n, NUM_CLASSES, d_pad, h, wpl)[:, :, :d, :, :w]
    return out


# --------------------- pure-JAX reference (for validation) -------------------
def _extract_patches(x, k=KERNEL_SIZE):
    n, c, d, h, w = x.shape
    xp = jnp.pad(x[:, 0], ((0, 0), (PAD_LO, PAD_HI), (PAD_LO, PAD_HI), (PAD_LO, PAD_HI)))
    slabs = []
    for kd in range(k):
        for kh in range(k):
            for kw in range(k):
                slabs.append(xp[:, kd:kd + d, kh:kh + h, kw:kw + w])
    return jnp.stack(slabs, axis=-1).reshape(n * d * h * w, k ** 3)


def reference_forward(x, rparams):
    wh_flat, w1, w2, w3, b3 = rparams
    n, _, d, h, w = x.shape
    hp = jax.lax.Precision.HIGHEST
    feats = jnp.dot(_extract_patches(x), wh_flat, precision=hp)     # (P, 14)
    a1 = jax.nn.relu(jnp.dot(feats, w1, precision=hp))
    a2 = jax.nn.relu(jnp.dot(a1, w2, precision=hp))
    y = jnp.dot(a2, w3, precision=hp) + b3[None, :]
    return jnp.transpose(y.reshape(n, d, h, w, NUM_CLASSES), (0, 4, 1, 2, 3))


# ---------------------------------- main -------------------------------------
if __name__ == "__main__":
    key = jax.random.PRNGKey(0)
    kx, kp = jax.random.split(key)

    TD = 16
    # Small shapes consistent with the module: batch=2, in_channels=1, 16^3 volume.
    x = jax.random.normal(kx, (2, 1, 16, 16, 16), jnp.float32)
    kparams, rparams = init_params(kp, td=TD)

    fwd = jax.jit(functools.partial(online_model_forward, td=TD))
    y = fwd(x, kparams)
    jax.block_until_ready(y)

    assert y.shape == (2, NUM_CLASSES, 16, 16, 16), y.shape
    assert y.dtype == jnp.float32

    # Numerical check against the unfused pure-JAX reference.
    y_ref = jax.jit(reference_forward)(x, rparams)
    jax.block_until_ready(y_ref)
    max_err = float(jnp.max(jnp.abs(y - y_ref)))
    assert jnp.allclose(y, y_ref, atol=5e-3, rtol=5e-3), max_err

    print("KERNEL_OK")
</pallas_src>

<mosaic_0001>
module attributes {stable_mosaic.version = 11 : i64} {
  func.func @_fused_haar_mlp_kernel(%arg0: i32, %arg1: i32, %arg2: memref<1x24x528xf32, #tpu.memory_space<vmem>>, %arg3: memref<512x168xf32, #tpu.memory_space<vmem>>, %arg4: memref<256x512xf32, #tpu.memory_space<vmem>>, %arg5: memref<32x256xf32, #tpu.memory_space<vmem>>, %arg6: memref<32x1xf32, #tpu.memory_space<vmem>>, %arg7: memref<1x2x16x384xf32, #tpu.memory_space<vmem>>, %arg8: memref<168x384xf32, #tpu.memory_space<vmem>>) attributes {dimension_semantics = [#tpu.dimension_semantics<parallel>, #tpu.dimension_semantics<parallel>], iteration_bounds = array<i64: 2, 1>, scalar_prefetch = 0 : i64, scratch_operands = 1 : i64, tpu.core_type = #tpu.core_type<tc>, window_params = [{transform_indices = @transform_0, window_bounds = array<i64: 1, 24, 528>}, {pipeline_mode = #tpu.pipeline_mode<synchronous>, transform_indices = @transform_1, window_bounds = array<i64: 512, 168>}, {pipeline_mode = #tpu.pipeline_mode<synchronous>, transform_indices = @transform_2, window_bounds = array<i64: 256, 512>}, {pipeline_mode = #tpu.pipeline_mode<synchronous>, transform_indices = @transform_3, window_bounds = array<i64: 32, 256>}, {pipeline_mode = #tpu.pipeline_mode<synchronous>, transform_indices = @transform_4, window_bounds = array<i64: 32, 1>}, {transform_indices = @transform_5, window_bounds = array<i64: 1, 2, 16, 384>}]} {
    %c16_i32 = arith.constant 16 : i32
    %0 = arith.muli %arg1, %c16_i32 : i32
    %1 = tpu.assume_multiple %0, 16 : i32
    %c0 = arith.constant 0 : index
    %2 = arith.index_cast %1 : i32 to index
    %c0_0 = arith.constant 0 : index
    %3 = vector.load %arg2[%c0, %2, %c0_0] : memref<1x24x528xf32, #tpu.memory_space<vmem>>, vector<1x24x528xf32>
    %4 = vector.shape_cast %3 : vector<1x24x528xf32> to vector<24x528xf32>
    %5 = vector.extract_strided_slice %4 {offsets = [0, 0], sizes = [24, 504], strides = [1, 1]} : vector<24x528xf32> to vector<24x504xf32>
    %6 = vector.extract_strided_slice %4 {offsets = [0, 1], sizes = [24, 504], strides = [1, 1]} : vector<24x528xf32> to vector<24x504xf32>
    %7 = vector.extract_strided_slice %4 {offsets = [0, 2], sizes = [24, 504], strides = [1, 1]} : vector<24x528xf32> to vector<24x504xf32>
    %8 = vector.extract_strided_slice %4 {offsets = [0, 3], sizes = [24, 504], strides = [1, 1]} : vector<24x528xf32> to vector<24x504xf32>
    %9 = vector.extract_strided_slice %4 {offsets = [0, 4], sizes = [24, 504], strides = [1, 1]} : vector<24x528xf32> to vector<24x504xf32>
    %10 = vector.extract_strided_slice %4 {offsets = [0, 5], sizes = [24, 504], strides = [1, 1]} : vector<24x528xf32> to vector<24x504xf32>
    %11 = arith.addf %5, %6 : vector<24x504xf32>
    %12 = arith.addf %11, %7 : vector<24x504xf32>
    %13 = arith.addf %8, %9 : vector<24x504xf32>
    %14 = arith.addf %13, %10 : vector<24x504xf32>
    %15 = arith.addf %12, %14 : vector<24x504xf32>
    %16 = arith.subf %12, %14 : vector<24x504xf32>
    %17 = arith.addf %5, %10 : vector<24x504xf32>
    %cst = arith.constant 2.000000e+00 : f32
    %18 = vector.broadcast %cst : f32 to vector<24x504xf32>
    %19 = arith.mulf %18, %17 : vector<24x504xf32>
    %20 = arith.subf %15, %19 : vector<24x504xf32>
    %21 = vector.extract_strided_slice %15 {offsets = [0, 0], sizes = [24, 384], strides = [1, 1]} : vector<24x504xf32> to vector<24x384xf32>
    %22 = vector.extract_strided_slice %15 {offsets = [0, 24], sizes = [24, 384], strides = [1, 1]} : vector<24x504xf32> to vector<24x384xf32>
    %23 = vector.extract_strided_slice %15 {offsets = [0, 48], sizes = [24, 384], strides = [1, 1]} : vector<24x504xf32> to vector<24x384xf32>
    %24 = vector.extract_strided_slice %15 {offsets = [0, 72], sizes = [24, 384], strides = [1, 1]} : vector<24x504xf32> to vector<24x384xf32>
    %25 = vector.extract_strided_slice %15 {offsets = [0, 96], sizes = [24, 384], strides = [1, 1]} : vector<24x504xf32> to vector<24x384xf32>
    %26 = vector.extract_strided_slice %15 {offsets = [0, 120], sizes = [24, 384], strides = [1, 1]} : vector<24x504xf32> to vector<24x384xf32>
    %27 = arith.addf %21, %22 : vector<24x384xf32>
    %28 = arith.addf %27, %23 : vector<24x384xf32>
    %29 = arith.addf %24, %25 : vector<24x384xf32>
    %30 = arith.addf %29, %26 : vector<24x384xf32>
    %31 = arith.addf %21, %26 : vector<24x384xf32>
    %32 = vector.extract_strided_slice %16 {offsets = [0, 0], sizes = [24, 384], strides = [1, 1]} : vector<24x504xf32> to vector<24x384xf32>
    %33 = vector.extract_strided_slice %16 {offsets = [0, 24], sizes = [24, 384], strides = [1, 1]} : vector<24x504xf32> to vector<24x384xf32>
    %34 = vector.extract_strided_slice %16 {offsets = [0, 48], sizes = [24, 384], strides = [1, 1]} : vector<24x504xf32> to vector<24x384xf32>
    %35 = vector.extract_strided_slice %16 {offsets = [0, 72], sizes = [24, 384], strides = [1, 1]} : vector<24x504xf32> to vector<24x384xf32>
    %36 = vector.extract_strided_slice %16 {offsets = [0, 96], sizes = [24, 384], strides = [1, 1]} : vector<24x504xf32> to vector<24x384xf32>
    %37 = vector.extract_strided_slice %16 {offsets = [0, 120], sizes = [24, 384], strides = [1, 1]} : vector<24x504xf32> to vector<24x384xf32>
    %38 = arith.addf %32, %33 : vector<24x384xf32>
    %39 = arith.addf %38, %34 : vector<24x384xf32>
    %40 = arith.addf %35, %36 : vector<24x384xf32>
    %41 = arith.addf %40, %37 : vector<24x384xf32>
    %42 = vector.extract_strided_slice %20 {offsets = [0, 0], sizes = [24, 384], strides = [1, 1]} : vector<24x504xf32> to vector<24x384xf32>
    %43 = vector.extract_strided_slice %20 {offsets = [0, 24], sizes = [24, 384], strides = [1, 1]} : vector<24x504xf32> to vector<24x384xf32>
    %44 = vector.extract_strided_slice %20 {offsets = [0, 48], sizes = [24, 384], strides = [1, 1]} : vector<24x504xf32> to vector<24x384xf32>
    %45 = vector.extract_strided_slice %20 {offsets = [0, 72], sizes = [24, 384], strides = [1, 1]} : vector<24x504xf32> to vector<24x384xf32>
    %46 = vector.extract_strided_slice %20 {offsets = [0, 96], sizes = [24, 384], strides = [1, 1]} : vector<24x504xf32> to vector<24x384xf32>
    %47 = vector.extract_strided_slice %20 {offsets = [0, 120], sizes = [24, 384], strides = [1, 1]} : vector<24x504xf32> to vector<24x384xf32>
    %48 = arith.addf %42, %43 : vector<24x384xf32>
    %49 = arith.addf %48, %44 : vector<24x384xf32>
    %50 = arith.addf %45, %46 : vector<24x384xf32>
    %51 = arith.addf %50, %47 : vector<24x384xf32>
    %52 = arith.addf %42, %47 : vector<24x384xf32>
    %53 = arith.addf %28, %30 : vector<24x384xf32>
    %54 = arith.addf %49, %51 : vector<24x384xf32>
    %55 = arith.subf %28, %30 : vector<24x384xf32>
    %56 = arith.addf %39, %41 : vector<24x384xf32>
    %cst_1 = arith.constant 2.000000e+00 : f32
    %57 = vector.broadcast %cst_1 : f32 to vector<24x384xf32>
    %58 = arith.mulf %57, %31 : vector<24x384xf32>
    %59 = arith.subf %53, %58 : vector<24x384xf32>
    %60 = arith.subf %39, %41 : vector<24x384xf32>
    %cst_2 = arith.constant 2.000000e+00 : f32
    %61 = vector.broadcast %cst_2 : f32 to vector<24x384xf32>
    %62 = arith.mulf %61, %52 : vector<24x384xf32>
    %63 = arith.subf %54, %62 : vector<24x384xf32>
    %c0_3 = arith.constant 0 : index
    %c0_4 = arith.constant 0 : index
    %64 = vector.load %arg8[%c0_3, %c0_4] : memref<168x384xf32, #tpu.memory_space<vmem>>, vector<24x384xf32>
    tpu.vector_store %arg8[%c0_3, %c0_4], %53 {strides = array<i32>} : memref<168x384xf32, #tpu.memory_space<vmem>>, vector<24x384xf32>,
    %c24 = arith.constant 24 : index
    %c0_5 = arith.constant 0 : index
    %65 = vector.load %arg8[%c24, %c0_5] : memref<168x384xf32, #tpu.memory_space<vmem>>, vector<24x384xf32>
    tpu.vector_store %arg8[%c24, %c0_5], %55 {strides = array<i32>} : memref<168x384xf32, #tpu.memory_space<vmem>>, vector<24x384xf32>,
    %c48 = arith.constant 48 : index
    %c0_6 = arith.constant 0 : index
    %66 = vector.load %arg8[%c48, %c0_6] : memref<168x384xf32, #tpu.memory_space<vmem>>, vector<24x384xf32>
    tpu.vector_store %arg8[%c48, %c0_6], %56 {strides = array<i32>} : memref<168x384xf32, #tpu.memory_space<vmem>>, vector<24x384xf32>,
    %c72 = arith.constant 72 : index
    %c0_7 = arith.constant 0 : index
    %67 = vector.load %arg8[%c72, %c0_7] : memref<168x384xf32, #tpu.memory_space<vmem>>, vector<24x384xf32>
    tpu.vector_store %arg8[%c72, %c0_7], %59 {strides = array<i32>} : memref<168x384xf32, #tpu.memory_space<vmem>>, vector<24x384xf32>,
    %c96 = arith.constant 96 : index
    %c0_8 = arith.constant 0 : index
    %68 = vector.load %arg8[%c96, %c0_8] : memref<168x384xf32, #tpu.memory_space<vmem>>, vector<24x384xf32>
    tpu.vector_store %arg8[%c96, %c0_8], %54 {strides = array<i32>} : memref<168x384xf32, #tpu.memory_space<vmem>>, vector<24x384xf32>,
    %c120 = arith.constant 120 : index
    %c0_9 = arith.constant 0 : index
    %69 = vector.load %arg8[%c120, %c0_9] : memref<168x384xf32, #tpu.memory_space<vmem>>, vector<24x384xf32>
    tpu.vector_store %arg8[%c120, %c0_9], %60 {strides = array<i32>} : memref<168x384xf32, #tpu.memory_space<vmem>>, vector<24x384xf32>,
    %c144 = arith.constant 144 : index
    %c0_10 = arith.constant 0 : index
    %70 = vector.load %arg8[%c144, %c0_10] : memref<168x384xf32, #tpu.memory_space<vmem>>, vector<24x384xf32>
    tpu.vector_store %arg8[%c144, %c0_10], %63 {strides = array<i32>} : memref<168x384xf32, #tpu.memory_space<vmem>>, vector<24x384xf32>,
    %c0_11 = arith.constant 0 : index
    %c0_12 = arith.constant 0 : index
    %71 = vector.load %arg3[%c0_11, %c0_12] : memref<512x168xf32, #tpu.memory_space<vmem>>, vector<512x168xf32>
    %c0_13 = arith.constant 0 : index
    %c0_14 = arith.constant 0 : index
    %72 = vector.load %arg8[%c0_13, %c0_14] : memref<168x384xf32, #tpu.memory_space<vmem>>, vector<168x384xf32>
    %cst_15 = arith.constant dense<0.000000e+00> : vector<512x384xf32>
    %73 = tpu.matmul %71, %72, %cst_15 {dimension_numbers = #tpu.dot_dimension_numbers<[1], [0], [0], [1], [0, 0, 1, 1], [], []>} : vector<512x168xf32>, vector<168x384xf32>, vector<512x384xf32> -> vector<512x384xf32>
    %cst_16 = arith.constant 0.000000e+00 : f32
    %74 = vector.broadcast %cst_16 : f32 to vector<512x384xf32>
    %75 = arith.maximumf %73, %74 : vector<512x384xf32>
    %c0_17 = arith.constant 0 : index
    %c0_18 = arith.constant 0 : index
    %76 = vector.load %arg4[%c0_17, %c0_18] : memref<256x512xf32, #tpu.memory_space<vmem>>, vector<256x512xf32>
    %cst_19 = arith.constant dense<0.000000e+00> : vector<256x384xf32>
    %77 = tpu.matmul %76, %75, %cst_19 {dimension_numbers = #tpu.dot_dimension_numbers<[1], [0], [0], [1], [0, 0, 1, 1], [], []>} : vector<256x512xf32>, vector<512x384xf32>, vector<256x384xf32> -> vector<256x384xf32>
    %cst_20 = arith.constant 0.000000e+00 : f32
    %78 = vector.broadcast %cst_20 : f32 to vector<256x384xf32>
    %79 = arith.maximumf %77, %78 : vector<256x384xf32>
    %c0_21 = arith.constant 0 : index
    %c0_22 = arith.constant 0 : index
    %80 = vector.load %arg5[%c0_21, %c0_22] : memref<32x256xf32, #tpu.memory_space<vmem>>, vector<32x256xf32>
    %cst_23 = arith.constant dense<0.000000e+00> : vector<32x384xf32>
    %81 = tpu.matmul %80, %79, %cst_23 {dimension_numbers = #tpu.dot_dimension_numbers<[1], [0], [0], [1], [0, 0, 1, 1], [], []>} : vector<32x256xf32>, vector<256x384xf32>, vector<32x384xf32> -> vector<32x384xf32>
    %c0_24 = arith.constant 0 : index
    %c0_25 = arith.constant 0 : index
    %82 = vector.load %arg6[%c0_24, %c0_25] : memref<32x1xf32, #tpu.memory_space<vmem>>, vector<32x1xf32>
    %83 = vector.broadcast %82 : vector<32x1xf32> to vector<32x384xf32>
    %84 = arith.addf %81, %83 : vector<32x384xf32>
    %85 = vector.extract_strided_slice %84 {offsets = [0, 0], sizes = [16, 384], strides = [1, 1]} : vector<32x384xf32> to vector<16x384xf32>
    %c0_26 = arith.constant 0 : index
    %c0_27 = arith.constant 0 : index
    %c0_28 = arith.constant 0 : index
    %c0_29 = arith.constant 0 : index
    %86 = vector.load %arg7[%c0_26, %c0_27, %c0_28, %c0_29] : memref<1x2x16x384xf32, #tpu.memory_space<vmem>>, vector<1x1x16x384xf32>
    %87 = vector.shape_cast %86 : vector<1x1x16x384xf32> to vector<16x384xf32>
    %88 = vector.shape_cast %85 : vector<16x384xf32> to vector<1x1x16x384xf32>
    tpu.vector_store %arg7[%c0_26, %c0_27, %c0_28, %c0_29], %88 {strides = array<i32>} : memref<1x2x16x384xf32, #tpu.memory_space<vmem>>, vector<1x1x16x384xf32>,
    %89 = vector.extract_strided_slice %84 {offsets = [16, 0], sizes = [16, 384], strides = [1, 1]} : vector<32x384xf32> to vector<16x384xf32>
    %c0_30 = arith.constant 0 : index
    %c1 = arith.constant 1 : index
    %c0_31 = arith.constant 0 : index
    %c0_32 = arith.constant 0 : index
    %90 = vector.load %arg7[%c0_30, %c1, %c0_31, %c0_32] : memref<1x2x16x384xf32, #tpu.memory_space<vmem>>, vector<1x1x16x384xf32>
    %91 = vector.shape_cast %90 : vector<1x1x16x384xf32> to vector<16x384xf32>
    %92 = vector.shape_cast %89 : vector<16x384xf32> to vector<1x1x16x384xf32>
    tpu.vector_store %arg7[%c0_30, %c1, %c0_31, %c0_32], %92 {strides = array<i32>} : memref<1x2x16x384xf32, #tpu.memory_space<vmem>>, vector<1x1x16x384xf32>,
    return
  }
  func.func @transform_0(%arg0: i32, %arg1: i32) -> (i32, i32, i32) {
    %c0_i32 = arith.constant 0 : i32
    %c0_i32_0 = arith.constant 0 : i32
    %c0_i32_1 = arith.constant 0 : i32
    return %arg0, %c0_i32, %c0_i32_0 : i32, i32, i32
  }
  func.func @transform_1(%arg0: i32, %arg1: i32) -> (i32, i32) {
    %c0_i32 = arith.constant 0 : i32
    %c0_i32_0 = arith.constant 0 : i32
    %c0_i32_1 = arith.constant 0 : i32
    return %c0_i32, %c0_i32_0 : i32, i32
  }
  func.func @transform_2(%arg0: i32, %arg1: i32) -> (i32, i32) {
    %c0_i32 = arith.constant 0 : i32
    %c0_i32_0 = arith.constant 0 : i32
    %c0_i32_1 = arith.constant 0 : i32
    return %c0_i32, %c0_i32_0 : i32, i32
  }
  func.func @transform_3(%arg0: i32, %arg1: i32) -> (i32, i32) {
    %c0_i32 = arith.constant 0 : i32
    %c0_i32_0 = arith.constant 0 : i32
    %c0_i32_1 = arith.constant 0 : i32
    return %c0_i32, %c0_i32_0 : i32, i32
  }
  func.func @transform_4(%arg0: i32, %arg1: i32) -> (i32, i32) {
    %c0_i32 = arith.constant 0 : i32
    %c0_i32_0 = arith.constant 0 : i32
    %c0_i32_1 = arith.constant 0 : i32
    return %c0_i32, %c0_i32_0 : i32, i32
  }
  func.func @transform_5(%arg0: i32, %arg1: i32) -> (i32, i32, i32, i32) {
    %c0_i32 = arith.constant 0 : i32
    %c0_i32_0 = arith.constant 0 : i32
    %c0_i32_1 = arith.constant 0 : i32
    return %arg0, %c0_i32, %arg1, %c0_i32_0 : i32, i32, i32, i32
  }
}

</mosaic_0001>

<llo_original>
// kernel: online_model_forward.1
$region0: #{online_model_forward.1}
  #allocation0 [shape = 'u32[]', space=smem, size = 0x4, offset = 0x4, fixed_abs, tag = 'smem constant byte address 0x4 - core index']
  #allocation1 [shape = 'u32[144,128]{1,0:T(1,128)}', space=vmem, size = 0x12000, scoped, tag = 'internal scratch']
  #allocation2 [shape = 'f32[168,384]{1,0:T(8,128)}', space=vmem, size = 0x3f000, scoped, tag = 'scratch operand']
  %s0 = inlined_call_operand.vmem [shape: f32[2,24,528], index: 0, kind: input, shape index: {}]
  %s1 = inlined_call_operand.vmem [shape: f32[512,168], index: 1, kind: input, shape index: {}]
  %s2 = inlined_call_operand.vmem [shape: f32[256,512], index: 2, kind: input, shape index: {}]
  %s3 = inlined_call_operand.vmem [shape: f32[32,256], index: 3, kind: input, shape index: {}]
  %s4 = inlined_call_operand.vmem [shape: f32[32,1], index: 4, kind: input, shape index: {}]
  %s5 = inlined_call_operand.vmem [shape: f32[2,2,16,384], index: 5, kind: output, shape index: {}]
  %s6 = sld [smem:[#allocation0]]
  $region53: #{online_model_forward.1} parent=0
    _
  %s8 = ssub.s32 1, %s6
  %s9 = scalar_select 0, %s8, %s6
  loop: start=0, step=1, limit=4
  $region2: #{online_model_forward.1} parent=0 // loop_pre_header
    _
  $region3: #{online_model_forward.1} parent=0 // loop_header
    %s11 = sphi 0, %s15
    %p12 = scmp.ge.s32.totalorder %s11, 4
    %s18 = sphi 0, %s30
    %s19 = sphi 0, %s26
    %s20 = sphi 0, %s18
    %s21 = sphi 0, %s19
    %s22 = sphi 0, %s20
    %s23 = sphi 0, %s21
    %s33 = sphi 0, %s35
    %s36 = sphi 0, %s33
    %s37 = sphi 0, %s36
    %s53 = sphi 0, %s37
    %s57 = sphi 0, %s57
    %s59 = sphi 0, %s57
    %s60 = sphi 0, %s59
    %s74 = sphi 0, %s60
    %s78 = sphi 0, %s78
    %s80 = sphi 0, %s78
    %s81 = sphi 0, %s80
    %s95 = sphi 0, %s81
    %s99 = sphi 0, %s99
    %s101 = sphi 0, %s99
    %s102 = sphi 0, %s101
    %s116 = sphi 0, %s102
    %s120 = sphi 0, %s120
    %s122 = sphi 0, %s120
    %s123 = sphi 0, %s122
    %s137 = sphi 0, %s123
    %s145 = sphi 0, %s147
    %s148 = sphi 0, %s145
    %s149 = sphi 0, %s148
    %s165 = sphi 0, %s149
  $region4: #{online_model_forward.1} parent=0 // loop_header_branch
    %14 = sbr.rel (%p12) target = $region8
  $region5: #{online_model_forward.1} parent=0 // loop_body
    %s16 = ssub.s32 %s11, 1
    %s17 = ssub.s32 %s11, 2
    %s24 = sadd.s32 1, %s19
    %p25 = scmp.ge.s32.totalorder %s24, 1
    %s26 = scalar_select %p25, 0, %s24
    %s27 = sadd.s32 1, %s18
    %s28 = scalar_select %p25, %s27, %s18
    %p29 = scmp.ge.s32.totalorder %s28, 2
    %s30 = scalar_select %p29, 0, %s28
    %s31 = ssub.s32 %s18, %s30
    %p32 = scmp.eq.s32.totalorder %s31, 0
    %s34 = sadd.s32 %s33, 1
    %s35 = scalar_select %p32, %s33, %s34
    %p38 = pneg %p32
    %p39 = scmp.eq.s32.totalorder %s11, 1
    %p40 = por %p38, %p39
    %p41 = scmp.ne.s32.totalorder %s33, %s36
    %p42 = scmp.eq.s32.totalorder %s11, 0
    %p43 = por %p41, %p42
    %p44 = scmp.ne.s32.totalorder %s33, %s36
    %p45 = scmp.eq.s32.totalorder %s16, 1
    %p46 = por %p44, %p45
    %p47 = scmp.ne.s32.totalorder %s36, %s37
    %p48 = scmp.eq.s32.totalorder %s16, 0
    %p49 = por %p47, %p48
    %p50 = scmp.ne.s32.totalorder %s36, %s37
    %p51 = scmp.eq.s32.totalorder %s17, 1
    %p52 = por %p50, %p51
    %p54 = scmp.ne.s32.totalorder %s37, %s53
    %p55 = scmp.eq.s32.totalorder %s17, 0
    %p56 = por %p54, %p55
    %s58 = sadd.s32 %s57, 1
    %p61 = scmp.eq.s32.totalorder %s11, 1
    %p62 = scmp.ne.s32.totalorder %s57, %s59
    %p63 = scmp.eq.s32.totalorder %s11, 0
    %p64 = por %p62, %p63
    %p65 = scmp.ne.s32.totalorder %s57, %s59
    %p66 = scmp.eq.s32.totalorder %s16, 1
    %p67 = por %p65, %p66
    %p68 = scmp.ne.s32.totalorder %s59, %s60
    %p69 = scmp.eq.s32.totalorder %s16, 0
    %p70 = por %p68, %p69
    %p71 = scmp.ne.s32.totalorder %s59, %s60
    %p72 = scmp.eq.s32.totalorder %s17, 1
    %p73 = por %p71, %p72
    %p75 = scmp.ne.s32.totalorder %s60, %s74
    %p76 = scmp.eq.s32.totalorder %s17, 0
    %p77 = por %p75, %p76
    %s79 = sadd.s32 %s78, 1
    %p82 = scmp.eq.s32.totalorder %s11, 1
    %p83 = scmp.ne.s32.totalorder %s78, %s80
    %p84 = scmp.eq.s32.totalorder %s11, 0
    %p85 = por %p83, %p84
    %p86 = scmp.ne.s32.totalorder %s78, %s80
    %p87 = scmp.eq.s32.totalorder %s16, 1
    %p88 = por %p86, %p87
    %p89 = scmp.ne.s32.totalorder %s80, %s81
    %p90 = scmp.eq.s32.totalorder %s16, 0
    %p91 = por %p89, %p90
    %p92 = scmp.ne.s32.totalorder %s80, %s81
    %p93 = scmp.eq.s32.totalorder %s17, 1
    %p94 = por %p92, %p93
    %p96 = scmp.ne.s32.totalorder %s81, %s95
    %p97 = scmp.eq.s32.totalorder %s17, 0
    %p98 = por %p96, %p97
    %s100 = sadd.s32 %s99, 1
    %p103 = scmp.eq.s32.totalorder %s11, 1
    %p104 = scmp.ne.s32.totalorder %s99, %s101
    %p105 = scmp.eq.s32.totalorder %s11, 0
    %p106 = por %p104, %p105
    %p107 = scmp.ne.s32.totalorder %s99, %s101
    %p108 = scmp.eq.s32.totalorder %s16, 1
    %p109 = por %p107, %p108
    %p110 = scmp.ne.s32.totalorder %s101, %s102
    %p111 = scmp.eq.s32.totalorder %s16, 0
    %p112 = por %p110, %p111
    %p113 = scmp.ne.s32.totalorder %s101, %s102
    %p114 = scmp.eq.s32.totalorder %s17, 1
    %p115 = por %p113, %p114
    %p117 = scmp.ne.s32.totalorder %s102, %s116
    %p118 = scmp.eq.s32.totalorder %s17, 0
    %p119 = por %p117, %p118
    %s121 = sadd.s32 %s120, 1
    %p124 = scmp.eq.s32.totalorder %s11, 1
    %p125 = scmp.ne.s32.totalorder %s120, %s122
    %p126 = scmp.eq.s32.totalorder %s11, 0
    %p127 = por %p125, %p126
    %p128 = scmp.ne.s32.totalorder %s120, %s122
    %p129 = scmp.eq.s32.totalorder %s16, 1
    %p130 = por %p128, %p129
    %p131 = scmp.ne.s32.totalorder %s122, %s123
    %p132 = scmp.eq.s32.totalorder %s16, 0
    %p133 = por %p131, %p132
    %p134 = scmp.ne.s32.totalorder %s122, %s123
    %p135 = scmp.eq.s32.totalorder %s17, 1
    %p136 = por %p134, %p135
    %p138 = scmp.ne.s32.totalorder %s123, %s137
    %p139 = scmp.eq.s32.totalorder %s17, 0
    %p140 = por %p138, %p139
    %s141 = ssub.s32 %s18, %s30
    %s142 = ssub.s32 %s19, %s26
    %s143 = sor.u32 %s141, %s142
    %p144 = scmp.eq.s32.totalorder %s143, 0
    %s146 = sadd.s32 %s145, 1
    %s147 = scalar_select %p144, %s145, %s146
    %p150 = pneg %p144
    %p151 = scmp.eq.s32.totalorder %s11, 1
    %p152 = por %p150, %p151
    %p153 = scmp.ne.s32.totalorder %s145, %s148
    %p154 = scmp.eq.s32.totalorder %s11, 0
    %p155 = por %p153, %p154
    %p156 = scmp.ne.s32.totalorder %s145, %s148
    %p157 = scmp.eq.s32.totalorder %s16, 1
    %p158 = por %p156, %p157
    %p159 = scmp.ne.s32.totalorder %s148, %s149
    %p160 = scmp.eq.s32.totalorder %s16, 0
    %p161 = por %p159, %p160
    %p162 = scmp.ne.s32.totalorder %s148, %s149
    %p163 = scmp.eq.s32.totalorder %s17, 1
    %p164 = por %p162, %p163
    %p166 = scmp.ne.s32.totalorder %s149, %s165
    %p167 = scmp.eq.s32.totalorder %s17, 0
    %p168 = por %p166, %p167
    %p169 = scmp.le.s32.totalorder 1, %s11
    %p170 = scmp.lt.s32.totalorder %s11, 3
    %p171 = pnand %p169, %p170
    %p172 = pneg %p171
    // Predicated region
    $region9: #{online_model_forward.1} parent=5 // pred_check
      _
    $region10: #{online_model_forward.1} parent=5 // pred_check_branch
      %174 = sbr.rel (%p171) target = $region12
    $region11: #{online_model_forward.1} parent=5 // pred_region
      %s175 = ssub.s32 %s11, 1
      // Predicated region
      $region13: #{online_model_forward.1} parent=11 // pred_check
        %p176 = pneg %p70
      $region14: #{online_model_forward.1} parent=11 // pred_check_branch
        %178 = sbr.rel (%p176) target = $region16
      $region15: #{online_model_forward.1} parent=11 // pred_region
        _
      $region16: #{online_model_forward.1} parent=11 // pred_fallthru
        _
      // Predicated region
      $region17: #{online_model_forward.1} parent=11 // pred_check
        %p179 = pneg %p91
      $region18: #{online_model_forward.1} parent=11 // pred_check_branch
        %181 = sbr.rel (%p179) target = $region20
      $region19: #{online_model_forward.1} parent=11 // pred_region
        _
      $region20: #{online_model_forward.1} parent=11 // pred_fallthru
        _
      // Predicated region
      $region21: #{online_model_forward.1} parent=11 // pred_check
        %p182 = pneg %p112
      $region22: #{online_model_forward.1} parent=11 // pred_check_branch
        %184 = sbr.rel (%p182) target = $region24
      $region23: #{online_model_forward.1} parent=11 // pred_region
        _
      $region24: #{online_model_forward.1} parent=11 // pred_fallthru
        _
      // Predicated region
      $region25: #{online_model_forward.1} parent=11 // pred_check
        %p185 = pneg %p133
      $region26: #{online_model_forward.1} parent=11 // pred_check_branch
        %187 = sbr.rel (%p185) target = $region28
      $region27: #{online_model_forward.1} parent=11 // pred_region
        _
      $region28: #{online_model_forward.1} parent=11 // pred_fallthru
        _
    $region12: #{online_model_forward.1} parent=5 // pred_fallthru
      _
    %p188 = scmp.lt.s32.totalorder %s11, 2
    // Predicated region
    $region29: #{online_model_forward.1} parent=5 // pred_check
      %p189 = pneg %p188
    $region30: #{online_model_forward.1} parent=5 // pred_check_branch
      %191 = sbr.rel (%p189) target = $region32
    $region31: #{online_model_forward.1} parent=5 // pred_region
      // Predicated region
      $region33: #{online_model_forward.1} parent=31 // pred_check
        %p192 = pneg %p43
      $region34: #{online_model_forward.1} parent=31 // pred_check_branch
        %194 = sbr.rel (%p192) target = $region36
      $region35: #{online_model_forward.1} parent=31 // pred_region
        %p195 = scmp.lt.s32.totalorder %s18, 1
        %s196 = scalar_select %p195, %s18, 1
        %s197 = smul.addr %s196, 15
        %s198 = smul.addr %s197, 8
        %s199 = scalar_lea.vmem %s0, %s198
      $region36: #{online_model_forward.1} parent=31 // pred_fallthru
        _
    $region32: #{online_model_forward.1} parent=5 // pred_fallthru
      _
    %p200 = scmp.le.s32.totalorder 1, %s11
    %p201 = scmp.lt.s32.totalorder %s11, 3
    %p202 = pnand %p200, %p201
    %p203 = pneg %p202
    // Predicated region
    $region37: #{online_model_forward.1} parent=5 // pred_check
      _
    $region38: #{online_model_forward.1} parent=5 // pred_check_branch
      %205 = sbr.rel (%p202) target = $region40
    $region39: #{online_model_forward.1} parent=5 // pred_region
      %s206 = ssub.s32 %s11, 1
      %p207 = scmp.lt.s32.totalorder %s20, 1
      %s208 = scalar_select %p207, %s20, 1
      %s209 = smul.addr %s208, 15
      %s210 = smul.addr %s209, 8
      %s211 = scalar_lea.vmem %s0, %s210
      %p212 = pneg %p49
      %p213 = pneg %p46
      %p214 = pneg %p70
      %p215 = pneg %p67
      %p216 = pneg %p91
      %p217 = pneg %p88
      %p218 = pneg %p112
      %p219 = pneg %p109
      %p220 = pneg %p133
      %p221 = pneg %p130
      %p222 = pneg %p161
      %p223 = pneg %p158
      %s224 = smul.u32 2, %s21
      %p225 = scmp.lt.s32.totalorder %s20, 1
      %s226 = scalar_select %p225, %s20, 1
      %p227 = scmp.lt.s32.totalorder %s224, 1
      %s228 = scalar_select %p227, %s224, 1
      %s229 = smul.addr %s228, 3
      %s230 = smul.addr %s226, 12
      %s231 = sadd.s32 %s229, %s230
      %s232 = smul.addr %s231, 8
      %s233 = scalar_lea.vmem %s5, %s232
      %p234 = scmp.lt.s32.totalorder %s20, 1
      %s235 = scalar_select %p234, %s20, 1
      %s236 = smul.addr %s235, 15
      %s237 = smul.addr %s236, 8
      %s238 = scalar_lea.vmem %s0, %s237
      %s239 = smul.u32 2, %s21
      %p240 = scmp.lt.s32.totalorder %s20, 1
      %s241 = scalar_select %p240, %s20, 1
      %p242 = scmp.lt.s32.totalorder %s239, 1
      %s243 = scalar_select %p242, %s239, 1
      %s244 = smul.addr %s243, 3
      %s245 = smul.addr %s241, 12
      %s246 = sadd.s32 %s244, %s245
      %s247 = smul.addr %s246, 8
      %s248 = scalar_lea.vmem %s5, %s247
      %s249 = smul.u32 2, %s21
      %s250 = smul.u32 %s21, 16
      %s251 = sshra.s32 %s250, 3
      %s252 = sand.u32 %s250, 7
      %s253 = smul.u32 %s251, 5
      %s254 = smul.addr %s253, 8
      %s255 = scalar_lea.vmem %s238, %s254
      %v256 = vld [vmem:[%s255] sm:$0xff]
      %v257 = vld [vmem:[%s255 + $0x8] sm:$0xff]
      %v258 = vld [vmem:[%s255 + $0x10] sm:$0xff]
      %v259 = vld [vmem:[%s255 + $0x18] sm:$0xff]
      %v260 = vld [vmem:[%s255 + $0x28] sm:$0xff]
      %v261 = vld [vmem:[%s255 + $0x30] sm:$0xff]
      %v262 = vld [vmem:[%s255 + $0x38] sm:$0xff]
      %v263 = vld [vmem:[%s255 + $0x40] sm:$0xff]
      %v264 = vld [vmem:[%s255 + $0x50] sm:$0xff]
      %v265 = vld [vmem:[%s255 + $0x58] sm:$0xff]
      %v266 = vld [vmem:[%s255 + $0x60] sm:$0xff]
      %v267 = vld [vmem:[%s255 + $0x68] sm:$0xff]
      %280 = vrot.lane.b32.xlu0 %v256, 127
      %v281 = vpop.permute.xlu0 %280
      %282 = vrot.lane.b32.xlu0 %v257, 127
      %v283 = vpop.permute.xlu0 %282
      %284 = vrot.lane.b32.xlu0 %v258, 127
      %v285 = vpop.permute.xlu0 %284
      %286 = vrot.lane.b32.xlu0 %v259, 127
      %v287 = vpop.permute.xlu0 %286
      %288 = vrot.lane.b32.xlu0 %v260, 127
      %v289 = vpop.permute.xlu0 %288
      %290 = vrot.lane.b32.xlu0 %v261, 127
      %v291 = vpop.permute.xlu0 %290
      %292 = vrot.lane.b32.xlu0 %v262, 127
      %v293 = vpop.permute.xlu0 %292
      %294 = vrot.lane.b32.xlu0 %v263, 127
      %v295 = vpop.permute.xlu0 %294
      %296 = vrot.lane.b32.xlu0 %v264, 127
      %v297 = vpop.permute.xlu0 %296
      %298 = vrot.lane.b32.xlu0 %v265, 127
      %v299 = vpop.permute.xlu0 %298
      %300 = vrot.lane.b32.xlu0 %v266, 127
      %v301 = vpop.permute.xlu0 %300
      %302 = vrot.lane.b32.xlu0 %v267, 127
      %v303 = vpop.permute.xlu0 %302
      %vm304 = vcmask 1039360
      %v305 = vsel %vm304, %v281, %v283
      %v306 = vsel %vm304, %v283, %v285
      %v307 = vsel %vm304, %v285, %v287
      %v308 = vsel %vm304, %v289, %v291
      %v309 = vsel %vm304, %v291, %v293
      %v310 = vsel %vm304, %v293, %v295
      %v311 = vsel %vm304, %v297, %v299
      %v312 = vsel %vm304, %v299, %v301
      %v313 = vsel %vm304, %v301, %v303
      %v326 = vadd.f32 %v256, %v305
      %v327 = vadd.f32 %v257, %v306
      %v328 = vadd.f32 %v258, %v307
      %v329 = vadd.f32 %v259, %v287
      %v330 = vadd.f32 %v260, %v308
      %v331 = vadd.f32 %v261, %v309
      %v332 = vadd.f32 %v262, %v310
      %v333 = vadd.f32 %v263, %v295
      %v334 = vadd.f32 %v264, %v311
      %v335 = vadd.f32 %v265, %v312
      %v336 = vadd.f32 %v266, %v313
      %v337 = vadd.f32 %v267, %v303
      %338 = vrot.lane.b32.xlu0 %v256, 126
      %v339 = vpop.permute.xlu0 %338
      %340 = vrot.lane.b32.xlu0 %v257, 126
      %v341 = vpop.permute.xlu0 %340
      %342 = vrot.lane.b32.xlu0 %v258, 126
      %v343 = vpop.permute.xlu0 %342
      %344 = vrot.lane.b32.xlu0 %v259, 126
      %v345 = vpop.permute.xlu0 %344
      %346 = vrot.lane.b32.xlu0 %v260, 126
      %v347 = vpop.permute.xlu0 %346
      %348 = vrot.lane.b32.xlu0 %v261, 126
      %v349 = vpop.permute.xlu0 %348
      %350 = vrot.lane.b32.xlu0 %v262, 126
      %v351 = vpop.permute.xlu0 %350
      %352 = vrot.lane.b32.xlu0 %v263, 126
      %v353 = vpop.permute.xlu0 %352
      %354 = vrot.lane.b32.xlu0 %v264, 126
      %v355 = vpop.permute.xlu0 %354
      %356 = vrot.lane.b32.xlu0 %v265, 126
      %v357 = vpop.permute.xlu0 %356
      %358 = vrot.lane.b32.xlu0 %v266, 126
      %v359 = vpop.permute.xlu0 %358
      %360 = vrot.lane.b32.xlu0 %v267, 126
      %v361 = vpop.permute.xlu0 %360
      %vm362 = vcmask 1031168
      %v363 = vsel %vm362, %v339, %v341
      %v364 = vsel %vm362, %v341, %v343
      %v365 = vsel %vm362, %v343, %v345
      %v366 = vsel %vm362, %v347, %v349
      %v367 = vsel %vm362, %v349, %v351
      %v368 = vsel %vm362, %v351, %v353
      %v369 = vsel %vm362, %v355, %v357
      %v370 = vsel %vm362, %v357, %v359
      %v371 = vsel %vm362, %v359, %v361
      %v384 = vadd.f32 %v326, %v363
      %v385 = vadd.f32 %v327, %v364
      %v386 = vadd.f32 %v328, %v365
      %v387 = vadd.f32 %v329, %v345
      %v388 = vadd.f32 %v330, %v366
      %v389 = vadd.f32 %v331, %v367
      %v390 = vadd.f32 %v332, %v368
      %v391 = vadd.f32 %v333, %v353
      %v392 = vadd.f32 %v334, %v369
      %v393 = vadd.f32 %v335, %v370
      %v394 = vadd.f32 %v336, %v371
      %v395 = vadd.f32 %v337, %v361
      %408 = vrot.lane.b32.xlu0 %v384, 125
      %v409 = vpop.permute.xlu0 %408
      %410 = vrot.lane.b32.xlu0 %v385, 125
      %v411 = vpop.permute.xlu0 %410
      %412 = vrot.lane.b32.xlu0 %v386, 125
      %v413 = vpop.permute.xlu0 %412
      %414 = vrot.lane.b32.xlu0 %v387, 125
      %v415 = vpop.permute.xlu0 %414
      %416 = vrot.lane.b32.xlu0 %v388, 125
      %v417 = vpop.permute.xlu0 %416
      %418 = vrot.lane.b32.xlu0 %v389, 125
      %v419 = vpop.permute.xlu0 %418
      %420 = vrot.lane.b32.xlu0 %v390, 125
      %v421 = vpop.permute.xlu0 %420
      %422 = vrot.lane.b32.xlu0 %v391, 125
      %v423 = vpop.permute.xlu0 %422
      %424 = vrot.lane.b32.xlu0 %v392, 125
      %v425 = vpop.permute.xlu0 %424
      %426 = vrot.lane.b32.xlu0 %v393, 125
      %v427 = vpop.permute.xlu0 %426
      %428 = vrot.lane.b32.xlu0 %v394, 125
      %v429 = vpop.permute.xlu0 %428
      %430 = vrot.lane.b32.xlu0 %v395, 125
      %v431 = vpop.permute.xlu0 %430
      %vm432 = vcmask 1022976
      %v433 = vsel %vm432, %v409, %v411
      %v434 = vsel %vm432, %v411, %v413
      %v435 = vsel %vm432, %v413, %v415
      %v436 = vsel %vm432, %v417, %v419
      %v437 = vsel %vm432, %v419, %v421
      %v438 = vsel %vm432, %v421, %v423
      %v439 = vsel %vm432, %v425, %v427
      %v440 = vsel %vm432, %v427, %v429
      %v441 = vsel %vm432, %v429, %v431
      %v454 = vadd.f32 %v384, %v433
      %v455 = vadd.f32 %v385, %v434
      %v456 = vadd.f32 %v386, %v435
      %v457 = vadd.f32 %v387, %v415
      %v458 = vadd.f32 %v388, %v436
      %v459 = vadd.f32 %v389, %v437
      %v460 = vadd.f32 %v390, %v438
      %v461 = vadd.f32 %v391, %v423
      %v462 = vadd.f32 %v392, %v439
      %v463 = vadd.f32 %v393, %v440
      %v464 = vadd.f32 %v394, %v441
      %v465 = vadd.f32 %v395, %v431
      %v466 = vsub.f32 %v384, %v433
      %v467 = vsub.f32 %v385, %v434
      %v468 = vsub.f32 %v386, %v435
      %v469 = vsub.f32 %v387, %v415
      %v470 = vsub.f32 %v388, %v436
      %v471 = vsub.f32 %v389, %v437
      %v472 = vsub.f32 %v390, %v438
      %v473 = vsub.f32 %v391, %v423
      %v474 = vsub.f32 %v392, %v439
      %v475 = vsub.f32 %v393, %v440
      %v476 = vsub.f32 %v394, %v441
      %v477 = vsub.f32 %v395, %v431
      %478 = vrot.lane.b32.xlu0 %v256, 123
      %v479 = vpop.permute.xlu0 %478
      %480 = vrot.lane.b32.xlu0 %v257, 123
      %v481 = vpop.permute.xlu0 %480
      %482 = vrot.lane.b32.xlu0 %v258, 123
      %v483 = vpop.permute.xlu0 %482
      %484 = vrot.lane.b32.xlu0 %v259, 123
      %v485 = vpop.permute.xlu0 %484
      %486 = vrot.lane.b32.xlu0 %v260, 123
      %v487 = vpop.permute.xlu0 %486
      %488 = vrot.lane.b32.xlu0 %v261, 123
      %v489 = vpop.permute.xlu0 %488
      %490 = vrot.lane.b32.xlu0 %v262, 123
      %v491 = vpop.permute.xlu0 %490
      %492 = vrot.lane.b32.xlu0 %v263, 123
      %v493 = vpop.permute.xlu0 %492
      %494 = vrot.lane.b32.xlu0 %v264, 123
      %v495 = vpop.permute.xlu0 %494
      %496 = vrot.lane.b32.xlu0 %v265, 123
      %v497 = vpop.permute.xlu0 %496
      %498 = vrot.lane.b32.xlu0 %v266, 123
      %v499 = vpop.permute.xlu0 %498
      %500 = vrot.lane.b32.xlu0 %v267, 123
      %v501 = vpop.permute.xlu0 %500
      %vm502 = vcmask 1006592
      %v503 = vsel %vm502, %v479, %v481
      %v504 = vsel %vm502, %v481, %v483
      %v505 = vsel %vm502, %v483, %v485
      %v506 = vsel %vm502, %v487, %v489
      %v507 = vsel %vm502, %v489, %v491
      %v508 = vsel %vm502, %v491, %v493
      %v509 = vsel %vm502, %v495, %v497
      %v510 = vsel %vm502, %v497, %v499
      %v511 = vsel %vm502, %v499, %v501
      %v524 = vadd.f32 %v256, %v503
      %v525 = vadd.f32 %v257, %v504
      %v526 = vadd.f32 %v258, %v505
      %v527 = vadd.f32 %v259, %v485
      %v528 = vadd.f32 %v260, %v506
      %v529 = vadd.f32 %v261, %v507
      %v530 = vadd.f32 %v262, %v508
      %v531 = vadd.f32 %v263, %v493
      %v532 = vadd.f32 %v264, %v509
      %v533 = vadd.f32 %v265, %v510
      %v534 = vadd.f32 %v266, %v511
      %v535 = vadd.f32 %v267, %v501
      %v536 = vmul.f32 %v524, 2.0
      %v537 = vmul.f32 %v525, 2.0
      %v538 = vmul.f32 %v526, 2.0
      %v539 = vmul.f32 %v527, 2.0
      %v540 = vmul.f32 %v528, 2.0
      %v541 = vmul.f32 %v529, 2.0
      %v542 = vmul.f32 %v530, 2.0
      %v543 = vmul.f32 %v531, 2.0
      %v544 = vmul.f32 %v532, 2.0
      %v545 = vmul.f32 %v533, 2.0
      %v546 = vmul.f32 %v534, 2.0
      %v547 = vmul.f32 %v535, 2.0
      %v548 = vsub.f32 %v454, %v536
      %v549 = vsub.f32 %v455, %v537
      %v550 = vsub.f32 %v456, %v538
      %v551 = vsub.f32 %v457, %v539
      %v552 = vsub.f32 %v458, %v540
      %v553 = vsub.f32 %v459, %v541
      %v554 = vsub.f32 %v460, %v542
      %v555 = vsub.f32 %v461, %v543
      %v556 = vsub.f32 %v462, %v544
      %v557 = vsub.f32 %v463, %v545
      %v558 = vsub.f32 %v464, %v546
      %v559 = vsub.f32 %v465, %v547
      %572 = vrot.lane.b32.xlu0 %v454, 104
      %v573 = vpop.permute.xlu0 %572
      %574 = vrot.lane.b32.xlu0 %v455, 104
      %v575 = vpop.permute.xlu0 %574
      %576 = vrot.lane.b32.xlu0 %v456, 104
      %v577 = vpop.permute.xlu0 %576
      %578 = vrot.lane.b32.xlu0 %v457, 104
      %v579 = vpop.permute.xlu0 %578
      %580 = vrot.lane.b32.xlu0 %v458, 104
      %v581 = vpop.permute.xlu0 %580
      %582 = vrot.lane.b32.xlu0 %v459, 104
      %v583 = vpop.permute.xlu0 %582
      %584 = vrot.lane.b32.xlu0 %v460, 104
      %v585 = vpop.permute.xlu0 %584
      %586 = vrot.lane.b32.xlu0 %v461, 104
      %v587 = vpop.permute.xlu0 %586
      %588 = vrot.lane.b32.xlu0 %v462, 104
      %v589 = vpop.permute.xlu0 %588
      %590 = vrot.lane.b32.xlu0 %v463, 104
      %v591 = vpop.permute.xlu0 %590
      %592 = vrot.lane.b32.xlu0 %v464, 104
      %v593 = vpop.permute.xlu0 %592
      %594 = vrot.lane.b32.xlu0 %v465, 104
      %v595 = vpop.permute.xlu0 %594
      %vm596 = vcmask 850944
      %v597 = vsel %vm596, %v573, %v575
      %v598 = vsel %vm596, %v575, %v577
      %v599 = vsel %vm596, %v577, %v579
      %v600 = vsel %vm596, %v581, %v583
      %v601 = vsel %vm596, %v583, %v585
      %v602 = vsel %vm596, %v585, %v587
      %v603 = vsel %vm596, %v589, %v591
      %v604 = vsel %vm596, %v591, %v593
      %v605 = vsel %vm596, %v593, %v595
      %v615 = vadd.f32 %v454, %v597
      %v616 = vadd.f32 %v455, %v598
      %v617 = vadd.f32 %v456, %v599
      %v618 = vadd.f32 %v458, %v600
      %v619 = vadd.f32 %v459, %v601
      %v620 = vadd.f32 %v460, %v602
      %v621 = vadd.f32 %v462, %v603
      %v622 = vadd.f32 %v463, %v604
      %v623 = vadd.f32 %v464, %v605
      %624 = vrot.lane.b32.xlu0 %v454, 80
      %v625 = vpop.permute.xlu0 %624
      %626 = vrot.lane.b32.xlu0 %v455, 80
      %v627 = vpop.permute.xlu0 %626
      %628 = vrot.lane.b32.xlu0 %v456, 80
      %v629 = vpop.permute.xlu0 %628
      %630 = vrot.lane.b32.xlu0 %v457, 80
      %v631 = vpop.permute.xlu0 %630
      %632 = vrot.lane.b32.xlu0 %v458, 80
      %v633 = vpop.permute.xlu0 %632
      %634 = vrot.lane.b32.xlu0 %v459, 80
      %v635 = vpop.permute.xlu0 %634
      %636 = vrot.lane.b32.xlu0 %v460, 80
      %v637 = vpop.permute.xlu0 %636
      %638 = vrot.lane.b32.xlu0 %v461, 80
      %v639 = vpop.permute.xlu0 %638
      %640 = vrot.lane.b32.xlu0 %v462, 80
      %v641 = vpop.permute.xlu0 %640
      %642 = vrot.lane.b32.xlu0 %v463, 80
      %v643 = vpop.permute.xlu0 %642
      %644 = vrot.lane.b32.xlu0 %v464, 80
      %v645 = vpop.permute.xlu0 %644
      %646 = vrot.lane.b32.xlu0 %v465, 80
      %v647 = vpop.permute.xlu0 %646
      %vm648 = vcmask 654336
      %v649 = vsel %vm648, %v625, %v627
      %v650 = vsel %vm648, %v627, %v629
      %v651 = vsel %vm648, %v629, %v631
      %v652 = vsel %vm648, %v633, %v635
      %v653 = vsel %vm648, %v635, %v637
      %v654 = vsel %vm648, %v637, %v639
      %v655 = vsel %vm648, %v641, %v643
      %v656 = vsel %vm648, %v643, %v645
      %v657 = vsel %vm648, %v645, %v647
      %v667 = vadd.f32 %v615, %v649
      %v668 = vadd.f32 %v616, %v650
      %v669 = vadd.f32 %v617, %v651
      %v670 = vadd.f32 %v618, %v652
      %v671 = vadd.f32 %v619, %v653
      %v672 = vadd.f32 %v620, %v654
      %v673 = vadd.f32 %v621, %v655
      %v674 = vadd.f32 %v622, %v656
      %v675 = vadd.f32 %v623, %v657
      %v679 = vadd.f32 %v457, %v579
      %v680 = vadd.f32 %v461, %v587
      %v681 = vadd.f32 %v465, %v595
      %v685 = vadd.f32 %v679, %v631
      %v686 = vadd.f32 %v680, %v639
      %v687 = vadd.f32 %v681, %v647
      %688 = vrot.lane.b32.xlu0 %v454, 8
      %v689 = vpop.permute.xlu0 %688
      %690 = vrot.lane.b32.xlu0 %v455, 8
      %v691 = vpop.permute.xlu0 %690
      %692 = vrot.lane.b32.xlu0 %v456, 8
      %v693 = vpop.permute.xlu0 %692
      %694 = vrot.lane.b32.xlu0 %v457, 8
      %v695 = vpop.permute.xlu0 %694
      %696 = vrot.lane.b32.xlu0 %v458, 8
      %v697 = vpop.permute.xlu0 %696
      %698 = vrot.lane.b32.xlu0 %v459, 8
      %v699 = vpop.permute.xlu0 %698
      %700 = vrot.lane.b32.xlu0 %v460, 8
      %v701 = vpop.permute.xlu0 %700
      %702 = vrot.lane.b32.xlu0 %v461, 8
      %v703 = vpop.permute.xlu0 %702
      %704 = vrot.lane.b32.xlu0 %v462, 8
      %v705 = vpop.permute.xlu0 %704
      %706 = vrot.lane.b32.xlu0 %v463, 8
      %v707 = vpop.permute.xlu0 %706
      %708 = vrot.lane.b32.xlu0 %v464, 8
      %v709 = vpop.permute.xlu0 %708
      %710 = vrot.lane.b32.xlu0 %v465, 8
      %v711 = vpop.permute.xlu0 %710
      %vm712 = vcmask 64512
      %v713 = vsel %vm712, %v689, %v691
      %v714 = vsel %vm712, %v691, %v693
      %v715 = vsel %vm712, %v693, %v695
      %v716 = vsel %vm712, %v697, %v699
      %v717 = vsel %vm712, %v699, %v701
      %v718 = vsel %vm712, %v701, %v703
      %v719 = vsel %vm712, %v705, %v707
      %v720 = vsel %vm712, %v707, %v709
      %v721 = vsel %vm712, %v709, %v711
      %v731 = vadd.f32 %v454, %v713
      %v732 = vadd.f32 %v455, %v714
      %v733 = vadd.f32 %v456, %v715
      %v734 = vadd.f32 %v458, %v716
      %v735 = vadd.f32 %v459, %v717
      %v736 = vadd.f32 %v460, %v718
      %v737 = vadd.f32 %v462, %v719
      %v738 = vadd.f32 %v463, %v720
      %v739 = vadd.f32 %v464, %v721
      %752 = vrot.lane.b32.xlu0 %v466, 104
      %v753 = vpop.permute.xlu0 %752
      %754 = vrot.lane.b32.xlu0 %v467, 104
      %v755 = vpop.permute.xlu0 %754
      %756 = vrot.lane.b32.xlu0 %v468, 104
      %v757 = vpop.permute.xlu0 %756
      %758 = vrot.lane.b32.xlu0 %v469, 104
      %v759 = vpop.permute.xlu0 %758
      %760 = vrot.lane.b32.xlu0 %v470, 104
      %v761 = vpop.permute.xlu0 %760
      %762 = vrot.lane.b32.xlu0 %v471, 104
      %v763 = vpop.permute.xlu0 %762
      %764 = vrot.lane.b32.xlu0 %v472, 104
      %v765 = vpop.permute.xlu0 %764
      %766 = vrot.lane.b32.xlu0 %v473, 104
      %v767 = vpop.permute.xlu0 %766
      %768 = vrot.lane.b32.xlu0 %v474, 104
      %v769 = vpop.permute.xlu0 %768
      %770 = vrot.lane.b32.xlu0 %v475, 104
      %v771 = vpop.permute.xlu0 %770
      %772 = vrot.lane.b32.xlu0 %v476, 104
      %v773 = vpop.permute.xlu0 %772
      %774 = vrot.lane.b32.xlu0 %v477, 104
      %v775 = vpop.permute.xlu0 %774
      %v776 = vsel %vm596, %v753, %v755
      %v777 = vsel %vm596, %v755, %v757
      %v778 = vsel %vm596, %v757, %v759
      %v779 = vsel %vm596, %v761, %v763
      %v780 = vsel %vm596, %v763, %v765
      %v781 = vsel %vm596, %v765, %v767
      %v782 = vsel %vm596, %v769, %v771
      %v783 = vsel %vm596, %v771, %v773
      %v784 = vsel %vm596, %v773, %v775
      %v794 = vadd.f32 %v466, %v776
      %v795 = vadd.f32 %v467, %v777
      %v796 = vadd.f32 %v468, %v778
      %v797 = vadd.f32 %v470, %v779
      %v798 = vadd.f32 %v471, %v780
      %v799 = vadd.f32 %v472, %v781
      %v800 = vadd.f32 %v474, %v782
      %v801 = vadd.f32 %v475, %v783
      %v802 = vadd.f32 %v476, %v784
      %803 = vrot.lane.b32.xlu0 %v466, 80
      %v804 = vpop.permute.xlu0 %803
      %805 = vrot.lane.b32.xlu0 %v467, 80
      %v806 = vpop.permute.xlu0 %805
      %807 = vrot.lane.b32.xlu0 %v468, 80
      %v808 = vpop.permute.xlu0 %807
      %809 = vrot.lane.b32.xlu0 %v469, 80
      %v810 = vpop.permute.xlu0 %809
      %811 = vrot.lane.b32.xlu0 %v470, 80
      %v812 = vpop.permute.xlu0 %811
      %813 = vrot.lane.b32.xlu0 %v471, 80
      %v814 = vpop.permute.xlu0 %813
      %815 = vrot.lane.b32.xlu0 %v472, 80
      %v816 = vpop.permute.xlu0 %815
      %817 = vrot.lane.b32.xlu0 %v473, 80
      %v818 = vpop.permute.xlu0 %817
      %819 = vrot.lane.b32.xlu0 %v474, 80
      %v820 = vpop.permute.xlu0 %819
      %821 = vrot.lane.b32.xlu0 %v475, 80
      %v822 = vpop.permute.xlu0 %821
      %823 = vrot.lane.b32.xlu0 %v476, 80
      %v824 = vpop.permute.xlu0 %823
      %825 = vrot.lane.b32.xlu0 %v477, 80
      %v826 = vpop.permute.xlu0 %825
      %v827 = vsel %vm648, %v804, %v806
      %v828 = vsel %vm648, %v806, %v808
      %v829 = vsel %vm648, %v808, %v810
      %v830 = vsel %vm648, %v812, %v814
      %v831 = vsel %vm648, %v814, %v816
      %v832 = vsel %vm648, %v816, %v818
      %v833 = vsel %vm648, %v820, %v822
      %v834 = vsel %vm648, %v822, %v824
      %v835 = vsel %vm648, %v824, %v826
      %v845 = vadd.f32 %v794, %v827
      %v846 = vadd.f32 %v795, %v828
      %v847 = vadd.f32 %v796, %v829
      %v848 = vadd.f32 %v797, %v830
      %v849 = vadd.f32 %v798, %v831
      %v850 = vadd.f32 %v799, %v832
      %v851 = vadd.f32 %v800, %v833
      %v852 = vadd.f32 %v801, %v834
      %v853 = vadd.f32 %v802, %v835
      %v857 = vadd.f32 %v469, %v759
      %v858 = vadd.f32 %v473, %v767
      %v859 = vadd.f32 %v477, %v775
      %v863 = vadd.f32 %v857, %v810
      %v864 = vadd.f32 %v858, %v818
      %v865 = vadd.f32 %v859, %v826
      %878 = vrot.lane.b32.xlu0 %v548, 104
      %v879 = vpop.permute.xlu0 %878
      %880 = vrot.lane.b32.xlu0 %v549, 104
      %v881 = vpop.permute.xlu0 %880
      %882 = vrot.lane.b32.xlu0 %v550, 104
      %v883 = vpop.permute.xlu0 %882
      %884 = vrot.lane.b32.xlu0 %v551, 104
      %v885 = vpop.permute.xlu0 %884
      %886 = vrot.lane.b32.xlu0 %v552, 104
      %v887 = vpop.permute.xlu0 %886
      %888 = vrot.lane.b32.xlu0 %v553, 104
      %v889 = vpop.permute.xlu0 %888
      %890 = vrot.lane.b32.xlu0 %v554, 104
      %v891 = vpop.permute.xlu0 %890
      %892 = vrot.lane.b32.xlu0 %v555, 104
      %v893 = vpop.permute.xlu0 %892
      %894 = vrot.lane.b32.xlu0 %v556, 104
      %v895 = vpop.permute.xlu0 %894
      %896 = vrot.lane.b32.xlu0 %v557, 104
      %v897 = vpop.permute.xlu0 %896
      %898 = vrot.lane.b32.xlu0 %v558, 104
      %v899 = vpop.permute.xlu0 %898
      %900 = vrot.lane.b32.xlu0 %v559, 104
      %v901 = vpop.permute.xlu0 %900
      %v902 = vsel %vm596, %v879, %v881
      %v903 = vsel %vm596, %v881, %v883
      %v904 = vsel %vm596, %v883, %v885
      %v905 = vsel %vm596, %v887, %v889
      %v906 = vsel %vm596, %v889, %v891
      %v907 = vsel %vm596, %v891, %v893
      %v908 = vsel %vm596, %v895, %v897
      %v909 = vsel %vm596, %v897, %v899
      %v910 = vsel %vm596, %v899, %v901
      %v920 = vadd.f32 %v548, %v902
      %v921 = vadd.f32 %v549, %v903
      %v922 = vadd.f32 %v550, %v904
      %v923 = vadd.f32 %v552, %v905
      %v924 = vadd.f32 %v553, %v906
      %v925 = vadd.f32 %v554, %v907
      %v926 = vadd.f32 %v556, %v908
      %v927 = vadd.f32 %v557, %v909
      %v928 = vadd.f32 %v558, %v910
      %929 = vrot.lane.b32.xlu0 %v548, 80
      %v930 = vpop.permute.xlu0 %929
      %931 = vrot.lane.b32.xlu0 %v549, 80
      %v932 = vpop.permute.xlu0 %931
      %933 = vrot.lane.b32.xlu0 %v550, 80
      %v934 = vpop.permute.xlu0 %933
      %935 = vrot.lane.b32.xlu0 %v551, 80
      %v936 = vpop.permute.xlu0 %935
      %937 = vrot.lane.b32.xlu0 %v552, 80
      %v938 = vpop.permute.xlu0 %937
      %939 = vrot.lane.b32.xlu0 %v553, 80
      %v940 = vpop.permute.xlu0 %939
      %941 = vrot.lane.b32.xlu0 %v554, 80
      %v942 = vpop.permute.xlu0 %941
      %943 = vrot.lane.b32.xlu0 %v555, 80
      %v944 = vpop.permute.xlu0 %943
      %945 = vrot.lane.b32.xlu0 %v556, 80
      %v946 = vpop.permute.xlu0 %945
      %947 = vrot.lane.b32.xlu0 %v557, 80
      %v948 = vpop.permute.xlu0 %947
      %949 = vrot.lane.b32.xlu0 %v558, 80
      %v950 = vpop.permute.xlu0 %949
      %951 = vrot.lane.b32.xlu0 %v559, 80
      %v952 = vpop.permute.xlu0 %951
      %v953 = vsel %vm648, %v930, %v932
      %v954 = vsel %vm648, %v932, %v934
      %v955 = vsel %vm648, %v934, %v936
      %v956 = vsel %vm648, %v938, %v940
      %v957 = vsel %vm648, %v940, %v942
      %v958 = vsel %vm648, %v942, %v944
      %v959 = vsel %vm648, %v946, %v948
      %v960 = vsel %vm648, %v948, %v950
      %v961 = vsel %vm648, %v950, %v952
      %v971 = vadd.f32 %v920, %v953
      %v972 = vadd.f32 %v921, %v954
      %v973 = vadd.f32 %v922, %v955
      %v974 = vadd.f32 %v923, %v956
      %v975 = vadd.f32 %v924, %v957
      %v976 = vadd.f32 %v925, %v958
      %v977 = vadd.f32 %v926, %v959
      %v978 = vadd.f32 %v927, %v960
      %v979 = vadd.f32 %v928, %v961
      %v983 = vadd.f32 %v551, %v885
      %v984 = vadd.f32 %v555, %v893
      %v985 = vadd.f32 %v559, %v901
      %v989 = vadd.f32 %v983, %v936
      %v990 = vadd.f32 %v984, %v944
      %v991 = vadd.f32 %v985, %v952
      %992 = vrot.lane.b32.xlu0 %v548, 8
      %v993 = vpop.permute.xlu0 %992
      %994 = vrot.lane.b32.xlu0 %v549, 8
      %v995 = vpop.permute.xlu0 %994
      %996 = vrot.lane.b32.xlu0 %v550, 8
      %v997 = vpop.permute.xlu0 %996
      %998 = vrot.lane.b32.xlu0 %v551, 8
      %v999 = vpop.permute.xlu0 %998
      %1000 = vrot.lane.b32.xlu0 %v552, 8
      %v1001 = vpop.permute.xlu0 %1000
      %1002 = vrot.lane.b32.xlu0 %v553, 8
      %v1003 = vpop.permute.xlu0 %1002
      %1004 = vrot.lane.b32.xlu0 %v554, 8
      %v1005 = vpop.permute.xlu0 %1004
      %1006 = vrot.lane.b32.xlu0 %v555, 8
      %v1007 = vpop.permute.xlu0 %1006
      %1008 = vrot.lane.b32.xlu0 %v556, 8
      %v1009 = vpop.permute.xlu0 %1008
      %1010 = vrot.lane.b32.xlu0 %v557, 8
      %v1011 = vpop.permute.xlu0 %1010
      %1012 = vrot.lane.b32.xlu0 %v558, 8
      %v1013 = vpop.permute.xlu0 %1012
      %1014 = vrot.lane.b32.xlu0 %v559, 8
      %v1015 = vpop.permute.xlu0 %1014
      %v1016 = vsel %vm712, %v993, %v995
      %v1017 = vsel %vm712, %v995, %v997
      %v1018 = vsel %vm712, %v997, %v999
      %v1019 = vsel %vm712, %v1001, %v1003
      %v1020 = vsel %vm712, %v1003, %v1005
      %v1021 = vsel %vm712, %v1005, %v1007
      %v1022 = vsel %vm712, %v1009, %v1011
      %v1023 = vsel %vm712, %v1011, %v1013
      %v1024 = vsel %vm712, %v1013, %v1015
      %v1034 = vadd.f32 %v548, %v1016
      %v1035 = vadd.f32 %v549, %v1017
      %v1036 = vadd.f32 %v550, %v1018
      %v1037 = vadd.f32 %v552, %v1019
      %v1038 = vadd.f32 %v553, %v1020
      %v1039 = vadd.f32 %v554, %v1021
      %v1040 = vadd.f32 %v556, %v1022
      %v1041 = vadd.f32 %v557, %v1023
      %v1042 = vadd.f32 %v558, %v1024
      %1055 = vrot.lane.b32.xlu0 %v667, 56
      %v1056 = vpop.permute.xlu0 %1055
      %1057 = vrot.lane.b32.xlu0 %v668, 56
      %v1058 = vpop.permute.xlu0 %1057
      %1059 = vrot.lane.b32.xlu0 %v669, 56
      %v1060 = vpop.permute.xlu0 %1059
      %1061 = vrot.lane.b32.xlu0 %v685, 56
      %v1062 = vpop.permute.xlu0 %1061
      %1063 = vrot.lane.b32.xlu0 %v670, 56
      %v1064 = vpop.permute.xlu0 %1063
      %1065 = vrot.lane.b32.xlu0 %v671, 56
      %v1066 = vpop.permute.xlu0 %1065
      %1067 = vrot.lane.b32.xlu0 %v672, 56
      %v1068 = vpop.permute.xlu0 %1067
      %1069 = vrot.lane.b32.xlu0 %v686, 56
      %v1070 = vpop.permute.xlu0 %1069
      %1071 = vrot.lane.b32.xlu0 %v673, 56
      %v1072 = vpop.permute.xlu0 %1071
      %1073 = vrot.lane.b32.xlu0 %v674, 56
      %v1074 = vpop.permute.xlu0 %1073
      %1075 = vrot.lane.b32.xlu0 %v675, 56
      %v1076 = vpop.permute.xlu0 %1075
      %1077 = vrot.lane.b32.xlu0 %v687, 56
      %v1078 = vpop.permute.xlu0 %1077
      %vm1079 = vcmask 457728
      %v1080 = vsel %vm1079, %v1056, %v1058
      %v1081 = vsel %vm1079, %v1058, %v1060
      %v1082 = vsel %vm1079, %v1060, %v1062
      %v1083 = vsel %vm1079, %v1064, %v1066
      %v1084 = vsel %vm1079, %v1066, %v1068
      %v1085 = vsel %vm1079, %v1068, %v1070
      %v1086 = vsel %vm1079, %v1072, %v1074
      %v1087 = vsel %vm1079, %v1074, %v1076
      %v1088 = vsel %vm1079, %v1076, %v1078
      %v1098 = vadd.f32 %v667, %v1080
      %v1099 = vadd.f32 %v668, %v1081
      %v1100 = vadd.f32 %v669, %v1082
      %v1101 = vadd.f32 %v670, %v1083
      %v1102 = vadd.f32 %v671, %v1084
      %v1103 = vadd.f32 %v672, %v1085
      %v1104 = vadd.f32 %v673, %v1086
      %v1105 = vadd.f32 %v674, %v1087
      %v1106 = vadd.f32 %v675, %v1088
      %1119 = vrot.lane.b32.xlu0 %v971, 56
      %v1120 = vpop.permute.xlu0 %1119
      %1121 = vrot.lane.b32.xlu0 %v972, 56
      %v1122 = vpop.permute.xlu0 %1121
      %1123 = vrot.lane.b32.xlu0 %v973, 56
      %v1124 = vpop.permute.xlu0 %1123
      %1125 = vrot.lane.b32.xlu0 %v989, 56
      %v1126 = vpop.permute.xlu0 %1125
      %1127 = vrot.lane.b32.xlu0 %v974, 56
      %v1128 = vpop.permute.xlu0 %1127
      %1129 = vrot.lane.b32.xlu0 %v975, 56
      %v1130 = vpop.permute.xlu0 %1129
      %1131 = vrot.lane.b32.xlu0 %v976, 56
      %v1132 = vpop.permute.xlu0 %1131
      %1133 = vrot.lane.b32.xlu0 %v990, 56
      %v1134 = vpop.permute.xlu0 %1133
      %1135 = vrot.lane.b32.xlu0 %v977, 56
      %v1136 = vpop.permute.xlu0 %1135
      %1137 = vrot.lane.b32.xlu0 %v978, 56
      %v1138 = vpop.permute.xlu0 %1137
      %1139 = vrot.lane.b32.xlu0 %v979, 56
      %v1140 = vpop.permute.xlu0 %1139
      %1141 = vrot.lane.b32.xlu0 %v991, 56
      %v1142 = vpop.permute.xlu0 %1141
      %v1143 = vsel %vm1079, %v1120, %v1122
      %v1144 = vsel %vm1079, %v1122, %v1124
      %v1145 = vsel %vm1079, %v1124, %v1126
      %v1146 = vsel %vm1079, %v1128, %v1130
      %v1147 = vsel %vm1079, %v1130, %v1132
      %v1148 = vsel %vm1079, %v1132, %v1134
      %v1149 = vsel %vm1079, %v1136, %v1138
      %v1150 = vsel %vm1079, %v1138, %v1140
      %v1151 = vsel %vm1079, %v1140, %v1142
      %v1161 = vadd.f32 %v971, %v1143
      %v1162 = vadd.f32 %v972, %v1144
      %v1163 = vadd.f32 %v973, %v1145
      %v1164 = vadd.f32 %v974, %v1146
      %v1165 = vadd.f32 %v975, %v1147
      %v1166 = vadd.f32 %v976, %v1148
      %v1167 = vadd.f32 %v977, %v1149
      %v1168 = vadd.f32 %v978, %v1150
      %v1169 = vadd.f32 %v979, %v1151
      %v1170 = vsub.f32 %v667, %v1080
      %v1171 = vsub.f32 %v668, %v1081
      %v1172 = vsub.f32 %v669, %v1082
      %v1173 = vsub.f32 %v670, %v1083
      %v1174 = vsub.f32 %v671, %v1084
      %v1175 = vsub.f32 %v672, %v1085
      %v1176 = vsub.f32 %v673, %v1086
      %v1177 = vsub.f32 %v674, %v1087
      %v1178 = vsub.f32 %v675, %v1088
      %1191 = vrot.lane.b32.xlu0 %v845, 56
      %v1192 = vpop.permute.xlu0 %1191
      %1193 = vrot.lane.b32.xlu0 %v846, 56
      %v1194 = vpop.permute.xlu0 %1193
      %1195 = vrot.lane.b32.xlu0 %v847, 56
      %v1196 = vpop.permute.xlu0 %1195
      %1197 = vrot.lane.b32.xlu0 %v863, 56
      %v1198 = vpop.permute.xlu0 %1197
      %1199 = vrot.lane.b32.xlu0 %v848, 56
      %v1200 = vpop.permute.xlu0 %1199
      %1201 = vrot.lane.b32.xlu0 %v849, 56
      %v1202 = vpop.permute.xlu0 %1201
      %1203 = vrot.lane.b32.xlu0 %v850, 56
      %v1204 = vpop.permute.xlu0 %1203
      %1205 = vrot.lane.b32.xlu0 %v864, 56
      %v1206 = vpop.permute.xlu0 %1205
      %1207 = vrot.lane.b32.xlu0 %v851, 56
      %v1208 = vpop.permute.xlu0 %1207
      %1209 = vrot.lane.b32.xlu0 %v852, 56
      %v1210 = vpop.permute.xlu0 %1209
      %1211 = vrot.lane.b32.xlu0 %v853, 56
      %v1212 = vpop.permute.xlu0 %1211
      %1213 = vrot.lane.b32.xlu0 %v865, 56
      %v1214 = vpop.permute.xlu0 %1213
      %v1215 = vsel %vm1079, %v1192, %v1194
      %v1216 = vsel %vm1079, %v1194, %v1196
      %v1217 = vsel %vm1079, %v1196, %v1198
      %v1218 = vsel %vm1079, %v1200, %v1202
      %v1219 = vsel %vm1079, %v1202, %v1204
      %v1220 = vsel %vm1079, %v1204, %v1206
      %v1221 = vsel %vm1079, %v1208, %v1210
      %v1222 = vsel %vm1079, %v1210, %v1212
      %v1223 = vsel %vm1079, %v1212, %v1214
      %v1233 = vadd.f32 %v845, %v1215
      %v1234 = vadd.f32 %v846, %v1216
      %v1235 = vadd.f32 %v847, %v1217
      %v1236 = vadd.f32 %v848, %v1218
      %v1237 = vadd.f32 %v849, %v1219
      %v1238 = vadd.f32 %v850, %v1220
      %v1239 = vadd.f32 %v851, %v1221
      %v1240 = vadd.f32 %v852, %v1222
      %v1241 = vadd.f32 %v853, %v1223
      %v1242 = vmul.f32 %v731, 2.0
      %v1243 = vmul.f32 %v732, 2.0
      %v1244 = vmul.f32 %v733, 2.0
      %v1245 = vmul.f32 %v734, 2.0
      %v1246 = vmul.f32 %v735, 2.0
      %v1247 = vmul.f32 %v736, 2.0
      %v1248 = vmul.f32 %v737, 2.0
      %v1249 = vmul.f32 %v738, 2.0
      %v1250 = vmul.f32 %v739, 2.0
      %v1251 = vsub.f32 %v1098, %v1242
      %v1252 = vsub.f32 %v1099, %v1243
      %v1253 = vsub.f32 %v1100, %v1244
      %v1254 = vsub.f32 %v1101, %v1245
      %v1255 = vsub.f32 %v1102, %v1246
      %v1256 = vsub.f32 %v1103, %v1247
      %v1257 = vsub.f32 %v1104, %v1248
      %v1258 = vsub.f32 %v1105, %v1249
      %v1259 = vsub.f32 %v1106, %v1250
      %v1260 = vsub.f32 %v845, %v1215
      %v1261 = vsub.f32 %v846, %v1216
      %v1262 = vsub.f32 %v847, %v1217
      %v1263 = vsub.f32 %v848, %v1218
      %v1264 = vsub.f32 %v849, %v1219
      %v1265 = vsub.f32 %v850, %v1220
      %v1266 = vsub.f32 %v851, %v1221
      %v1267 = vsub.f32 %v852, %v1222
      %v1268 = vsub.f32 %v853, %v1223
      %v1269 = vmul.f32 %v1034, 2.0
      %v1270 = vmul.f32 %v1035, 2.0
      %v1271 = vmul.f32 %v1036, 2.0
      %v1272 = vmul.f32 %v1037, 2.0
      %v1273 = vmul.f32 %v1038, 2.0
      %v1274 = vmul.f32 %v1039, 2.0
      %v1275 = vmul.f32 %v1040, 2.0
      %v1276 = vmul.f32 %v1041, 2.0
      %v1277 = vmul.f32 %v1042, 2.0
      %v1278 = vsub.f32 %v1161, %v1269
      %v1279 = vsub.f32 %v1162, %v1270
      %v1280 = vsub.f32 %v1163, %v1271
      %v1281 = vsub.f32 %v1164, %v1272
      %v1282 = vsub.f32 %v1165, %v1273
      %v1283 = vsub.f32 %v1166, %v1274
      %v1284 = vsub.f32 %v1167, %v1275
      %v1285 = vsub.f32 %v1168, %v1276
      %v1286 = vsub.f32 %v1169, %v1277
      %1287 = vst [vmem:[#allocation2] sm:$0xff] %v1098
      %1288 = vst [vmem:[#allocation2 + $0x8] sm:$0xff] %v1099
      %1289 = vst [vmem:[#allocation2 + $0x10] sm:$0xff] %v1100
      %1290 = vst [vmem:[#allocation2 + $0x18] sm:$0xff] %v1101
      %1291 = vst [vmem:[#allocation2 + $0x20] sm:$0xff] %v1102
      %1292 = vst [vmem:[#allocation2 + $0x28] sm:$0xff] %v1103
      %1293 = vst [vmem:[#allocation2 + $0x30] sm:$0xff] %v1104
      %1294 = vst [vmem:[#allocation2 + $0x38] sm:$0xff] %v1105
      %1295 = vst [vmem:[#allocation2 + $0x40] sm:$0xff] %v1106
      %1296 = vst [vmem:[#allocation2 + $0x48] sm:$0xff] %v1170
      %1297 = vst [vmem:[#allocation2 + $0x50] sm:$0xff] %v1171
      %1298 = vst [vmem:[#allocation2 + $0x58] sm:$0xff] %v1172
      %1299 = vst [vmem:[#allocation2 + $0x60] sm:$0xff] %v1173
      %1300 = vst [vmem:[#allocation2 + $0x68] sm:$0xff] %v1174
      %1301 = vst [vmem:[#allocation2 + $0x70] sm:$0xff] %v1175
      %1302 = vst [vmem:[#allocation2 + $0x78] sm:$0xff] %v1176
      %1303 = vst [vmem:[#allocation2 + $0x80] sm:$0xff] %v1177
      %1304 = vst [vmem:[#allocation2 + $0x88] sm:$0xff] %v1178
      %1305 = vst [vmem:[#allocation2 + $0x90] sm:$0xff] %v1233
      %1306 = vst [vmem:[#allocation2 + $0x98] sm:$0xff] %v1234
      %1307 = vst [vmem:[#allocation2 + $0xa0] sm:$0xff] %v1235
      %1308 = vst [vmem:[#allocation2 + $0xa8] sm:$0xff] %v1236
      %1309 = vst [vmem:[#allocation2 + $0xb0] sm:$0xff] %v1237
      %1310 = vst [vmem:[#allocation2 + $0xb8] sm:$0xff] %v1238
      %1311 = vst [vmem:[#allocation2 + $0xc0] sm:$0xff] %v1239
      %1312 = vst [vmem:[#allocation2 + $0xc8] sm:$0xff] %v1240
      %1313 = vst [vmem:[#allocation2 + $0xd0] sm:$0xff] %v1241
      %1314 = vst [vmem:[#allocation2 + $0xd8] sm:$0xff] %v1251
      %1315 = vst [vmem:[#allocation2 + $0xe0] sm:$0xff] %v1252
      %1316 = vst [vmem:[#allocation2 + $0xe8] sm:$0xff] %v1253
      %1317 = vst [vmem:[#allocation2 + $0xf0] sm:$0xff] %v1254
      %1318 = vst [vmem:[#allocation2 + $0xf8] sm:$0xff] %v1255
      %1319 = vst [vmem:[#allocation2 + $0x100] sm:$0xff] %v1256
      %1320 = vst [vmem:[#allocation2 + $0x108] sm:$0xff] %v1257
      %1321 = vst [vmem:[#allocation2 + $0x110] sm:$0xff] %v1258
      %1322 = vst [vmem:[#allocation2 + $0x118] sm:$0xff] %v1259
      %1323 = vst [vmem:[#allocation2 + $0x120] sm:$0xff] %v1161
      %1324 = vst [vmem:[#allocation2 + $0x128] sm:$0xff] %v1162
      %1325 = vst [vmem:[#allocation2 + $0x130] sm:$0xff] %v1163
      %1326 = vst [vmem:[#allocation2 + $0x138] sm:$0xff] %v1164
      %1327 = vst [vmem:[#allocation2 + $0x140] sm:$0xff] %v1165
      %1328 = vst [vmem:[#allocation2 + $0x148] sm:$0xff] %v1166
      %1329 = vst [vmem:[#allocation2 + $0x150] sm:$0xff] %v1167
      %1330 = vst [vmem:[#allocation2 + $0x158] sm:$0xff] %v1168
      %1331 = vst [vmem:[#allocation2 + $0x160] sm:$0xff] %v1169
      %1332 = vst [vmem:[#allocation2 + $0x168] sm:$0xff] %v1260
      %1333 = vst [vmem:[#allocation2 + $0x170] sm:$0xff] %v1261
      %1334 = vst [vmem:[#allocation2 + $0x178] sm:$0xff] %v1262
      %1335 = vst [vmem:[#allocation2 + $0x180] sm:$0xff] %v1263
      %1336 = vst [vmem:[#allocation2 + $0x188] sm:$0xff] %v1264
      %1337 = vst [vmem:[#allocation2 + $0x190] sm:$0xff] %v1265
      %1338 = vst [vmem:[#allocation2 + $0x198] sm:$0xff] %v1266
      %1339 = vst [vmem:[#allocation2 + $0x1a0] sm:$0xff] %v1267
      %1340 = vst [vmem:[#allocation2 + $0x1a8] sm:$0xff] %v1268
      %1341 = vst [vmem:[#allocation2 + $0x1b0] sm:$0xff] %v1278
      %1342 = vst [vmem:[#allocation2 + $0x1b8] sm:$0xff] %v1279
      %1343 = vst [vmem:[#allocation2 + $0x1c0] sm:$0xff] %v1280
      %1344 = vst [vmem:[#allocation2 + $0x1c8] sm:$0xff] %v1281
      %1345 = vst [vmem:[#allocation2 + $0x1d0] sm:$0xff] %v1282
      %1346 = vst [vmem:[#allocation2 + $0x1d8] sm:$0xff] %v1283
      %1347 = vst [vmem:[#allocation2 + $0x1e0] sm:$0xff] %v1284
      %1348 = vst [vmem:[#allocation2 + $0x1e8] sm:$0xff] %v1285
      %1349 = vst [vmem:[#allocation2 + $0x1f0] sm:$0xff] %v1286
      %v1350 = vld [vmem:[%s1] sm:$0xff]
      %v1351 = vld [vmem:[%s1 + $0x8] sm:$0xff]
      %v1352 = vld [vmem:[%s1 + $0x10] sm:$0xff]
      %v1353 = vld [vmem:[%s1 + $0x18] sm:$0xff]
      %v1354 = vld [vmem:[%s1 + $0x20] sm:$0xff]
      %v1355 = vld [vmem:[%s1 + $0x28] sm:$0xff]
      %v1356 = vld [vmem:[%s1 + $0x30] sm:$0xff]
      %v1357 = vld [vmem:[%s1 + $0x38] sm:$0xff]
      %v1358 = vld [vmem:[%s1 + $0x40] sm:$0xff]
      %v1359 = vld [vmem:[%s1 + $0x48] sm:$0xff]
      %v1360 = vld [vmem:[%s1 + $0x50] sm:$0xff]
      %v1361 = vld [vmem:[%s1 + $0x58] sm:$0xff]
      %v1362 = vld [vmem:[%s1 + $0x60] sm:$0xff]
      %v1363 = vld [vmem:[%s1 + $0x68] sm:$0xff]
      %v1364 = vld [vmem:[%s1 + $0x70] sm:$0xff]
      %v1365 = vld [vmem:[%s1 + $0x78] sm:$0xff]
      %v1366 = vld [vmem:[%s1 + $0x80] sm:$0xff]
      %v1367 = vld [vmem:[%s1 + $0x88] sm:$0xff]
      %v1368 = vld [vmem:[%s1 + $0x90] sm:$0xff]
      %v1369 = vld [vmem:[%s1 + $0x98] sm:$0xff]
      %v1370 = vld [vmem:[%s1 + $0xa0] sm:$0xff]
      %v1371 = vld [vmem:[%s1 + $0xa8] sm:$0xff]
      %v1372 = vld [vmem:[%s1 + $0xb0] sm:$0xff]
      %v1373 = vld [vmem:[%s1 + $0xb8] sm:$0xff]
      %v1374 = vld [vmem:[%s1 + $0xc0] sm:$0xff]
      %v1375 = vld [vmem:[%s1 + $0xc8] sm:$0xff]
      %v1376 = vld [vmem:[%s1 + $0xd0] sm:$0xff]
      %v1377 = vld [vmem:[%s1 + $0xd8] sm:$0xff]
      %v1378 = vld [vmem:[%s1 + $0xe0] sm:$0xff]
      %v1379 = vld [vmem:[%s1 + $0xe8] sm:$0xff]
      %v1380 = vld [vmem:[%s1 + $0xf0] sm:$0xff]
      %v1381 = vld [vmem:[%s1 + $0xf8] sm:$0xff]
      %v1382 = vld [vmem:[%s1 + $0x100] sm:$0xff]
      %v1383 = vld [vmem:[%s1 + $0x108] sm:$0xff]
      %v1384 = vld [vmem:[%s1 + $0x110] sm:$0xff]
      %v1385 = vld [vmem:[%s1 + $0x118] sm:$0xff]
      %v1386 = vld [vmem:[%s1 + $0x120] sm:$0xff]
      %v1387 = vld [vmem:[%s1 + $0x128] sm:$0xff]
      %v1388 = vld [vmem:[%s1 + $0x130] sm:$0xff]
      %v1389 = vld [vmem:[%s1 + $0x138] sm:$0xff]
      %v1390 = vld [vmem:[%s1 + $0x140] sm:$0xff]
      %v1391 = vld [vmem:[%s1 + $0x148] sm:$0xff]
      %v1392 = vld [vmem:[%s1 + $0x150] sm:$0xff]
      %v1393 = vld [vmem:[%s1 + $0x158] sm:$0xff]
      %v1394 = vld [vmem:[%s1 + $0x160] sm:$0xff]
      %v1395 = vld [vmem:[%s1 + $0x168] sm:$0xff]
      %v1396 = vld [vmem:[%s1 + $0x170] sm:$0xff]
      %v1397 = vld [vmem:[%s1 + $0x178] sm:$0xff]
      %v1398 = vld [vmem:[%s1 + $0x180] sm:$0xff]
      %v1399 = vld [vmem:[%s1 + $0x188] sm:$0xff]
      %v1400 = vld [vmem:[%s1 + $0x190] sm:$0xff]
      %v1401 = vld [vmem:[%s1 + $0x198] sm:$0xff]
      %v1402 = vld [vmem:[%s1 + $0x1a0] sm:$0xff]
      %v1403 = vld [vmem:[%s1 + $0x1a8] sm:$0xff]
      %v1404 = vld [vmem:[%s1 + $0x1b0] sm:$0xff]
      %v1405 = vld [vmem:[%s1 + $0x1b8] sm:$0xff]
      %v1406 = vld [vmem:[%s1 + $0x1c0] sm:$0xff]
      %v1407 = vld [vmem:[%s1 + $0x1c8] sm:$0xff]
      %v1408 = vld [vmem:[%s1 + $0x1d0] sm:$0xff]
      %v1409 = vld [vmem:[%s1 + $0x1d8] sm:$0xff]
      %v1410 = vld [vmem:[%s1 + $0x1e0] sm:$0xff]
      %v1411 = vld [vmem:[%s1 + $0x1e8] sm:$0xff]
      %v1412 = vld [vmem:[%s1 + $0x1f0] sm:$0xff]
      %v1413 = vld [vmem:[%s1 + $0x1f8] sm:$0xff]
      %v1414 = vld [vmem:[%s1 + $0x200] sm:$0xff]
      %v1415 = vld [vmem:[%s1 + $0x208] sm:$0xff]
      %v1416 = vld [vmem:[%s1 + $0x210] sm:$0xff]
      %v1417 = vld [vmem:[%s1 + $0x218] sm:$0xff]
      %v1418 = vld [vmem:[%s1 + $0x220] sm:$0xff]
      %v1419 = vld [vmem:[%s1 + $0x228] sm:$0xff]
      %v1420 = vld [vmem:[%s1 + $0x230] sm:$0xff]
      %v1421 = vld [vmem:[%s1 + $0x238] sm:$0xff]
      %v1422 = vld [vmem:[%s1 + $0x240] sm:$0xff]
      %v1423 = vld [vmem:[%s1 + $0x248] sm:$0xff]
      %v1424 = vld [vmem:[%s1 + $0x250] sm:$0xff]
      %v1425 = vld [vmem:[%s1 + $0x258] sm:$0xff]
      %v1426 = vld [vmem:[%s1 + $0x260] sm:$0xff]
      %v1427 = vld [vmem:[%s1 + $0x268] sm:$0xff]
      %v1428 = vld [vmem:[%s1 + $0x270] sm:$0xff]
      %v1429 = vld [vmem:[%s1 + $0x278] sm:$0xff]
      %v1430 = vld [vmem:[%s1 + $0x280] sm:$0xff]
      %v1431 = vld [vmem:[%s1 + $0x288] sm:$0xff]
      %v1432 = vld [vmem:[%s1 + $0x290] sm:$0xff]
      %v1433 = vld [vmem:[%s1 + $0x298] sm:$0xff]
      %v1434 = vld [vmem:[%s1 + $0x2a0] sm:$0xff]
      %v1435 = vld [vmem:[%s1 + $0x2a8] sm:$0xff]
      %v1436 = vld [vmem:[%s1 + $0x2b0] sm:$0xff]
      %v1437 = vld [vmem:[%s1 + $0x2b8] sm:$0xff]
      %v1438 = vld [vmem:[%s1 + $0x2c0] sm:$0xff]
      %v1439 = vld [vmem:[%s1 + $0x2c8] sm:$0xff]
      %v1440 = vld [vmem:[%s1 + $0x2d0] sm:$0xff]
      %v1441 = vld [vmem:[%s1 + $0x2d8] sm:$0xff]
      %v1442 = vld [vmem:[%s1 + $0x2e0] sm:$0xff]
      %v1443 = vld [vmem:[%s1 + $0x2e8] sm:$0xff]
      %v1444 = vld [vmem:[%s1 + $0x2f0] sm:$0xff]
      %v1445 = vld [vmem:[%s1 + $0x2f8] sm:$0xff]
      %v1446 = vld [vmem:[%s1 + $0x300] sm:$0xff]
      %v1447 = vld [vmem:[%s1 + $0x308] sm:$0xff]
      %v1448 = vld [vmem:[%s1 + $0x310] sm:$0xff]
      %v1449 = vld [vmem:[%s1 + $0x318] sm:$0xff]
      %v1450 = vld [vmem:[%s1 + $0x320] sm:$0xff]
      %v1451 = vld [vmem:[%s1 + $0x328] sm:$0xff]
      %v1452 = vld [vmem:[%s1 + $0x330] sm:$0xff]
      %v1453 = vld [vmem:[%s1 + $0x338] sm:$0xff]
      %v1454 = vld [vmem:[%s1 + $0x340] sm:$0xff]
      %v1455 = vld [vmem:[%s1 + $0x348] sm:$0xff]
      %v1456 = vld [vmem:[%s1 + $0x350] sm:$0xff]
      %v1457 = vld [vmem:[%s1 + $0x358] sm:$0xff]
      %v1458 = vld [vmem:[%s1 + $0x360] sm:$0xff]
      %v1459 = vld [vmem:[%s1 + $0x368] sm:$0xff]
      %v1460 = vld [vmem:[%s1 + $0x370] sm:$0xff]
      %v1461 = vld [vmem:[%s1 + $0x378] sm:$0xff]
      %v1462 = vld [vmem:[%s1 + $0x380] sm:$0xff]
      %v1463 = vld [vmem:[%s1 + $0x388] sm:$0xff]
      %v1464 = vld [vmem:[%s1 + $0x390] sm:$0xff]
      %v1465 = vld [vmem:[%s1 + $0x398] sm:$0xff]
      %v1466 = vld [vmem:[%s1 + $0x3a0] sm:$0xff]
      %v1467 = vld [vmem:[%s1 + $0x3a8] sm:$0xff]
      %v1468 = vld [vmem:[%s1 + $0x3b0] sm:$0xff]
      %v1469 = vld [vmem:[%s1 + $0x3b8] sm:$0xff]
      %v1470 = vld [vmem:[%s1 + $0x3c0] sm:$0xff]
      %v1471 = vld [vmem:[%s1 + $0x3c8] sm:$0xff]
      %v1472 = vld [vmem:[%s1 + $0x3d0] sm:$0xff]
      %v1473 = vld [vmem:[%s1 + $0x3d8] sm:$0xff]
      %v1474 = vld [vmem:[%s1 + $0x3e0] sm:$0xff]
      %v1475 = vld [vmem:[%s1 + $0x3e8] sm:$0xff]
      %v1476 = vld [vmem:[%s1 + $0x3f0] sm:$0xff]
      %v1477 = vld [vmem:[%s1 + $0x3f8] sm:$0xff]
      %v1478 = vld [vmem:[#allocation2] sm:$0xff]
      %v1479 = vld [vmem:[#allocation2 + $0x8] sm:$0xff]
      %v1480 = vld [vmem:[#allocation2 + $0x10] sm:$0xff]
      %v1481 = vld [vmem:[#allocation2 + $0x18] sm:$0xff]
      %v1482 = vld [vmem:[#allocation2 + $0x20] sm:$0xff]
      %v1483 = vld [vmem:[#allocation2 + $0x28] sm:$0xff]
      %v1484 = vld [vmem:[#allocation2 + $0x30] sm:$0xff]
      %v1485 = vld [vmem:[#allocation2 + $0x38] sm:$0xff]
      %v1486 = vld [vmem:[#allocation2 + $0x40] sm:$0xff]
      %v1487 = vld [vmem:[#allocation2 + $0x48] sm:$0xff]
      %v1488 = vld [vmem:[#allocation2 + $0x50] sm:$0xff]
      %v1489 = vld [vmem:[#allocation2 + $0x58] sm:$0xff]
      %v1490 = vld [vmem:[#allocation2 + $0x60] sm:$0xff]
      %v1491 = vld [vmem:[#allocation2 + $0x68] sm:$0xff]
      %v1492 = vld [vmem:[#allocation2 + $0x70] sm:$0xff]
      %v1493 = vld [vmem:[#allocation2 + $0x78] sm:$0xff]
      %v1494 = vld [vmem:[#allocation2 + $0x80] sm:$0xff]
      %v1495 = vld [vmem:[#allocation2 + $0x88] sm:$0xff]
      %v1496 = vld [vmem:[#allocation2 + $0x90] sm:$0xff]
      %v1497 = vld [vmem:[#allocation2 + $0x98] sm:$0xff]
      %v1498 = vld [vmem:[#allocation2 + $0xa0] sm:$0xff]
      %v1499 = vld [vmem:[#allocation2 + $0xa8] sm:$0xff]
      %v1500 = vld [vmem:[#allocation2 + $0xb0] sm:$0xff]
      %v1501 = vld [vmem:[#allocation2 + $0xb8] sm:$0xff]
      %v1502 = vld [vmem:[#allocation2 + $0xc0] sm:$0xff]
      %v1503 = vld [vmem:[#allocation2 + $0xc8] sm:$0xff]
      %v1504 = vld [vmem:[#allocation2 + $0xd0] sm:$0xff]
      %v1505 = vld [vmem:[#allocation2 + $0xd8] sm:$0xff]
      %v1506 = vld [vmem:[#allocation2 + $0xe0] sm:$0xff]
      %v1507 = vld [vmem:[#allocation2 + $0xe8] sm:$0xff]
      %v1508 = vld [vmem:[#allocation2 + $0xf0] sm:$0xff]
      %v1509 = vld [vmem:[#allocation2 + $0xf8] sm:$0xff]
      %v1510 = vld [vmem:[#allocation2 + $0x100] sm:$0xff]
      %v1511 = vld [vmem:[#allocation2 + $0x108] sm:$0xff]
      %v1512 = vld [vmem:[#allocation2 + $0x110] sm:$0xff]
      %v1513 = vld [vmem:[#allocation2 + $0x118] sm:$0xff]
      %v1514 = vld [vmem:[#allocation2 + $0x120] sm:$0xff]
      %v1515 = vld [vmem:[#allocation2 + $0x128] sm:$0xff]
      %v1516 = vld [vmem:[#allocation2 + $0x130] sm:$0xff]
      %v1517 = vld [vmem:[#allocation2 + $0x138] sm:$0xff]
      %v1518 = vld [vmem:[#allocation2 + $0x140] sm:$0xff]
      %v1519 = vld [vmem:[#allocation2 + $0x148] sm:$0xff]
      %v1520 = vld [vmem:[#allocation2 + $0x150] sm:$0xff]
      %v1521 = vld [vmem:[#allocation2 + $0x158] sm:$0xff]
      %v1522 = vld [vmem:[#allocation2 + $0x160] sm:$0xff]
      %v1523 = vld [vmem:[#allocation2 + $0x168] sm:$0xff]
      %v1524 = vld [vmem:[#allocation2 + $0x170] sm:$0xff]
      %v1525 = vld [vmem:[#allocation2 + $0x178] sm:$0xff]
      %v1526 = vld [vmem:[#allocation2 + $0x180] sm:$0xff]
      %v1527 = vld [vmem:[#allocation2 + $0x188] sm:$0xff]
      %v1528 = vld [vmem:[#allocation2 + $0x190] sm:$0xff]
      %v1529 = vld [vmem:[#allocation2 + $0x198] sm:$0xff]
      %v1530 = vld [vmem:[#allocation2 + $0x1a0] sm:$0xff]
      %v1531 = vld [vmem:[#allocation2 + $0x1a8] sm:$0xff]
      %v1532 = vld [vmem:[#allocation2 + $0x1b0] sm:$0xff]
      %v1533 = vld [vmem:[#allocation2 + $0x1b8] sm:$0xff]
      %v1534 = vld [vmem:[#allocation2 + $0x1c0] sm:$0xff]
      %v1535 = vld [vmem:[#allocation2 + $0x1c8] sm:$0xff]
      %v1536 = vld [vmem:[#allocation2 + $0x1d0] sm:$0xff]
      %v1537 = vld [vmem:[#allocation2 + $0x1d8] sm:$0xff]
      %v1538 = vld [vmem:[#allocation2 + $0x1e0] sm:$0xff]
      %v1539 = vld [vmem:[#allocation2 + $0x1e8] sm:$0xff]
      %v1540 = vld [vmem:[#allocation2 + $0x1f0] sm:$0xff]
      %vm1541 = vcmask 326656
      %v1543 = vsel %vm1541, %v1351, 0
      %v1546 = vsel %vm1541, %v1353, 0
      %v1549 = vsel %vm1541, %v1355, 0
      %v1552 = vsel %vm1541, %v1357, 0
      %v1555 = vsel %vm1541, %v1359, 0
      %v1558 = vsel %vm1541, %v1361, 0
      %v1561 = vsel %vm1541, %v1363, 0
      %v1564 = vsel %vm1541, %v1365, 0
      %v1567 = vsel %vm1541, %v1367, 0
      %v1570 = vsel %vm1541, %v1369, 0
      %v1573 = vsel %vm1541, %v1371, 0
      %v1576 = vsel %vm1541, %v1373, 0
      %v1579 = vsel %vm1541, %v1375, 0
      %v1582 = vsel %vm1541, %v1377, 0
      %v1585 = vsel %vm1541, %v1379, 0
      %v1588 = vsel %vm1541, %v1381, 0
      %v1591 = vsel %vm1541, %v1383, 0
      %v1594 = vsel %vm1541, %v1385, 0
      %v1597 = vsel %vm1541, %v1387, 0
      %v1600 = vsel %vm1541, %v1389, 0
      %v1603 = vsel %vm1541, %v1391, 0
      %v1606 = vsel %vm1541, %v1393, 0
      %v1609 = vsel %vm1541, %v1395, 0
      %v1612 = vsel %vm1541, %v1397, 0
      %v1615 = vsel %vm1541, %v1399, 0
      %v1618 = vsel %vm1541, %v1401, 0
      %v1621 = vsel %vm1541, %v1403, 0
      %v1624 = vsel %vm1541, %v1405, 0
      %v1627 = vsel %vm1541, %v1407, 0
      %v1630 = vsel %vm1541, %v1409, 0
      %v1633 = vsel %vm1541, %v1411, 0
      %v1636 = vsel %vm1541, %v1413, 0
      %v1639 = vsel %vm1541, %v1415, 0
      %v1642 = vsel %vm1541, %v1417, 0
      %v1645 = vsel %vm1541, %v1419, 0
      %v1648 = vsel %vm1541, %v1421, 0
      %v1651 = vsel %vm1541, %v1423, 0
      %v1654 = vsel %vm1541, %v1425, 0
      %v1657 = vsel %vm1541, %v1427, 0
      %v1660 = vsel %vm1541, %v1429, 0
      %v1663 = vsel %vm1541, %v1431, 0
      %v1666 = vsel %vm1541, %v1433, 0
      %v1669 = vsel %vm1541, %v1435, 0
      %v1672 = vsel %vm1541, %v1437, 0
      %v1675 = vsel %vm1541, %v1439, 0
      %v1678 = vsel %vm1541, %v1441, 0
      %v1681 = vsel %vm1541, %v1443, 0
      %v1684 = vsel %vm1541, %v1445, 0
      %v1687 = vsel %vm1541, %v1447, 0
      %v1690 = vsel %vm1541, %v1449, 0
      %v1693 = vsel %vm1541, %v1451, 0
      %v1696 = vsel %vm1541, %v1453, 0
      %v1699 = vsel %vm1541, %v1455, 0
      %v1702 = vsel %vm1541, %v1457, 0
      %v1705 = vsel %vm1541, %v1459, 0
      %v1708 = vsel %vm1541, %v1461, 0
      %v1711 = vsel %vm1541, %v1463, 0
      %v1714 = vsel %vm1541, %v1465, 0
      %v1717 = vsel %vm1541, %v1467, 0
      %v1720 = vsel %vm1541, %v1469, 0
      %v1723 = vsel %vm1541, %v1471, 0
      %v1726 = vsel %vm1541, %v1473, 0
      %v1729 = vsel %vm1541, %v1475, 0
      %v1732 = vsel %vm1541, %v1477, 0
      %1734 = vmatprep.subr.mxu0 %v1479
      %1735 = vmatpush1.msra.mxu0 %v1478
      %1736 = vmatprep.subr.mxu0 %v1482
      %1737 = vmatpush1.msra.mxu0 %v1481
      %1738 = vmatprep.subr.mxu0 %v1485
      %1739 = vmatpush1.msra.mxu0 %v1484
      %1740 = vmatprep.subr.mxu0 %v1488
      %1741 = vmatpush1.msra.mxu0 %v1487
      %1742 = vmatprep.subr.mxu0 %v1491
      %1743 = vmatpush1.msra.mxu0 %v1490
      %1744 = vmatprep.subr.mxu0 %v1494
      %1745 = vmatpush1.msra.mxu0 %v1493
      %1746 = vmatprep.subr.mxu0 %v1497
      %1747 = vmatpush1.msra.mxu0 %v1496
      %1748 = vmatprep.subr.mxu0 %v1500
      %1749 = vmatpush1.msra.mxu0 %v1499
      %1750 = vmatprep.subr.mxu0 %v1503
      %1751 = vmatpush1.msra.mxu0 %v1502
      %1752 = vmatprep.subr.mxu0 %v1506
      %1753 = vmatpush1.msra.mxu0 %v1505
      %1754 = vmatprep.subr.mxu0 %v1509
      %1755 = vmatpush1.msra.mxu0 %v1508
      %1756 = vmatprep.subr.mxu0 %v1512
      %1757 = vmatpush1.msra.mxu0 %v1511
      %1758 = vmatprep.subr.mxu0 %v1515
      %1759 = vmatpush1.msra.mxu0 %v1514
      %1760 = vmatprep.subr.mxu0 %v1518
      %1761 = vmatpush1.msra.mxu0 %v1517
      %1762 = vmatprep.subr.mxu0 %v1521
      %1763 = vmatpush1.msra.mxu0 %v1520
      %1764 = vmatprep.subr.mxu0 %v1524
      %1765 = vmatpush1.msra.mxu0 %v1523
      %1766 = vmatprep.subr.mxu0 %v1527
      %1767 = vmatpush1.msra.mxu0 %v1526
      %1768 = vmatprep.subr.mxu0 %v1530
      %1769 = vmatpush1.msra.mxu0 %v1529
      %1770 = vmatprep.subr.mxu0 %v1533
      %1771 = vmatpush1.msra.mxu0 %v1532
      %1772 = vmatprep.subr.mxu0 %v1536
      %1773 = vmatpush1.msra.mxu0 %v1535
      %1774 = vmatprep.subr.mxu0 %v1539
      %1775 = vmatpush1.msra.mxu0 %v1538
      %1776 = vmatprep.subr.mxu0 0.0
      %1777 = vmatpush1.msra.mxu0 0.0
      %1778 = vmatprep.subr.mxu0 0.0
      %1779 = vmatpush1.msra.mxu0 0.0
      %1780 = vmatprep.subr.mxu0 0.0
      %1781 = vmatpush1.msra.mxu0 0.0
      %1782 = vmatprep.subr.mxu0 0.0
      %1783 = vmatpush1.msra.mxu0 0.0
      %1784 = vmatprep.subr.mxu0 0.0
      %1785 = vmatpush1.msra.mxu0 0.0
      %1786 = vmatprep.subr.mxu0 0.0
      %1787 = vmatpush1.msra.mxu0 0.0
      %1788 = vmatprep.subr.mxu0 0.0
      %1789 = vmatpush1.msra.mxu0 0.0
      %1790 = vmatprep.subr.mxu0 0.0
      %1791 = vmatpush1.msra.mxu0 0.0
      %1792 = vmatprep.subr.mxu0 0.0
      %1793 = vmatpush1.msra.mxu0 0.0
      %1794 = vmatprep.subr.mxu0 0.0
      %1795 = vmatpush1.msra.mxu0 0.0
      %1796 = vmatprep.subr.mxu0 0.0
      %1797 = vmatpush1.msra.mxu0 0.0
      %1798 = vmatprep.mubr.f32.mxu0 %v1543
      %1799 = vmatmul.mubr.f32.gmra.mrb[0].mxu0 %v1350
      %v1800 = vpop.f32.mrb[0].mxu0
      %v1801 = vadd.f32 0.0, %v1800
      %v1802 = vpop.f32.mrb[0].mxu0
      %v1803 = vadd.f32 0.0, %v1802
      %1804 = vmatprep.mubr.f32.mxu0 %v1546
      %1805 = vmatmul.mubr.f32.gmra.mrb[0].mxu0 %v1352
      %v1806 = vpop.f32.mrb[0].mxu0
      %v1807 = vadd.f32 0.0, %v1806
      %v1808 = vpop.f32.mrb[0].mxu0
      %v1809 = vadd.f32 0.0, %v1808
      %1810 = vmatprep.mubr.f32.mxu0 %v1549
      %1811 = vmatmul.mubr.f32.gmra.mrb[0].mxu0 %v1354
      %v1812 = vpop.f32.mrb[0].mxu0
      %v1813 = vadd.f32 0.0, %v1812
      %v1814 = vpop.f32.mrb[0].mxu0
      %v1815 = vadd.f32 0.0, %v1814
      %1816 = vmatprep.mubr.f32.mxu0 %v1552
      %1817 = vmatmul.mubr.f32.gmra.mrb[0].mxu0 %v1356
      %v1818 = vpop.f32.mrb[0].mxu0
      %v1819 = vadd.f32 0.0, %v1818
      %v1820 = vpop.f32.mrb[0].mxu0
      %v1821 = vadd.f32 0.0, %v1820
      %1822 = vmatprep.mubr.f32.mxu0 %v1555
      %1823 = vmatmul.mubr.f32.gmra.mrb[0].mxu0 %v1358
      %v1824 = vpop.f32.mrb[0].mxu0
      %v1825 = vadd.f32 0.0, %v1824
      %v1826 = vpop.f32.mrb[0].mxu0
      %v1827 = vadd.f32 0.0, %v1826
      %1828 = vmatprep.mubr.f32.mxu0 %v1558
      %1829 = vmatmul.mubr.f32.gmra.mrb[0].mxu0 %v1360
      %v1830 = vpop.f32.mrb[0].mxu0
      %v1831 = vadd.f32 0.0, %v1830
      %v1832 = vpop.f32.mrb[0].mxu0
      %v1833 = vadd.f32 0.0, %v1832
      %1834 = vmatprep.mubr.f32.mxu0 %v1561
      %1835 = vmatmul.mubr.f32.gmra.mrb[0].mxu0 %v1362
      %v1836 = vpop.f32.mrb[0].mxu0
      %v1837 = vadd.f32 0.0, %v1836
      %v1838 = vpop.f32.mrb[0].mxu0
      %v1839 = vadd.f32 0.0, %v1838
      %1840 = vmatprep.mubr.f32.mxu0 %v1564
      %1841 = vmatmul.mubr.f32.gmra.mrb[0].mxu0 %v1364
      %v1842 = vpop.f32.mrb[0].mxu0
      %v1843 = vadd.f32 0.0, %v1842
      %v1844 = vpop.f32.mrb[0].mxu0
      %v1845 = vadd.f32 0.0, %v1844
      %1846 = vmatprep.mubr.f32.mxu0 %v1567
      %1847 = vmatmul.mubr.f32.gmra.mrb[0].mxu0 %v1366
      %v1848 = vpop.f32.mrb[0].mxu0
      %v1849 = vadd.f32 0.0, %v1848
      %v1850 = vpop.f32.mrb[0].mxu0
      %v1851 = vadd.f32 0.0, %v1850
      %1852 = vmatprep.mubr.f32.mxu0 %v1570
      %1853 = vmatmul.mubr.f32.gmra.mrb[0].mxu0 %v1368
      %v1854 = vpop.f32.mrb[0].mxu0
      %v1855 = vadd.f32 0.0, %v1854
      %v1856 = vpop.f32.mrb[0].mxu0
      %v1857 = vadd.f32 0.0, %v1856
      %1858 = vmatprep.mubr.f32.mxu0 %v1573
      %1859 = vmatmul.mubr.f32.gmra.mrb[0].mxu0 %v1370
      %v1860 = vpop.f32.mrb[0].mxu0
      %v1861 = vadd.f32 0.0, %v1860
      %v1862 = vpop.f32.mrb[0].mxu0
      %v1863 = vadd.f32 0.0, %v1862
      %1864 = vmatprep.mubr.f32.mxu0 %v1576
      %1865 = vmatmul.mubr.f32.gmra.mrb[0].mxu0 %v1372
      %v1866 = vpop.f32.mrb[0].mxu0
      %v1867 = vadd.f32 0.0, %v1866
      %v1868 = vpop.f32.mrb[0].mxu0
      %v1869 = vadd.f32 0.0, %v1868
      %1870 = vmatprep.mubr.f32.mxu0 %v1579
      %1871 = vmatmul.mubr.f32.gmra.mrb[0].mxu0 %v1374
      %v1872 = vpop.f32.mrb[0].mxu0
      %v1873 = vadd.f32 0.0, %v1872
      %v1874 = vpop.f32.mrb[0].mxu0
      %v1875 = vadd.f32 0.0, %v1874
      %1876 = vmatprep.mubr.f32.mxu0 %v1582
      %1877 = vmatmul.mubr.f32.gmra.mrb[0].mxu0 %v1376
      %v1878 = vpop.f32.mrb[0].mxu0
      %v1879 = vadd.f32 0.0, %v1878
      %v1880 = vpop.f32.mrb[0].mxu0
      %v1881 = vadd.f32 0.0, %v1880
      %1882 = vmatprep.mubr.f32.mxu0 %v1585
      %1883 = vmatmul.mubr.f32.gmra.mrb[0].mxu0 %v1378
      %v1884 = vpop.f32.mrb[0].mxu0
      %v1885 = vadd.f32 0.0, %v1884
      %v1886 = vpop.f32.mrb[0].mxu0
      %v1887 = vadd.f32 0.0, %v1886
      %1888 = vmatprep.mubr.f32.mxu0 %v1588
      %1889 = vmatmul.mubr.f32.gmra.mrb[0].mxu0 %v1380
      %v1890 = vpop.f32.mrb[0].mxu0
      %v1891 = vadd.f32 0.0, %v1890
      %v1892 = vpop.f32.mrb[0].mxu0
      %v1893 = vadd.f32 0.0, %v1892
      %1894 = vmatprep.mubr.f32.mxu0 %v1591
      %1895 = vmatmul.mubr.f32.gmra.mrb[0].mxu0 %v1382
      %v1896 = vpop.f32.mrb[0].mxu0
      %v1897 = vadd.f32 0.0, %v1896
      %v1898 = vpop.f32.mrb[0].mxu0
      %v1899 = vadd.f32 0.0, %v1898
      %1900 = vmatprep.mubr.f32.mxu0 %v1594
      %1901 = vmatmul.mubr.f32.gmra.mrb[0].mxu0 %v1384
      %v1902 = vpop.f32.mrb[0].mxu0
      %v1903 = vadd.f32 0.0, %v1902
      %v1904 = vpop.f32.mrb[0].mxu0
      %v1905 = vadd.f32 0.0, %v1904
      %1906 = vmatprep.mubr.f32.mxu0 %v1597
      %1907 = vmatmul.mubr.f32.gmra.mrb[0].mxu0 %v1386
      %v1908 = vpop.f32.mrb[0].mxu0
      %v1909 = vadd.f32 0.0, %v1908
      %v1910 = vpop.f32.mrb[0].mxu0
      %v1911 = vadd.f32 0.0, %v1910
      %1912 = vmatprep.mubr.f32.mxu0 %v1600
      %1913 = vmatmul.mubr.f32.gmra.mrb[0].mxu0 %v1388
      %v1914 = vpop.f32.mrb[0].mxu0
      %v1915 = vadd.f32 0.0, %v1914
      %v1916 = vpop.f32.mrb[0].mxu0
      %v1917 = vadd.f32 0.0, %v1916
      %1918 = vmatprep.mubr.f32.mxu0 %v1603
      %1919 = vmatmul.mubr.f32.gmra.mrb[0].mxu0 %v1390
      %v1920 = vpop.f32.mrb[0].mxu0
      %v1921 = vadd.f32 0.0, %v1920
      %v1922 = vpop.f32.mrb[0].mxu0
      %v1923 = vadd.f32 0.0, %v1922
      %1924 = vmatprep.mubr.f32.mxu0 %v1606
      %1925 = vmatmul.mubr.f32.gmra.mrb[0].mxu0 %v1392
      %v1926 = vpop.f32.mrb[0].mxu0
      %v1927 = vadd.f32 0.0, %v1926
      %v1928 = vpop.f32.mrb[0].mxu0
      %v1929 = vadd.f32 0.0, %v1928
      %1930 = vmatprep.mubr.f32.mxu0 %v1609
      %1931 = vmatmul.mubr.f32.gmra.mrb[0].mxu0 %v1394
      %v1932 = vpop.f32.mrb[0].mxu0
      %v1933 = vadd.f32 0.0, %v1932
      %v1934 = vpop.f32.mrb[0].mxu0
      %v1935 = vadd.f32 0.0, %v1934
      %1936 = vmatprep.mubr.f32.mxu0 %v1612
      %1937 = vmatmul.mubr.f32.gmra.mrb[0].mxu0 %v1396
      %v1938 = vpop.f32.mrb[0].mxu0
      %v1939 = vadd.f32 0.0, %v1938
      %v1940 = vpop.f32.mrb[0].mxu0
      %v1941 = vadd.f32 0.0, %v1940
      %1942 = vmatprep.mubr.f32.mxu0 %v1615
      %1943 = vmatmul.mubr.f32.gmra.mrb[0].mxu0 %v1398
      %v1944 = vpop.f32.mrb[0].mxu0
      %v1945 = vadd.f32 0.0, %v1944
      %v1946 = vpop.f32.mrb[0].mxu0
      %v1947 = vadd.f32 0.0, %v1946
      %1948 = vmatprep.mubr.f32.mxu0 %v1618
      %1949 = vmatmul.mubr.f32.gmra.mrb[0].mxu0 %v1400
      %v1950 = vpop.f32.mrb[0].mxu0
      %v1951 = vadd.f32 0.0, %v1950
      %v1952 = vpop.f32.mrb[0].mxu0
      %v1953 = vadd.f32 0.0, %v1952
      %1954 = vmatprep.mubr.f32.mxu0 %v1621
      %1955 = vmatmul.mubr.f32.gmra.mrb[0].mxu0 %v1402
      %v1956 = vpop.f32.mrb[0].mxu0
      %v1957 = vadd.f32 0.0, %v1956
      %v1958 = vpop.f32.mrb[0].mxu0
      %v1959 = vadd.f32 0.0, %v1958
      %1960 = vmatprep.mubr.f32.mxu0 %v1624
      %1961 = vmatmul.mubr.f32.gmra.mrb[0].mxu0 %v1404
      %v1962 = vpop.f32.mrb[0].mxu0
      %v1963 = vadd.f32 0.0, %v1962
      %v1964 = vpop.f32.mrb[0].mxu0
      %v1965 = vadd.f32 0.0, %v1964
      %1966 = vmatprep.mubr.f32.mxu0 %v1627
      %1967 = vmatmul.mubr.f32.gmra.mrb[0].mxu0 %v1406
      %v1968 = vpop.f32.mrb[0].mxu0
      %v1969 = vadd.f32 0.0, %v1968
      %v1970 = vpop.f32.mrb[0].mxu0
      %v1971 = vadd.f32 0.0, %v1970
      %1972 = vmatprep.mubr.f32.mxu0 %v1630
      %1973 = vmatmul.mubr.f32.gmra.mrb[0].mxu0 %v1408
      %v1974 = vpop.f32.mrb[0].mxu0
      %v1975 = vadd.f32 0.0, %v1974
      %v1976 = vpop.f32.mrb[0].mxu0
      %v1977 = vadd.f32 0.0, %v1976
      %1978 = vmatprep.mubr.f32.mxu0 %v1633
      %1979 = vmatmul.mubr.f32.gmra.mrb[0].mxu0 %v1410
      %v1980 = vpop.f32.mrb[0].mxu0
      %v1981 = vadd.f32 0.0, %v1980
      %v1982 = vpop.f32.mrb[0].mxu0
      %v1983 = vadd.f32 0.0, %v1982
      %1984 = vmatprep.mubr.f32.mxu0 %v1636
      %1985 = vmatmul.mubr.f32.gmra.mrb[0].mxu0 %v1412
      %v1986 = vpop.f32.mrb[0].mxu0
      %v1987 = vadd.f32 0.0, %v1986
      %v1988 = vpop.f32.mrb[0].mxu0
      %v1989 = vadd.f32 0.0, %v1988
      %1990 = vmatprep.mubr.f32.mxu0 %v1639
      %1991 = vmatmul.mubr.f32.gmra.mrb[0].mxu0 %v1414
      %v1992 = vpop.f32.mrb[0].mxu0
      %v1993 = vadd.f32 0.0, %v1992
      %v1994 = vpop.f32.mrb[0].mxu0
      %v1995 = vadd.f32 0.0, %v1994
      %1996 = vmatprep.mubr.f32.mxu0 %v1642
      %1997 = vmatmul.mubr.f32.gmra.mrb[0].mxu0 %v1416
      %v1998 = vpop.f32.mrb[0].mxu0
      %v1999 = vadd.f32 0.0, %v1998
      %v2000 = vpop.f32.mrb[0].mxu0
      %v2001 = vadd.f32 0.0, %v2000
      %2002 = vmatprep.mubr.f32.mxu0 %v1645
      %2003 = vmatmul.mubr.f32.gmra.mrb[0].mxu0 %v1418
      %v2004 = vpop.f32.mrb[0].mxu0
      %v2005 = vadd.f32 0.0, %v2004
      %v2006 = vpop.f32.mrb[0].mxu0
      %v2007 = vadd.f32 0.0, %v2006
      %2008 = vmatprep.mubr.f32.mxu0 %v1648
      %2009 = vmatmul.mubr.f32.gmra.mrb[0].mxu0 %v1420
      %v2010 = vpop.f32.mrb[0].mxu0
      %v2011 = vadd.f32 0.0, %v2010
      %v2012 = vpop.f32.mrb[0].mxu0
      %v2013 = vadd.f32 0.0, %v2012
      %2014 = vmatprep.mubr.f32.mxu0 %v1651
      %2015 = vmatmul.mubr.f32.gmra.mrb[0].mxu0 %v1422
      %v2016 = vpop.f32.mrb[0].mxu0
      %v2017 = vadd.f32 0.0, %v2016
      %v2018 = vpop.f32.mrb[0].mxu0
      %v2019 = vadd.f32 0.0, %v2018
      %2020 = vmatprep.mubr.f32.mxu0 %v1654
      %2021 = vmatmul.mubr.f32.gmra.mrb[0].mxu0 %v1424
      %v2022 = vpop.f32.mrb[0].mxu0
      %v2023 = vadd.f32 0.0, %v2022
      %v2024 = vpop.f32.mrb[0].mxu0
      %v2025 = vadd.f32 0.0, %v2024
      %2026 = vmatprep.mubr.f32.mxu0 %v1657
      %2027 = vmatmul.mubr.f32.gmra.mrb[0].mxu0 %v1426
      %v2028 = vpop.f32.mrb[0].mxu0
      %v2029 = vadd.f32 0.0, %v2028
      %v2030 = vpop.f32.mrb[0].mxu0
      %v2031 = vadd.f32 0.0, %v2030
      %2032 = vmatprep.mubr.f32.mxu0 %v1660
      %2033 = vmatmul.mubr.f32.gmra.mrb[0].mxu0 %v1428
      %v2034 = vpop.f32.mrb[0].mxu0
      %v2035 = vadd.f32 0.0, %v2034
      %v2036 = vpop.f32.mrb[0].mxu0
      %v2037 = vadd.f32 0.0, %v2036
      %2038 = vmatprep.mubr.f32.mxu0 %v1663
      %2039 = vmatmul.mubr.f32.gmra.mrb[0].mxu0 %v1430
      %v2040 = vpop.f32.mrb[0].mxu0
      %v2041 = vadd.f32 0.0, %v2040
      %v2042 = vpop.f32.mrb[0].mxu0
      %v2043 = vadd.f32 0.0, %v2042
      %2044 = vmatprep.mubr.f32.mxu0 %v1666
      %2045 = vmatmul.mubr.f32.gmra.mrb[0].mxu0 %v1432
      %v2046 = vpop.f32.mrb[0].mxu0
      %v2047 = vadd.f32 0.0, %v2046
      %v2048 = vpop.f32.mrb[0].mxu0
      %v2049 = vadd.f32 0.0, %v2048
      %2050 = vmatprep.mubr.f32.mxu0 %v1669
      %2051 = vmatmul.mubr.f32.gmra.mrb[0].mxu0 %v1434
      %v2052 = vpop.f32.mrb[0].mxu0
      %v2053 = vadd.f32 0.0, %v2052
      %v2054 = vpop.f32.mrb[0].mxu0
      %v2055 = vadd.f32 0.0, %v2054
      %2056 = vmatprep.mubr.f32.mxu0 %v1672
      %2057 = vmatmul.mubr.f32.gmra.mrb[0].mxu0 %v1436
      %v2058 = vpop.f32.mrb[0].mxu0
      %v2059 = vadd.f32 0.0, %v2058
      %v2060 = vpop.f32.mrb[0].mxu0
      %v2061 = vadd.f32 0.0, %v2060
      %2062 = vmatprep.mubr.f32.mxu0 %v1675
      %2063 = vmatmul.mubr.f32.gmra.mrb[0].mxu0 %v1438
      %v2064 = vpop.f32.mrb[0].mxu0
      %v2065 = vadd.f32 0.0, %v2064
      %v2066 = vpop.f32.mrb[0].mxu0
      %v2067 = vadd.f32 0.0, %v2066
      %2068 = vmatprep.mubr.f32.mxu0 %v1678
      %2069 = vmatmul.mubr.f32.gmra.mrb[0].mxu0 %v1440
      %v2070 = vpop.f32.mrb[0].mxu0
      %v2071 = vadd.f32 0.0, %v2070
      %v2072 = vpop.f32.mrb[0].mxu0
      %v2073 = vadd.f32 0.0, %v2072
      %2074 = vmatprep.mubr.f32.mxu0 %v1681
      %2075 = vmatmul.mubr.f32.gmra.mrb[0].mxu0 %v1442
      %v2076 = vpop.f32.mrb[0].mxu0
      %v2077 = vadd.f32 0.0, %v2076
      %v2078 = vpop.f32.mrb[0].mxu0
      %v2079 = vadd.f32 0.0, %v2078
      %2080 = vmatprep.mubr.f32.mxu0 %v1684
      %2081 = vmatmul.mubr.f32.gmra.mrb[0].mxu0 %v1444
      %v2082 = vpop.f32.mrb[0].mxu0
      %v2083 = vadd.f32 0.0, %v2082
      %v2084 = vpop.f32.mrb[0].mxu0
      %v2085 = vadd.f32 0.0, %v2084
      %2086 = vmatprep.mubr.f32.mxu0 %v1687
      %2087 = vmatmul.mubr.f32.gmra.mrb[0].mxu0 %v1446
      %v2088 = vpop.f32.mrb[0].mxu0
      %v2089 = vadd.f32 0.0, %v2088
      %v2090 = vpop.f32.mrb[0].mxu0
      %v2091 = vadd.f32 0.0, %v2090
      %2092 = vmatprep.mubr.f32.mxu0 %v1690
      %2093 = vmatmul.mubr.f32.gmra.mrb[0].mxu0 %v1448
      %v2094 = vpop.f32.mrb[0].mxu0
      %v2095 = vadd.f32 0.0, %v2094
      %v2096 = vpop.f32.mrb[0].mxu0
      %v2097 = vadd.f32 0.0, %v2096
      %2098 = vmatprep.mubr.f32.mxu0 %v1693
      %2099 = vmatmul.mubr.f32.gmra.mrb[0].mxu0 %v1450
      %v2100 = vpop.f32.mrb[0].mxu0
      %v2101 = vadd.f32 0.0, %v2100
      %v2102 = vpop.f32.mrb[0].mxu0
      %v2103 = vadd.f32 0.0, %v2102
      %2104 = vmatprep.mubr.f32.mxu0 %v1696
      %2105 = vmatmul.mubr.f32.gmra.mrb[0].mxu0 %v1452
      %v2106 = vpop.f32.mrb[0].mxu0
      %v2107 = vadd.f32 0.0, %v2106
      %v2108 = vpop.f32.mrb[0].mxu0
      %v2109 = vadd.f32 0.0, %v2108
      %2110 = vmatprep.mubr.f32.mxu0 %v1699
      %2111 = vmatmul.mubr.f32.gmra.mrb[0].mxu0 %v1454
      %v2112 = vpop.f32.mrb[0].mxu0
      %v2113 = vadd.f32 0.0, %v2112
      %v2114 = vpop.f32.mrb[0].mxu0
      %v2115 = vadd.f32 0.0, %v2114
      %2116 = vmatprep.mubr.f32.mxu0 %v1702
      %2117 = vmatmul.mubr.f32.gmra.mrb[0].mxu0 %v1456
      %v2118 = vpop.f32.mrb[0].mxu0
      %v2119 = vadd.f32 0.0, %v2118
      %v2120 = vpop.f32.mrb[0].mxu0
      %v2121 = vadd.f32 0.0, %v2120
      %2122 = vmatprep.mubr.f32.mxu0 %v1705
      %2123 = vmatmul.mubr.f32.gmra.mrb[0].mxu0 %v1458
      %v2124 = vpop.f32.mrb[0].mxu0
      %v2125 = vadd.f32 0.0, %v2124
      %v2126 = vpop.f32.mrb[0].mxu0
      %v2127 = vadd.f32 0.0, %v2126
      %2128 = vmatprep.mubr.f32.mxu0 %v1708
      %2129 = vmatmul.mubr.f32.gmra.mrb[0].mxu0 %v1460
      %v2130 = vpop.f32.mrb[0].mxu0
      %v2131 = vadd.f32 0.0, %v2130
      %v2132 = vpop.f32.mrb[0].mxu0
      %v2133 = vadd.f32 0.0, %v2132
      %2134 = vmatprep.mubr.f32.mxu0 %v1711
      %2135 = vmatmul.mubr.f32.gmra.mrb[0].mxu0 %v1462
      %v2136 = vpop.f32.mrb[0].mxu0
      %v2137 = vadd.f32 0.0, %v2136
      %v2138 = vpop.f32.mrb[0].mxu0
      %v2139 = vadd.f32 0.0, %v2138
      %2140 = vmatprep.mubr.f32.mxu0 %v1714
      %2141 = vmatmul.mubr.f32.gmra.mrb[0].mxu0 %v1464
      %v2142 = vpop.f32.mrb[0].mxu0
      %v2143 = vadd.f32 0.0, %v2142
      %v2144 = vpop.f32.mrb[0].mxu0
      %v2145 = vadd.f32 0.0, %v2144
      %2146 = vmatprep.mubr.f32.mxu0 %v1717
      %2147 = vmatmul.mubr.f32.gmra.mrb[0].mxu0 %v1466
      %v2148 = vpop.f32.mrb[0].mxu0
      %v2149 = vadd.f32 0.0, %v2148
      %v2150 = vpop.f32.mrb[0].mxu0
      %v2151 = vadd.f32 0.0, %v2150
      %2152 = vmatprep.mubr.f32.mxu0 %v1720
      %2153 = vmatmul.mubr.f32.gmra.mrb[0].mxu0 %v1468
      %v2154 = vpop.f32.mrb[0].mxu0
      %v2155 = vadd.f32 0.0, %v2154
      %v2156 = vpop.f32.mrb[0].mxu0
      %v2157 = vadd.f32 0.0, %v2156
      %2158 = vmatprep.mubr.f32.mxu0 %v1723
      %2159 = vmatmul.mubr.f32.gmra.mrb[0].mxu0 %v1470
      %v2160 = vpop.f32.mrb[0].mxu0
      %v2161 = vadd.f32 0.0, %v2160
      %v2162 = vpop.f32.mrb[0].mxu0
      %v2163 = vadd.f32 0.0, %v2162
      %2164 = vmatprep.mubr.f32.mxu0 %v1726
      %2165 = vmatmul.mubr.f32.gmra.mrb[0].mxu0 %v1472
      %v2166 = vpop.f32.mrb[0].mxu0
      %v2167 = vadd.f32 0.0, %v2166
      %v2168 = vpop.f32.mrb[0].mxu0
      %v2169 = vadd.f32 0.0, %v2168
      %2170 = vmatprep.mubr.f32.mxu0 %v1729
      %2171 = vmatmul.mubr.f32.gmra.mrb[0].mxu0 %v1474
      %v2172 = vpop.f32.mrb[0].mxu0
      %v2173 = vadd.f32 0.0, %v2172
      %v2174 = vpop.f32.mrb[0].mxu0
      %v2175 = vadd.f32 0.0, %v2174
      %2176 = vmatprep.mubr.f32.mxu0 %v1732
      %2177 = vmatmul.mubr.f32.gmra.mrb[0].mxu0 %v1476
      %v2178 = vpop.f32.mrb[0].mxu0
      %v2179 = vadd.f32 0.0, %v2178
      %v2180 = vpop.f32.mrb[0].mxu0
      %v2181 = vadd.f32 0.0, %v2180
      %2182 = vdwg.mxu0
      %2183 = vmatprep.subr.mxu0 0.0
      %2184 = vmatpush1.msra.mxu0 %v1480
      %2185 = vmatprep.subr.mxu0 0.0
      %2186 = vmatpush1.msra.mxu0 %v1483
      %2187 = vmatprep.subr.mxu0 0.0
      %2188 = vmatpush1.msra.mxu0 %v1486
      %2189 = vmatprep.subr.mxu0 0.0
      %2190 = vmatpush1.msra.mxu0 %v1489
      %2191 = vmatprep.subr.mxu0 0.0
      %2192 = vmatpush1.msra.mxu0 %v1492
      %2193 = vmatprep.subr.mxu0 0.0
      %2194 = vmatpush1.msra.mxu0 %v1495
      %2195 = vmatprep.subr.mxu0 0.0
      %2196 = vmatpush1.msra.mxu0 %v1498
      %2197 = vmatprep.subr.mxu0 0.0
      %2198 = vmatpush1.msra.mxu0 %v1501
      %2199 = vmatprep.subr.mxu0 0.0
      %2200 = vmatpush1.msra.mxu0 %v1504
      %2201 = vmatprep.subr.mxu0 0.0
      %2202 = vmatpush1.msra.mxu0 %v1507
      %2203 = vmatprep.subr.mxu0 0.0
      %2204 = vmatpush1.msra.mxu0 %v1510
      %2205 = vmatprep.subr.mxu0 0.0
      %2206 = vmatpush1.msra.mxu0 %v1513
      %2207 = vmatprep.subr.mxu0 0.0
      %2208 = vmatpush1.msra.mxu0 %v1516
      %2209 = vmatprep.subr.mxu0 0.0
      %2210 = vmatpush1.msra.mxu0 %v1519
      %2211 = vmatprep.subr.mxu0 0.0
      %2212 = vmatpush1.msra.mxu0 %v1522
      %2213 = vmatprep.subr.mxu0 0.0
      %2214 = vmatpush1.msra.mxu0 %v1525
      %2215 = vmatprep.subr.mxu0 0.0
      %2216 = vmatpush1.msra.mxu0 %v1528
      %2217 = vmatprep.subr.mxu0 0.0
      %2218 = vmatpush1.msra.mxu0 %v1531
      %2219 = vmatprep.subr.mxu0 0.0
      %2220 = vmatpush1.msra.mxu0 %v1534
      %2221 = vmatprep.subr.mxu0 0.0
      %2222 = vmatpush1.msra.mxu0 %v1537
      %2223 = vmatprep.subr.mxu0 0.0
      %2224 = vmatpush1.msra.mxu0 %v1540
      %2225 = vmatprep.subr.mxu0 0.0
      %2226 = vmatpush1.msra.mxu0 0.0
      %2227 = vmatprep.subr.mxu0 0.0
      %2228 = vmatpush1.msra.mxu0 0.0
      %2229 = vmatprep.subr.mxu0 0.0
      %2230 = vmatpush1.msra.mxu0 0.0
      %2231 = vmatprep.subr.mxu0 0.0
      %2232 = vmatpush1.msra.mxu0 0.0
      %2233 = vmatprep.subr.mxu0 0.0
      %2234 = vmatpush1.msra.mxu0 0.0
      %2235 = vmatprep.subr.mxu0 0.0
      %2236 = vmatpush1.msra.mxu0 0.0
      %2237 = vmatprep.subr.mxu0 0.0
      %2238 = vmatpush1.msra.mxu0 0.0
      %2239 = vmatprep.subr.mxu0 0.0
      %2240 = vmatpush1.msra.mxu0 0.0
      %2241 = vmatprep.subr.mxu0 0.0
      %2242 = vmatpush1.msra.mxu0 0.0
      %2243 = vmatprep.subr.mxu0 0.0
      %2244 = vmatpush1.msra.mxu0 0.0
      %2245 = vmatprep.subr.mxu0 0.0
      %2246 = vmatpush1.msra.mxu0 0.0
      %2247 = vmatprep.mubr.f32.mxu0 %v1543
      %2248 = vmatmul.mubr.f32.gmra.mrb[0].mxu0 %v1350
      %v2249 = vpop.f32.mrb[0].mxu0
      %v2250 = vadd.f32 0.0, %v2249
      %v2251 = vpop.f32.mrb[0].mxu0
      %2252 = vmatprep.mubr.f32.mxu0 %v1546
      %2253 = vmatmul.mubr.f32.gmra.mrb[0].mxu0 %v1352
      %v2254 = vpop.f32.mrb[0].mxu0
      %v2255 = vadd.f32 0.0, %v2254
      %v2256 = vpop.f32.mrb[0].mxu0
      %2257 = vmatprep.mubr.f32.mxu0 %v1549
      %2258 = vmatmul.mubr.f32.gmra.mrb[0].mxu0 %v1354
      %v2259 = vpop.f32.mrb[0].mxu0
      %v2260 = vadd.f32 0.0, %v2259
      %v2261 = vpop.f32.mrb[0].mxu0
      %2262 = vmatprep.mubr.f32.mxu0 %v1552
      %2263 = vmatmul.mubr.f32.gmra.mrb[0].mxu0 %v1356
      %v2264 = vpop.f32.mrb[0].mxu0
      %v2265 = vadd.f32 0.0, %v2264
      %v2266 = vpop.f32.mrb[0].mxu0
      %2267 = vmatprep.mubr.f32.mxu0 %v1555
      %2268 = vmatmul.mubr.f32.gmra.mrb[0].mxu0 %v1358
      %v2269 = vpop.f32.mrb[0].mxu0
      %v2270 = vadd.f32 0.0, %v2269
      %v2271 = vpop.f32.mrb[0].mxu0
      %2272 = vmatprep.mubr.f32.mxu0 %v1558
      %2273 = vmatmul.mubr.f32.gmra.mrb[0].mxu0 %v1360
      %v2274 = vpop.f32.mrb[0].mxu0
      %v2275 = vadd.f32 0.0, %v2274
      %v2276 = vpop.f32.mrb[0].mxu0
      %2277 = vmatprep.mubr.f32.mxu0 %v1561
      %2278 = vmatmul.mubr.f32.gmra.mrb[0].mxu0 %v1362
      %v2279 = vpop.f32.mrb[0].mxu0
      %v2280 = vadd.f32 0.0, %v2279
      %v2281 = vpop.f32.mrb[0].mxu0
      %2282 = vmatprep.mubr.f32.mxu0 %v1564
      %2283 = vmatmul.mubr.f32.gmra.mrb[0].mxu0 %v1364
      %v2284 = vpop.f32.mrb[0].mxu0
      %v2285 = vadd.f32 0.0, %v2284
      %v2286 = vpop.f32.mrb[0].mxu0
      %2287 = vmatprep.mubr.f32.mxu0 %v1567
      %2288 = vmatmul.mubr.f32.gmra.mrb[0].mxu0 %v1366
      %v2289 = vpop.f32.mrb[0].mxu0
      %v2290 = vadd.f32 0.0, %v2289
      %v2291 = vpop.f32.mrb[0].mxu0
      %2292 = vmatprep.mubr.f32.mxu0 %v1570
      %2293 = vmatmul.mubr.f32.gmra.mrb[0].mxu0 %v1368
      %v2294 = vpop.f32.mrb[0].mxu0
      %v2295 = vadd.f32 0.0, %v2294
      %v2296 = vpop.f32.mrb[0].mxu0
      %2297 = vmatprep.mubr.f32.mxu0 %v1573
      %2298 = vmatmul.mubr.f32.gmra.mrb[0].mxu0 %v1370
      %v2299 = vpop.f32.mrb[0].mxu0
      %v2300 = vadd.f32 0.0, %v2299
      %v2301 = vpop.f32.mrb[0].mxu0
      %2302 = vmatprep.mubr.f32.mxu0 %v1576
      %2303 = vmatmul.mubr.f32.gmra.mrb[0].mxu0 %v1372
      %v2304 = vpop.f32.mrb[0].mxu0
      %v2305 = vadd.f32 0.0, %v2304
      %v2306 = vpop.f32.mrb[0].mxu0
      %2307 = vmatprep.mubr.f32.mxu0 %v1579
      %2308 = vmatmul.mubr.f32.gmra.mrb[0].mxu0 %v1374
      %v2309 = vpop.f32.mrb[0].mxu0
      %v2310 = vadd.f32 0.0, %v2309
      %v2311 = vpop.f32.mrb[0].mxu0
      %2312 = vmatprep.mubr.f32.mxu0 %v1582
      %2313 = vmatmul.mubr.f32.gmra.mrb[0].mxu0 %v1376
      %v2314 = vpop.f32.mrb[0].mxu0
      %v2315 = vadd.f32 0.0, %v2314
      %v2316 = vpop.f32.mrb[0].mxu0
      %2317 = vmatprep.mubr.f32.mxu0 %v1585
      %2318 = vmatmul.mubr.f32.gmra.mrb[0].mxu0 %v1378
      %v2319 = vpop.f32.mrb[0].mxu0
      %v2320 = vadd.f32 0.0, %v2319
      %v2321 = vpop.f32.mrb[0].mxu0
      %2322 = vmatprep.mubr.f32.mxu0 %v1588
      %2323 = vmatmul.mubr.f32.gmra.mrb[0].mxu0 %v1380
      %v2324 = vpop.f32.mrb[0].mxu0
      %v2325 = vadd.f32 0.0, %v2324
      %v2326 = vpop.f32.mrb[0].mxu0
      %2327 = vmatprep.mubr.f32.mxu0 %v1591
      %2328 = vmatmul.mubr.f32.gmra.mrb[0].mxu0 %v1382
      %v2329 = vpop.f32.mrb[0].mxu0
      %v2330 = vadd.f32 0.0, %v2329
      %v2331 = vpop.f32.mrb[0].mxu0
      %2332 = vmatprep.mubr.f32.mxu0 %v1594
      %2333 = vmatmul.mubr.f32.gmra.mrb[0].mxu0 %v1384
      %v2334 = vpop.f32.mrb[0].mxu0
      %v2335 = vadd.f32 0.0, %v2334
      %v2336 = vpop.f32.mrb[0].mxu0
      %2337 = vmatprep.mubr.f32.mxu0 %v1597
      %2338 = vmatmul.mubr.f32.gmra.mrb[0].mxu0 %v1386
      %v2339 = vpop.f32.mrb[0].mxu0
      %v2340 = vadd.f32 0.0, %v2339
      %v2341 = vpop.f32.mrb[0].mxu0
      %2342 = vmatprep.mubr.f32.mxu0 %v1600
      %2343 = vmatmul.mubr.f32.gmra.mrb[0].mxu0 %v1388
      %v2344 = vpop.f32.mrb[0].mxu0
      %v2345 = vadd.f32 0.0, %v2344
      %v2346 = vpop.f32.mrb[0].mxu0
      %2347 = vmatprep.mubr.f32.mxu0 %v1603
      %2348 = vmatmul.mubr.f32.gmra.mrb[0].mxu0 %v1390
      %v2349 = vpop.f32.mrb[0].mxu0
      %v2350 = vadd.f32 0.0, %v2349
      %v2351 = vpop.f32.mrb[0].mxu0
      %2352 = vmatprep.mubr.f32.mxu0 %v1606
      %2353 = vmatmul.mubr.f32.gmra.mrb[0].mxu0 %v1392
      %v2354 = vpop.f32.mrb[0].mxu0
      %v2355 = vadd.f32 0.0, %v2354
      %v2356 = vpop.f32.mrb[0].mxu0
      %2357 = vmatprep.mubr.f32.mxu0 %v1609
      %2358 = vmatmul.mubr.f32.gmra.mrb[0].mxu0 %v1394
      %v2359 = vpop.f32.mrb[0].mxu0
      %v2360 = vadd.f32 0.0, %v2359
      %v2361 = vpop.f32.mrb[0].mxu0
      %2362 = vmatprep.mubr.f32.mxu0 %v1612
      %2363 = vmatmul.mubr.f32.gmra.mrb[0].mxu0 %v1396
      %v2364 = vpop.f32.mrb[0].mxu0
      %v2365 = vadd.f32 0.0, %v2364
      %v2366 = vpop.f32.mrb[0].mxu0
      %2367 = vmatprep.mubr.f32.mxu0 %v1615
      %2368 = vmatmul.mubr.f32.gmra.mrb[0].mxu0 %v1398
      %v2369 = vpop.f32.mrb[0].mxu0
      %v2370 = vadd.f32 0.0, %v2369
      %v2371 = vpop.f32.mrb[0].mxu0
      %2372 = vmatprep.mubr.f32.mxu0 %v1618
      %2373 = vmatmul.mubr.f32.gmra.mrb[0].mxu0 %v1400
      %v2374 = vpop.f32.mrb[0].mxu0
      %v2375 = vadd.f32 0.0, %v2374
      %v2376 = vpop.f32.mrb[0].mxu0
      %2377 = vmatprep.mubr.f32.mxu0 %v1621
      %2378 = vmatmul.mubr.f32.gmra.mrb[0].mxu0 %v1402
      %v2379 = vpop.f32.mrb[0].mxu0
      %v2380 = vadd.f32 0.0, %v2379
      %v2381 = vpop.f32.mrb[0].mxu0
      %2382 = vmatprep.mubr.f32.mxu0 %v1624
      %2383 = vmatmul.mubr.f32.gmra.mrb[0].mxu0 %v1404
      %v2384 = vpop.f32.mrb[0].mxu0
      %v2385 = vadd.f32 0.0, %v2384
      %v2386 = vpop.f32.mrb[0].mxu0
      %2387 = vmatprep.mubr.f32.mxu0 %v1627
      %2388 = vmatmul.mubr.f32.gmra.mrb[0].mxu0 %v1406
      %v2389 = vpop.f32.mrb[0].mxu0
      %v2390 = vadd.f32 0.0, %v2389
      %v2391 = vpop.f32.mrb[0].mxu0
      %2392 = vmatprep.mubr.f32.mxu0 %v1630
      %2393 = vmatmul.mubr.f32.gmra.mrb[0].mxu0 %v1408
      %v2394 = vpop.f32.mrb[0].mxu0
      %v2395 = vadd.f32 0.0, %v2394
      %v2396 = vpop.f32.mrb[0].mxu0
      %2397 = vmatprep.mubr.f32.mxu0 %v1633
      %2398 = vmatmul.mubr.f32.gmra.mrb[0].mxu0 %v1410
      %v2399 = vpop.f32.mrb[0].mxu0
      %v2400 = vadd.f32 0.0, %v2399
      %v2401 = vpop.f32.mrb[0].mxu0
      %2402 = vmatprep.mubr.f32.mxu0 %v1636
      %2403 = vmatmul.mubr.f32.gmra.mrb[0].mxu0 %v1412
      %v2404 = vpop.f32.mrb[0].mxu0
      %v2405 = vadd.f32 0.0, %v2404
      %v2406 = vpop.f32.mrb[0].mxu0
      %2407 = vmatprep.mubr.f32.mxu0 %v1639
      %2408 = vmatmul.mubr.f32.gmra.mrb[0].mxu0 %v1414
      %v2409 = vpop.f32.mrb[0].mxu0
      %v2410 = vadd.f32 0.0, %v2409
      %v2411 = vpop.f32.mrb[0].mxu0
      %2412 = vmatprep.mubr.f32.mxu0 %v1642
      %2413 = vmatmul.mubr.f32.gmra.mrb[0].mxu0 %v1416
      %v2414 = vpop.f32.mrb[0].mxu0
      %v2415 = vadd.f32 0.0, %v2414
      %v2416 = vpop.f32.mrb[0].mxu0
      %2417 = vmatprep.mubr.f32.mxu0 %v1645
      %2418 = vmatmul.mubr.f32.gmra.mrb[0].mxu0 %v1418
      %v2419 = vpop.f32.mrb[0].mxu0
      %v2420 = vadd.f32 0.0, %v2419
      %v2421 = vpop.f32.mrb[0].mxu0
      %2422 = vmatprep.mubr.f32.mxu0 %v1648
      %2423 = vmatmul.mubr.f32.gmra.mrb[0].mxu0 %v1420
      %v2424 = vpop.f32.mrb[0].mxu0
      %v2425 = vadd.f32 0.0, %v2424
      %v2426 = vpop.f32.mrb[0].mxu0
      %2427 = vmatprep.mubr.f32.mxu0 %v1651
      %2428 = vmatmul.mubr.f32.gmra.mrb[0].mxu0 %v1422
      %v2429 = vpop.f32.mrb[0].mxu0
      %v2430 = vadd.f32 0.0, %v2429
      %v2431 = vpop.f32.mrb[0].mxu0
      %2432 = vmatprep.mubr.f32.mxu0 %v1654
      %2433 = vmatmul.mubr.f32.gmra.mrb[0].mxu0 %v1424
      %v2434 = vpop.f32.mrb[0].mxu0
      %v2435 = vadd.f32 0.0, %v2434
      %v2436 = vpop.f32.mrb[0].mxu0
      %2437 = vmatprep.mubr.f32.mxu0 %v1657
      %2438 = vmatmul.mubr.f32.gmra.mrb[0].mxu0 %v1426
      %v2439 = vpop.f32.mrb[0].mxu0
      %v2440 = vadd.f32 0.0, %v2439
      %v2441 = vpop.f32.mrb[0].mxu0
      %2442 = vmatprep.mubr.f32.mxu0 %v1660
      %2443 = vmatmul.mubr.f32.gmra.mrb[0].mxu0 %v1428
      %v2444 = vpop.f32.mrb[0].mxu0
      %v2445 = vadd.f32 0.0, %v2444
      %v2446 = vpop.f32.mrb[0].mxu0
      %2447 = vmatprep.mubr.f32.mxu0 %v1663
      %2448 = vmatmul.mubr.f32.gmra.mrb[0].mxu0 %v1430
      %v2449 = vpop.f32.mrb[0].mxu0
      %v2450 = vadd.f32 0.0, %v2449
      %v2451 = vpop.f32.mrb[0].mxu0
      %2452 = vmatprep.mubr.f32.mxu0 %v1666
      %2453 = vmatmul.mubr.f32.gmra.mrb[0].mxu0 %v1432
      %v2454 = vpop.f32.mrb[0].mxu0
      %v2455 = vadd.f32 0.0, %v2454
      %v2456 = vpop.f32.mrb[0].mxu0
      %2457 = vmatprep.mubr.f32.mxu0 %v1669
      %2458 = vmatmul.mubr.f32.gmra.mrb[0].mxu0 %v1434
      %v2459 = vpop.f32.mrb[0].mxu0
      %v2460 = vadd.f32 0.0, %v2459
      %v2461 = vpop.f32.mrb[0].mxu0
      %2462 = vmatprep.mubr.f32.mxu0 %v1672
      %2463 = vmatmul.mubr.f32.gmra.mrb[0].mxu0 %v1436
      %v2464 = vpop.f32.mrb[0].mxu0
      %v2465 = vadd.f32 0.0, %v2464
      %v2466 = vpop.f32.mrb[0].mxu0
      %2467 = vmatprep.mubr.f32.mxu0 %v1675
      %2468 = vmatmul.mubr.f32.gmra.mrb[0].mxu0 %v1438
      %v2469 = vpop.f32.mrb[0].mxu0
      %v2470 = vadd.f32 0.0, %v2469
      %v2471 = vpop.f32.mrb[0].mxu0
      %2472 = vmatprep.mubr.f32.mxu0 %v1678
      %2473 = vmatmul.mubr.f32.gmra.mrb[0].mxu0 %v1440
      %v2474 = vpop.f32.mrb[0].mxu0
      %v2475 = vadd.f32 0.0, %v2474
      %v2476 = vpop.f32.mrb[0].mxu0
      %2477 = vmatprep.mubr.f32.mxu0 %v1681
      %2478 = vmatmul.mubr.f32.gmra.mrb[0].mxu0 %v1442
      %v2479 = vpop.f32.mrb[0].mxu0
      %v2480 = vadd.f32 0.0, %v2479
      %v2481 = vpop.f32.mrb[0].mxu0
      %2482 = vmatprep.mubr.f32.mxu0 %v1684
      %2483 = vmatmul.mubr.f32.gmra.mrb[0].mxu0 %v1444
      %v2484 = vpop.f32.mrb[0].mxu0
      %v2485 = vadd.f32 0.0, %v2484
      %v2486 = vpop.f32.mrb[0].mxu0
      %2487 = vmatprep.mubr.f32.mxu0 %v1687
      %2488 = vmatmul.mubr.f32.gmra.mrb[0].mxu0 %v1446
      %v2489 = vpop.f32.mrb[0].mxu0
      %v2490 = vadd.f32 0.0, %v2489
      %v2491 = vpop.f32.mrb[0].mxu0
      %2492 = vmatprep.mubr.f32.mxu0 %v1690
      %2493 = vmatmul.mubr.f32.gmra.mrb[0].mxu0 %v1448
      %v2494 = vpop.f32.mrb[0].mxu0
      %v2495 = vadd.f32 0.0, %v2494
      %v2496 = vpop.f32.mrb[0].mxu0
      %2497 = vmatprep.mubr.f32.mxu0 %v1693
      %2498 = vmatmul.mubr.f32.gmra.mrb[0].mxu0 %v1450
      %v2499 = vpop.f32.mrb[0].mxu0
      %v2500 = vadd.f32 0.0, %v2499
      %v2501 = vpop.f32.mrb[0].mxu0
      %2502 = vmatprep.mubr.f32.mxu0 %v1696
      %2503 = vmatmul.mubr.f32.gmra.mrb[0].mxu0 %v1452
      %v2504 = vpop.f32.mrb[0].mxu0
      %v2505 = vadd.f32 0.0, %v2504
      %v2506 = vpop.f32.mrb[0].mxu0
      %2507 = vmatprep.mubr.f32.mxu0 %v1699
      %2508 = vmatmul.mubr.f32.gmra.mrb[0].mxu0 %v1454
      %v2509 = vpop.f32.mrb[0].mxu0
      %v2510 = vadd.f32 0.0, %v2509
      %v2511 = vpop.f32.mrb[0].mxu0
      %2512 = vmatprep.mubr.f32.mxu0 %v1702
      %2513 = vmatmul.mubr.f32.gmra.mrb[0].mxu0 %v1456
      %v2514 = vpop.f32.mrb[0].mxu0
      %v2515 = vadd.f32 0.0, %v2514
      %v2516 = vpop.f32.mrb[0].mxu0
      %2517 = vmatprep.mubr.f32.mxu0 %v1705
      %2518 = vmatmul.mubr.f32.gmra.mrb[0].mxu0 %v1458
      %v2519 = vpop.f32.mrb[0].mxu0
      %v2520 = vadd.f32 0.0, %v2519
      %v2521 = vpop.f32.mrb[0].mxu0
      %2522 = vmatprep.mubr.f32.mxu0 %v1708
      %2523 = vmatmul.mubr.f32.gmra.mrb[0].mxu0 %v1460
      %v2524 = vpop.f32.mrb[0].mxu0
      %v2525 = vadd.f32 0.0, %v2524
      %v2526 = vpop.f32.mrb[0].mxu0
      %2527 = vmatprep.mubr.f32.mxu0 %v1711
      %2528 = vmatmul.mubr.f32.gmra.mrb[0].mxu0 %v1462
      %v2529 = vpop.f32.mrb[0].mxu0
      %v2530 = vadd.f32 0.0, %v2529
      %v2531 = vpop.f32.mrb[0].mxu0
      %2532 = vmatprep.mubr.f32.mxu0 %v1714
      %2533 = vmatmul.mubr.f32.gmra.mrb[0].mxu0 %v1464
      %v2534 = vpop.f32.mrb[0].mxu0
      %v2535 = vadd.f32 0.0, %v2534
      %v2536 = vpop.f32.mrb[0].mxu0
      %2537 = vmatprep.mubr.f32.mxu0 %v1717
      %2538 = vmatmul.mubr.f32.gmra.mrb[0].mxu0 %v1466
      %v2539 = vpop.f32.mrb[0].mxu0
      %v2540 = vadd.f32 0.0, %v2539
      %v2541 = vpop.f32.mrb[0].mxu0
      %2542 = vmatprep.mubr.f32.mxu0 %v1720
      %2543 = vmatmul.mubr.f32.gmra.mrb[0].mxu0 %v1468
      %v2544 = vpop.f32.mrb[0].mxu0
      %v2545 = vadd.f32 0.0, %v2544
      %v2546 = vpop.f32.mrb[0].mxu0
      %2547 = vmatprep.mubr.f32.mxu0 %v1723
      %2548 = vmatmul.mubr.f32.gmra.mrb[0].mxu0 %v1470
      %v2549 = vpop.f32.mrb[0].mxu0
      %v2550 = vadd.f32 0.0, %v2549
      %v2551 = vpop.f32.mrb[0].mxu0
      %2552 = vmatprep.mubr.f32.mxu0 %v1726
      %2553 = vmatmul.mubr.f32.gmra.mrb[0].mxu0 %v1472
      %v2554 = vpop.f32.mrb[0].mxu0
      %v2555 = vadd.f32 0.0, %v2554
      %v2556 = vpop.f32.mrb[0].mxu0
      %2557 = vmatprep.mubr.f32.mxu0 %v1729
      %2558 = vmatmul.mubr.f32.gmra.mrb[0].mxu0 %v1474
      %v2559 = vpop.f32.mrb[0].mxu0
      %v2560 = vadd.f32 0.0, %v2559
      %v2561 = vpop.f32.mrb[0].mxu0
      %2562 = vmatprep.mubr.f32.mxu0 %v1732
      %2563 = vmatmul.mubr.f32.gmra.mrb[0].mxu0 %v1476
      %v2564 = vpop.f32.mrb[0].mxu0
      %v2565 = vadd.f32 0.0, %v2564
      %v2566 = vpop.f32.mrb[0].mxu0
      %2567 = vdwg.mxu0
      %v2568 = vmax.f32 %v1801, 0.0
      %v2569 = vmax.f32 %v1803, 0.0
      %v2570 = vmax.f32 %v2250, 0.0
      %v2571 = vmax.f32 %v1807, 0.0
      %v2572 = vmax.f32 %v1809, 0.0
      %v2573 = vmax.f32 %v2255, 0.0
      %v2574 = vmax.f32 %v1813, 0.0
      %v2575 = vmax.f32 %v1815, 0.0
      %v2576 = vmax.f32 %v2260, 0.0
      %v2577 = vmax.f32 %v1819, 0.0
      %v2578 = vmax.f32 %v1821, 0.0
      %v2579 = vmax.f32 %v2265, 0.0
      %v2580 = vmax.f32 %v1825, 0.0
      %v2581 = vmax.f32 %v1827, 0.0
      %v2582 = vmax.f32 %v2270, 0.0
      %v2583 = vmax.f32 %v1831, 0.0
      %v2584 = vmax.f32 %v1833, 0.0
      %v2585 = vmax.f32 %v2275, 0.0
      %v2586 = vmax.f32 %v1837, 0.0
      %v2587 = vmax.f32 %v1839, 0.0
      %v2588 = vmax.f32 %v2280, 0.0
      %v2589 = vmax.f32 %v1843, 0.0
      %v2590 = vmax.f32 %v1845, 0.0
      %v2591 = vmax.f32 %v2285, 0.0
      %v2592 = vmax.f32 %v1849, 0.0
      %v2593 = vmax.f32 %v1851, 0.0
      %v2594 = vmax.f32 %v2290, 0.0
      %v2595 = vmax.f32 %v1855, 0.0
      %v2596 = vmax.f32 %v1857, 0.0
      %v2597 = vmax.f32 %v2295, 0.0
      %v2598 = vmax.f32 %v1861, 0.0
      %v2599 = vmax.f32 %v1863, 0.0
      %v2600 = vmax.f32 %v2300, 0.0
      %v2601 = vmax.f32 %v1867, 0.0
      %v2602 = vmax.f32 %v1869, 0.0
      %v2603 = vmax.f32 %v2305, 0.0
      %v2604 = vmax.f32 %v1873, 0.0
      %v2605 = vmax.f32 %v1875, 0.0
      %v2606 = vmax.f32 %v2310, 0.0
      %v2607 = vmax.f32 %v1879, 0.0
      %v2608 = vmax.f32 %v1881, 0.0
      %v2609 = vmax.f32 %v2315, 0.0
      %v2610 = vmax.f32 %v1885, 0.0
      %v2611 = vmax.f32 %v1887, 0.0
      %v2612 = vmax.f32 %v2320, 0.0
      %v2613 = vmax.f32 %v1891, 0.0
      %v2614 = vmax.f32 %v1893, 0.0
      %v2615 = vmax.f32 %v2325, 0.0
      %v2616 = vmax.f32 %v1897, 0.0
      %v2617 = vmax.f32 %v1899, 0.0
      %v2618 = vmax.f32 %v2330, 0.0
      %v2619 = vmax.f32 %v1903, 0.0
      %v2620 = vmax.f32 %v1905, 0.0
      %v2621 = vmax.f32 %v2335, 0.0
      %v2622 = vmax.f32 %v1909, 0.0
      %v2623 = vmax.f32 %v1911, 0.0
      %v2624 = vmax.f32 %v2340, 0.0
      %v2625 = vmax.f32 %v1915, 0.0
      %v2626 = vmax.f32 %v1917, 0.0
      %v2627 = vmax.f32 %v2345, 0.0
      %v2628 = vmax.f32 %v1921, 0.0
      %v2629 = vmax.f32 %v1923, 0.0
      %v2630 = vmax.f32 %v2350, 0.0
      %v2631 = vmax.f32 %v1927, 0.0
      %v2632 = vmax.f32 %v1929, 0.0
      %v2633 = vmax.f32 %v2355, 0.0
      %v2634 = vmax.f32 %v1933, 0.0
      %v2635 = vmax.f32 %v1935, 0.0
      %v2636 = vmax.f32 %v2360, 0.0
      %v2637 = vmax.f32 %v1939, 0.0
      %v2638 = vmax.f32 %v1941, 0.0
      %v2639 = vmax.f32 %v2365, 0.0
      %v2640 = vmax.f32 %v1945, 0.0
      %v2641 = vmax.f32 %v1947, 0.0
      %v2642 = vmax.f32 %v2370, 0.0
      %v2643 = vmax.f32 %v1951, 0.0
      %v2644 = vmax.f32 %v1953, 0.0
      %v2645 = vmax.f32 %v2375, 0.0
      %v2646 = vmax.f32 %v1957, 0.0
      %v2647 = vmax.f32 %v1959, 0.0
      %v2648 = vmax.f32 %v2380, 0.0
      %v2649 = vmax.f32 %v1963, 0.0
      %v2650 = vmax.f32 %v1965, 0.0
      %v2651 = vmax.f32 %v2385, 0.0
      %v2652 = vmax.f32 %v1969, 0.0
      %v2653 = vmax.f32 %v1971, 0.0
      %v2654 = vmax.f32 %v2390, 0.0
      %v2655 = vmax.f32 %v1975, 0.0
      %v2656 = vmax.f32 %v1977, 0.0
      %v2657 = vmax.f32 %v2395, 0.0
      %v2658 = vmax.f32 %v1981, 0.0
      %v2659 = vmax.f32 %v1983, 0.0
      %v2660 = vmax.f32 %v2400, 0.0
      %v2661 = vmax.f32 %v1987, 0.0
      %v2662 = vmax.f32 %v1989, 0.0
      %v2663 = vmax.f32 %v2405, 0.0
      %v2664 = vmax.f32 %v1993, 0.0
      %v2665 = vmax.f32 %v1995, 0.0
      %v2666 = vmax.f32 %v2410, 0.0
      %v2667 = vmax.f32 %v1999, 0.0
      %v2668 = vmax.f32 %v2001, 0.0
      %v2669 = vmax.f32 %v2415, 0.0
      %v2670 = vmax.f32 %v2005, 0.0
      %v2671 = vmax.f32 %v2007, 0.0
      %v2672 = vmax.f32 %v2420, 0.0
      %v2673 = vmax.f32 %v2011, 0.0
      %v2674 = vmax.f32 %v2013, 0.0
      %v2675 = vmax.f32 %v2425, 0.0
      %v2676 = vmax.f32 %v2017, 0.0
      %v2677 = vmax.f32 %v2019, 0.0
      %v2678 = vmax.f32 %v2430, 0.0
      %v2679 = vmax.f32 %v2023, 0.0
      %v2680 = vmax.f32 %v2025, 0.0
      %v2681 = vmax.f32 %v2435, 0.0
      %v2682 = vmax.f32 %v2029, 0.0
      %v2683 = vmax.f32 %v2031, 0.0
      %v2684 = vmax.f32 %v2440, 0.0
      %v2685 = vmax.f32 %v2035, 0.0
      %v2686 = vmax.f32 %v2037, 0.0
      %v2687 = vmax.f32 %v2445, 0.0
      %v2688 = vmax.f32 %v2041, 0.0
      %v2689 = vmax.f32 %v2043, 0.0
      %v2690 = vmax.f32 %v2450, 0.0
      %v2691 = vmax.f32 %v2047, 0.0
      %v2692 = vmax.f32 %v2049, 0.0
      %v2693 = vmax.f32 %v2455, 0.0
      %v2694 = vmax.f32 %v2053, 0.0
      %v2695 = vmax.f32 %v2055, 0.0
      %v2696 = vmax.f32 %v2460, 0.0
      %v2697 = vmax.f32 %v2059, 0.0
      %v2698 = vmax.f32 %v2061, 0.0
      %v2699 = vmax.f32 %v2465, 0.0
      %v2700 = vmax.f32 %v2065, 0.0
      %v2701 = vmax.f32 %v2067, 0.0
      %v2702 = vmax.f32 %v2470, 0.0
      %v2703 = vmax.f32 %v2071, 0.0
      %v2704 = vmax.f32 %v2073, 0.0
      %v2705 = vmax.f32 %v2475, 0.0
      %v2706 = vmax.f32 %v2077, 0.0
      %v2707 = vmax.f32 %v2079, 0.0
      %v2708 = vmax.f32 %v2480, 0.0
      %v2709 = vmax.f32 %v2083, 0.0
      %v2710 = vmax.f32 %v2085, 0.0
      %v2711 = vmax.f32 %v2485, 0.0
      %v2712 = vmax.f32 %v2089, 0.0
      %v2713 = vmax.f32 %v2091, 0.0
      %v2714 = vmax.f32 %v2490, 0.0
      %v2715 = vmax.f32 %v2095, 0.0
      %v2716 = vmax.f32 %v2097, 0.0
      %v2717 = vmax.f32 %v2495, 0.0
      %v2718 = vmax.f32 %v2101, 0.0
      %v2719 = vmax.f32 %v2103, 0.0
      %v2720 = vmax.f32 %v2500, 0.0
      %v2721 = vmax.f32 %v2107, 0.0
      %v2722 = vmax.f32 %v2109, 0.0
      %v2723 = vmax.f32 %v2505, 0.0
      %v2724 = vmax.f32 %v2113, 0.0
      %v2725 = vmax.f32 %v2115, 0.0
      %v2726 = vmax.f32 %v2510, 0.0
      %v2727 = vmax.f32 %v2119, 0.0
      %v2728 = vmax.f32 %v2121, 0.0
      %v2729 = vmax.f32 %v2515, 0.0
      %v2730 = vmax.f32 %v2125, 0.0
      %v2731 = vmax.f32 %v2127, 0.0
      %v2732 = vmax.f32 %v2520, 0.0
      %v2733 = vmax.f32 %v2131, 0.0
      %v2734 = vmax.f32 %v2133, 0.0
      %v2735 = vmax.f32 %v2525, 0.0
      %v2736 = vmax.f32 %v2137, 0.0
      %v2737 = vmax.f32 %v2139, 0.0
      %v2738 = vmax.f32 %v2530, 0.0
      %v2739 = vmax.f32 %v2143, 0.0
      %v2740 = vmax.f32 %v2145, 0.0
      %v2741 = vmax.f32 %v2535, 0.0
      %v2742 = vmax.f32 %v2149, 0.0
      %v2743 = vmax.f32 %v2151, 0.0
      %v2744 = vmax.f32 %v2540, 0.0
      %v2745 = vmax.f32 %v2155, 0.0
      %v2746 = vmax.f32 %v2157, 0.0
      %v2747 = vmax.f32 %v2545, 0.0
      %v2748 = vmax.f32 %v2161, 0.0
      %v2749 = vmax.f32 %v2163, 0.0
      %v2750 = vmax.f32 %v2550, 0.0
      %v2751 = vmax.f32 %v2167, 0.0
      %v2752 = vmax.f32 %v2169, 0.0
      %v2753 = vmax.f32 %v2555, 0.0
      %v2754 = vmax.f32 %v2173, 0.0
      %v2755 = vmax.f32 %v2175, 0.0
      %v2756 = vmax.f32 %v2560, 0.0
      %v2757 = vmax.f32 %v2179, 0.0
      %v2758 = vmax.f32 %v2181, 0.0
      %v2759 = vmax.f32 %v2565, 0.0
      %v2760 = vld [vmem:[%s2] sm:$0xff]
      %v2761 = vld [vmem:[%s2 + $0x8] sm:$0xff]
      %v2762 = vld [vmem:[%s2 + $0x10] sm:$0xff]
      %v2763 = vld [vmem:[%s2 + $0x18] sm:$0xff]
      %v2764 = vld [vmem:[%s2 + $0x20] sm:$0xff]
      %v2765 = vld [vmem:[%s2 + $0x28] sm:$0xff]
      %v2766 = vld [vmem:[%s2 + $0x30] sm:$0xff]
      %v2767 = vld [vmem:[%s2 + $0x38] sm:$0xff]
      %v2768 = vld [vmem:[%s2 + $0x40] sm:$0xff]
      %v2769 = vld [vmem:[%s2 + $0x48] sm:$0xff]
      %v2770 = vld [vmem:[%s2 + $0x50] sm:$0xff]
      %v2771 = vld [vmem:[%s2 + $0x58] sm:$0xff]
      %v2772 = vld [vmem:[%s2 + $0x60] sm:$0xff]
      %v2773 = vld [vmem:[%s2 + $0x68] sm:$0xff]
      %v2774 = vld [vmem:[%s2 + $0x70] sm:$0xff]
      %v2775 = vld [vmem:[%s2 + $0x78] sm:$0xff]
      %v2776 = vld [vmem:[%s2 + $0x80] sm:$0xff]
      %v2777 = vld [vmem:[%s2 + $0x88] sm:$0xff]
      %v2778 = vld [vmem:[%s2 + $0x90] sm:$0xff]
      %v2779 = vld [vmem:[%s2 + $0x98] sm:$0xff]
      %v2780 = vld [vmem:[%s2 + $0xa0] sm:$0xff]
      %v2781 = vld [vmem:[%s2 + $0xa8] sm:$0xff]
      %v2782 = vld [vmem:[%s2 + $0xb0] sm:$0xff]
      %v2783 = vld [vmem:[%s2 + $0xb8] sm:$0xff]
      %v2784 = vld [vmem:[%s2 + $0xc0] sm:$0xff]
      %v2785 = vld [vmem:[%s2 + $0xc8] sm:$0xff]
      %v2786 = vld [vmem:[%s2 + $0xd0] sm:$0xff]
      %v2787 = vld [vmem:[%s2 + $0xd8] sm:$0xff]
      %v2788 = vld [vmem:[%s2 + $0xe0] sm:$0xff]
      %v2789 = vld [vmem:[%s2 + $0xe8] sm:$0xff]
      %v2790 = vld [vmem:[%s2 + $0xf0] sm:$0xff]
      %v2791 = vld [vmem:[%s2 + $0xf8] sm:$0xff]
      %v2792 = vld [vmem:[%s2 + $0x100] sm:$0xff]
      %v2793 = vld [vmem:[%s2 + $0x108] sm:$0xff]
      %v2794 = vld [vmem:[%s2 + $0x110] sm:$0xff]
      %v2795 = vld [vmem:[%s2 + $0x118] sm:$0xff]
      %v2796 = vld [vmem:[%s2 + $0x120] sm:$0xff]
      %v2797 = vld [vmem:[%s2 + $0x128] sm:$0xff]
      %v2798 = vld [vmem:[%s2 + $0x130] sm:$0xff]
      %v2799 = vld [vmem:[%s2 + $0x138] sm:$0xff]
      %v2800 = vld [vmem:[%s2 + $0x140] sm:$0xff]
      %v2801 = vld [vmem:[%s2 + $0x148] sm:$0xff]
      %v2802 = vld [vmem:[%s2 + $0x150] sm:$0xff]
      %v2803 = vld [vmem:[%s2 + $0x158] sm:$0xff]
      %v2804 = vld [vmem:[%s2 + $0x160] sm:$0xff]
      %v2805 = vld [vmem:[%s2 + $0x168] sm:$0xff]
      %v2806 = vld [vmem:[%s2 + $0x170] sm:$0xff]
      %v2807 = vld [vmem:[%s2 + $0x178] sm:$0xff]
      %v2808 = vld [vmem:[%s2 + $0x180] sm:$0xff]
      %v2809 = vld [vmem:[%s2 + $0x188] sm:$0xff]
      %v2810 = vld [vmem:[%s2 + $0x190] sm:$0xff]
      %v2811 = vld [vmem:[%s2 + $0x198] sm:$0xff]
      %v2812 = vld [vmem:[%s2 + $0x1a0] sm:$0xff]
      %v2813 = vld [vmem:[%s2 + $0x1a8] sm:$0xff]
      %v2814 = vld [vmem:[%s2 + $0x1b0] sm:$0xff]
      %v2815 = vld [vmem:[%s2 + $0x1b8] sm:$0xff]
      %v2816 = vld [vmem:[%s2 + $0x1c0] sm:$0xff]
      %v2817 = vld [vmem:[%s2 + $0x1c8] sm:$0xff]
      %v2818 = vld [vmem:[%s2 + $0x1d0] sm:$0xff]
      %v2819 = vld [vmem:[%s2 + $0x1d8] sm:$0xff]
      %v2820 = vld [vmem:[%s2 + $0x1e0] sm:$0xff]
      %v2821 = vld [vmem:[%s2 + $0x1e8] sm:$0xff]
      %v2822 = vld [vmem:[%s2 + $0x1f0] sm:$0xff]
      %v2823 = vld [vmem:[%s2 + $0x1f8] sm:$0xff]
      %v2824 = vld [vmem:[%s2 + $0x200] sm:$0xff]
      %v2825 = vld [vmem:[%s2 + $0x208] sm:$0xff]
      %v2826 = vld [vmem:[%s2 + $0x210] sm:$0xff]
      %v2827 = vld [vmem:[%s2 + $0x218] sm:$0xff]
      %v2828 = vld [vmem:[%s2 + $0x220] sm:$0xff]
      %v2829 = vld [vmem:[%s2 + $0x228] sm:$0xff]
      %v2830 = vld [vmem:[%s2 + $0x230] sm:$0xff]
      %v2831 = vld [vmem:[%s2 + $0x238] sm:$0xff]
      %v2832 = vld [vmem:[%s2 + $0x240] sm:$0xff]
      %v2833 = vld [vmem:[%s2 + $0x248] sm:$0xff]
      %v2834 = vld [vmem:[%s2 + $0x250] sm:$0xff]
      %v2835 = vld [vmem:[%s2 + $0x258] sm:$0xff]
      %v2836 = vld [vmem:[%s2 + $0x260] sm:$0xff]
      %v2837 = vld [vmem:[%s2 + $0x268] sm:$0xff]
      %v2838 = vld [vmem:[%s2 + $0x270] sm:$0xff]
      %v2839 = vld [vmem:[%s2 + $0x278] sm:$0xff]
      %v2840 = vld [vmem:[%s2 + $0x280] sm:$0xff]
      %v2841 = vld [vmem:[%s2 + $0x288] sm:$0xff]
      %v2842 = vld [vmem:[%s2 + $0x290] sm:$0xff]
      %v2843 = vld [vmem:[%s2 + $0x298] sm:$0xff]
      %v2844 = vld [vmem:[%s2 + $0x2a0] sm:$0xff]
      %v2845 = vld [vmem:[%s2 + $0x2a8] sm:$0xff]
      %v2846 = vld [vmem:[%s2 + $0x2b0] sm:$0xff]
      %v2847 = vld [vmem:[%s2 + $0x2b8] sm:$0xff]
      %v2848 = vld [vmem:[%s2 + $0x2c0] sm:$0xff]
      %v2849 = vld [vmem:[%s2 + $0x2c8] sm:$0xff]
      %v2850 = vld [vmem:[%s2 + $0x2d0] sm:$0xff]
      %v2851 = vld [vmem:[%s2 + $0x2d8] sm:$0xff]
      %v2852 = vld [vmem:[%s2 + $0x2e0] sm:$0xff]
      %v2853 = vld [vmem:[%s2 + $0x2e8] sm:$0xff]
      %v2854 = vld [vmem:[%s2 + $0x2f0] sm:$0xff]
      %v2855 = vld [vmem:[%s2 + $0x2f8] sm:$0xff]
      %v2856 = vld [vmem:[%s2 + $0x300] sm:$0xff]
      %v2857 = vld [vmem:[%s2 + $0x308] sm:$0xff]
      %v2858 = vld [vmem:[%s2 + $0x310] sm:$0xff]
      %v2859 = vld [vmem:[%s2 + $0x318] sm:$0xff]
      %v2860 = vld [vmem:[%s2 + $0x320] sm:$0xff]
      %v2861 = vld [vmem:[%s2 + $0x328] sm:$0xff]
      %v2862 = vld [vmem:[%s2 + $0x330] sm:$0xff]
      %v2863 = vld [vmem:[%s2 + $0x338] sm:$0xff]
      %v2864 = vld [vmem:[%s2 + $0x340] sm:$0xff]
      %v2865 = vld [vmem:[%s2 + $0x348] sm:$0xff]
      %v2866 = vld [vmem:[%s2 + $0x350] sm:$0xff]
      %v2867 = vld [vmem:[%s2 + $0x358] sm:$0xff]
      %v2868 = vld [vmem:[%s2 + $0x360] sm:$0xff]
      %v2869 = vld [vmem:[%s2 + $0x368] sm:$0xff]
      %v2870 = vld [vmem:[%s2 + $0x370] sm:$0xff]
      %v2871 = vld [vmem:[%s2 + $0x378] sm:$0xff]
      %v2872 = vld [vmem:[%s2 + $0x380] sm:$0xff]
      %v2873 = vld [vmem:[%s2 + $0x388] sm:$0xff]
      %v2874 = vld [vmem:[%s2 + $0x390] sm:$0xff]
      %v2875 = vld [vmem:[%s2 + $0x398] sm:$0xff]
      %v2876 = vld [vmem:[%s2 + $0x3a0] sm:$0xff]
      %v2877 = vld [vmem:[%s2 + $0x3a8] sm:$0xff]
      %v2878 = vld [vmem:[%s2 + $0x3b0] sm:$0xff]
      %v2879 = vld [vmem:[%s2 + $0x3b8] sm:$0xff]
      %v2880 = vld [vmem:[%s2 + $0x3c0] sm:$0xff]
      %v2881 = vld [vmem:[%s2 + $0x3c8] sm:$0xff]
      %v2882 = vld [vmem:[%s2 + $0x3d0] sm:$0xff]
      %v2883 = vld [vmem:[%s2 + $0x3d8] sm:$0xff]
      %v2884 = vld [vmem:[%s2 + $0x3e0] sm:$0xff]
      %v2885 = vld [vmem:[%s2 + $0x3e8] sm:$0xff]
      %v2886 = vld [vmem:[%s2 + $0x3f0] sm:$0xff]
      %v2887 = vld [vmem:[%s2 + $0x3f8] sm:$0xff]
      %2888 = vmatprep.subr.mxu0 %v2569
      %2889 = vmatpush1.msra.mxu0 %v2568
      %2890 = vmatprep.subr.mxu0 %v2572
      %2891 = vmatpush1.msra.mxu0 %v2571
      %2892 = vmatprep.subr.mxu0 %v2575
      %2893 = vmatpush1.msra.mxu0 %v2574
      %2894 = vmatprep.subr.mxu0 %v2578
      %2895 = vmatpush1.msra.mxu0 %v2577
      %2896 = vmatprep.subr.mxu0 %v2581
      %2897 = vmatpush1.msra.mxu0 %v2580
      %2898 = vmatprep.subr.mxu0 %v2584
      %2899 = vmatpush1.msra.mxu0 %v2583
      %2900 = vmatprep.subr.mxu0 %v2587
      %2901 = vmatpush1.msra.mxu0 %v2586
      %2902 = vmatprep.subr.mxu0 %v2590
      %2903 = vmatpush1.msra.mxu0 %v2589
      %2904 = vmatprep.subr.mxu0 %v2593
      %2905 = vmatpush1.msra.mxu0 %v2592
      %2906 = vmatprep.subr.mxu0 %v2596
      %2907 = vmatpush1.msra.mxu0 %v2595
      %2908 = vmatprep.subr.mxu0 %v2599
      %2909 = vmatpush1.msra.mxu0 %v2598
      %2910 = vmatprep.subr.mxu0 %v2602
      %2911 = vmatpush1.msra.mxu0 %v2601
      %2912 = vmatprep.subr.mxu0 %v2605
      %2913 = vmatpush1.msra.mxu0 %v2604
      %2914 = vmatprep.subr.mxu0 %v2608
      %2915 = vmatpush1.msra.mxu0 %v2607
      %2916 = vmatprep.subr.mxu0 %v2611
      %2917 = vmatpush1.msra.mxu0 %v2610
      %2918 = vmatprep.subr.mxu0 %v2614
      %2919 = vmatpush1.msra.mxu0 %v2613
      %2920 = vmatprep.subr.mxu0 %v2617
      %2921 = vmatpush1.msra.mxu0 %v2616
      %2922 = vmatprep.subr.mxu0 %v2620
      %2923 = vmatpush1.msra.mxu0 %v2619
      %2924 = vmatprep.subr.mxu0 %v2623
      %2925 = vmatpush1.msra.mxu0 %v2622
      %2926 = vmatprep.subr.mxu0 %v2626
      %2927 = vmatpush1.msra.mxu0 %v2625
      %2928 = vmatprep.subr.mxu0 %v2629
      %2929 = vmatpush1.msra.mxu0 %v2628
      %2930 = vmatprep.subr.mxu0 %v2632
      %2931 = vmatpush1.msra.mxu0 %v2631
      %2932 = vmatprep.subr.mxu0 %v2635
      %2933 = vmatpush1.msra.mxu0 %v2634
      %2934 = vmatprep.subr.mxu0 %v2638
      %2935 = vmatpush1.msra.mxu0 %v2637
      %2936 = vmatprep.subr.mxu0 %v2641
      %2937 = vmatpush1.msra.mxu0 %v2640
      %2938 = vmatprep.subr.mxu0 %v2644
      %2939 = vmatpush1.msra.mxu0 %v2643
      %2940 = vmatprep.subr.mxu0 %v2647
      %2941 = vmatpush1.msra.mxu0 %v2646
      %2942 = vmatprep.subr.mxu0 %v2650
      %2943 = vmatpush1.msra.mxu0 %v2649
      %2944 = vmatprep.subr.mxu0 %v2653
      %2945 = vmatpush1.msra.mxu0 %v2652
      %2946 = vmatprep.subr.mxu0 %v2656
      %2947 = vmatpush1.msra.mxu0 %v2655
      %2948 = vmatprep.subr.mxu0 %v2659
      %2949 = vmatpush1.msra.mxu0 %v2658
      %2950 = vmatprep.subr.mxu0 %v2662
      %2951 = vmatpush1.msra.mxu0 %v2661
      %2952 = vmatprep.mubr.f32.mxu0 %v2761
      %2953 = vmatmul.mubr.f32.gmra.mrb[0].mxu0 %v2760
      %v2954 = vpop.f32.mrb[0].mxu0
      %v2955 = vadd.f32 0.0, %v2954
      %v2956 = vpop.f32.mrb[0].mxu0
      %v2957 = vadd.f32 0.0, %v2956
      %2958 = vmatprep.mubr.f32.mxu0 %v2765
      %2959 = vmatmul.mubr.f32.gmra.mrb[0].mxu0 %v2764
      %v2960 = vpop.f32.mrb[0].mxu0
      %v2961 = vadd.f32 0.0, %v2960
      %v2962 = vpop.f32.mrb[0].mxu0
      %v2963 = vadd.f32 0.0, %v2962
      %2964 = vmatprep.mubr.f32.mxu0 %v2769
      %2965 = vmatmul.mubr.f32.gmra.mrb[0].mxu0 %v2768
      %v2966 = vpop.f32.mrb[0].mxu0
      %v2967 = vadd.f32 0.0, %v2966
      %v2968 = vpop.f32.mrb[0].mxu0
      %v2969 = vadd.f32 0.0, %v2968
      %2970 = vmatprep.mubr.f32.mxu0 %v2773
      %2971 = vmatmul.mubr.f32.gmra.mrb[0].mxu0 %v2772
      %v2972 = vpop.f32.mrb[0].mxu0
      %v2973 = vadd.f32 0.0, %v2972
      %v2974 = vpop.f32.mrb[0].mxu0
      %v2975 = vadd.f32 0.0, %v2974
      %2976 = vmatprep.mubr.f32.mxu0 %v2777
      %2977 = vmatmul.mubr.f32.gmra.mrb[0].mxu0 %v2776
      %v2978 = vpop.f32.mrb[0].mxu0
      %v2979 = vadd.f32 0.0, %v2978
      %v2980 = vpop.f32.mrb[0].mxu0
      %v2981 = vadd.f32 0.0, %v2980
      %2982 = vmatprep.mubr.f32.mxu0 %v2781
      %2983 = vmatmul.mubr.f32.gmra.mrb[0].mxu0 %v2780
      %v2984 = vpop.f32.mrb[0].mxu0
      %v2985 = vadd.f32 0.0, %v2984
      %v2986 = vpop.f32.mrb[0].mxu0
      %v2987 = vadd.f32 0.0, %v2986
      %2988 = vmatprep.mubr.f32.mxu0 %v2785
      %2989 = vmatmul.mubr.f32.gmra.mrb[0].mxu0 %v2784
      %v2990 = vpop.f32.mrb[0].mxu0
      %v2991 = vadd.f32 0.0, %v2990
      %v2992 = vpop.f32.mrb[0].mxu0
      %v2993 = vadd.f32 0.0, %v2992
      %2994 = vmatprep.mubr.f32.mxu0 %v2789
      %2995 = vmatmul.mubr.f32.gmra.mrb[0].mxu0 %v2788
      %v2996 = vpop.f32.mrb[0].mxu0
      %v2997 = vadd.f32 0.0, %v2996
      %v2998 = vpop.f32.mrb[0].mxu0
      %v2999 = vadd.f32 0.0, %v2998
      %3000 = vmatprep.mubr.f32.mxu0 %v2793
      %3001 = vmatmul.mubr.f32.gmra.mrb[0].mxu0 %v2792
      %v3002 = vpop.f32.mrb[0].mxu0
      %v3003 = vadd.f32 0.0, %v3002
      %v3004 = vpop.f32.mrb[0].mxu0
      %v3005 = vadd.f32 0.0, %v3004
      %3006 = vmatprep.mubr.f32.mxu0 %v2797
      %3007 = vmatmul.mubr.f32.gmra.mrb[0].mxu0 %v2796
      %v3008 = vpop.f32.mrb[0].mxu0
      %v3009 = vadd.f32 0.0, %v3008
      %v3010 = vpop.f32.mrb[0].mxu0
      %v3011 = vadd.f32 0.0, %v3010
      %3012 = vmatprep.mubr.f32.mxu0 %v2801
      %3013 = vmatmul.mubr.f32.gmra.mrb[0].mxu0 %v2800
      %v3014 = vpop.f32.mrb[0].mxu0
      %v3015 = vadd.f32 0.0, %v3014
      %v3016 = vpop.f32.mrb[0].mxu0
      %v3017 = vadd.f32 0.0, %v3016
      %3018 = vmatprep.mubr.f32.mxu0 %v2805
      %3019 = vmatmul.mubr.f32.gmra.mrb[0].mxu0 %v2804
      %v3020 = vpop.f32.mrb[0].mxu0
      %v3021 = vadd.f32 0.0, %v3020
      %v3022 = vpop.f32.mrb[0].mxu0
      %v3023 = vadd.f32 0.0, %v3022
      %3024 = vmatprep.mubr.f32.mxu0 %v2809
      %3025 = vmatmul.mubr.f32.gmra.mrb[0].mxu0 %v2808
      %v3026 = vpop.f32.mrb[0].mxu0
      %v3027 = vadd.f32 0.0, %v3026
      %v3028 = vpop.f32.mrb[0].mxu0
      %v3029 = vadd.f32 0.0, %v3028
      %3030 = vmatprep.mubr.f32.mxu0 %v2813
      %3031 = vmatmul.mubr.f32.gmra.mrb[0].mxu0 %v2812
      %v3032 = vpop.f32.mrb[0].mxu0
      %v3033 = vadd.f32 0.0, %v3032
      %v3034 = vpop.f32.mrb[0].mxu0
      %v3035 = vadd.f32 0.0, %v3034
      %3036 = vmatprep.mubr.f32.mxu0 %v2817
      %3037 = vmatmul.mubr.f32.gmra.mrb[0].mxu0 %v2816
      %v3038 = vpop.f32.mrb[0].mxu0
      %v3039 = vadd.f32 0.0, %v3038
      %v3040 = vpop.f32.mrb[0].mxu0
      %v3041 = vadd.f32 0.0, %v3040
      %3042 = vmatprep.mubr.f32.mxu0 %v2821
      %3043 = vmatmul.mubr.f32.gmra.mrb[0].mxu0 %v2820
      %v3044 = vpop.f32.mrb[0].mxu0
      %v3045 = vadd.f32 0.0, %v3044
      %v3046 = vpop.f32.mrb[0].mxu0
      %v3047 = vadd.f32 0.0, %v3046
      %3048 = vmatprep.mubr.f32.mxu0 %v2825
      %3049 = vmatmul.mubr.f32.gmra.mrb[0].mxu0 %v2824
      %v3050 = vpop.f32.mrb[0].mxu0
      %v3051 = vadd.f32 0.0, %v3050
      %v3052 = vpop.f32.mrb[0].mxu0
      %v3053 = vadd.f32 0.0, %v3052
      %3054 = vmatprep.mubr.f32.mxu0 %v2829
      %3055 = vmatmul.mubr.f32.gmra.mrb[0].mxu0 %v2828
      %v3056 = vpop.f32.mrb[0].mxu0
      %v3057 = vadd.f32 0.0, %v3056
      %v3058 = vpop.f32.mrb[0].mxu0
      %v3059 = vadd.f32 0.0, %v3058
      %3060 = vmatprep.mubr.f32.mxu0 %v2833
      %3061 = vmatmul.mubr.f32.gmra.mrb[0].mxu0 %v2832
      %v3062 = vpop.f32.mrb[0].mxu0
      %v3063 = vadd.f32 0.0, %v3062
      %v3064 = vpop.f32.mrb[0].mxu0
      %v3065 = vadd.f32 0.0, %v3064
      %3066 = vmatprep.mubr.f32.mxu0 %v2837
      %3067 = vmatmul.mubr.f32.gmra.mrb[0].mxu0 %v2836
      %v3068 = vpop.f32.mrb[0].mxu0
      %v3069 = vadd.f32 0.0, %v3068
      %v3070 = vpop.f32.mrb[0].mxu0
      %v3071 = vadd.f32 0.0, %v3070
      %3072 = vmatprep.mubr.f32.mxu0 %v2841
      %3073 = vmatmul.mubr.f32.gmra.mrb[0].mxu0 %v2840
      %v3074 = vpop.f32.mrb[0].mxu0
      %v3075 = vadd.f32 0.0, %v3074
      %v3076 = vpop.f32.mrb[0].mxu0
      %v3077 = vadd.f32 0.0, %v3076
      %3078 = vmatprep.mubr.f32.mxu0 %v2845
      %3079 = vmatmul.mubr.f32.gmra.mrb[0].mxu0 %v2844
      %v3080 = vpop.f32.mrb[0].mxu0
      %v3081 = vadd.f32 0.0, %v3080
      %v3082 = vpop.f32.mrb[0].mxu0
      %v3083 = vadd.f32 0.0, %v3082
      %3084 = vmatprep.mubr.f32.mxu0 %v2849
      %3085 = vmatmul.mubr.f32.gmra.mrb[0].mxu0 %v2848
      %v3086 = vpop.f32.mrb[0].mxu0
      %v3087 = vadd.f32 0.0, %v3086
      %v3088 = vpop.f32.mrb[0].mxu0
      %v3089 = vadd.f32 0.0, %v3088
      %3090 = vmatprep.mubr.f32.mxu0 %v2853
      %3091 = vmatmul.mubr.f32.gmra.mrb[0].mxu0 %v2852
      %v3092 = vpop.f32.mrb[0].mxu0
      %v3093 = vadd.f32 0.0, %v3092
      %v3094 = vpop.f32.mrb[0].mxu0
      %v3095 = vadd.f32 0.0, %v3094
      %3096 = vmatprep.mubr.f32.mxu0 %v2857
      %3097 = vmatmul.mubr.f32.gmra.mrb[0].mxu0 %v2856
      %v3098 = vpop.f32.mrb[0].mxu0
      %v3099 = vadd.f32 0.0, %v3098
      %v3100 = vpop.f32.mrb[0].mxu0
      %v3101 = vadd.f32 0.0, %v3100
      %3102 = vmatprep.mubr.f32.mxu0 %v2861
      %3103 = vmatmul.mubr.f32.gmra.mrb[0].mxu0 %v2860
      %v3104 = vpop.f32.mrb[0].mxu0
      %v3105 = vadd.f32 0.0, %v3104
      %v3106 = vpop.f32.mrb[0].mxu0
      %v3107 = vadd.f32 0.0, %v3106
      %3108 = vmatprep.mubr.f32.mxu0 %v2865
      %3109 = vmatmul.mubr.f32.gmra.mrb[0].mxu0 %v2864
      %v3110 = vpop.f32.mrb[0].mxu0
      %v3111 = vadd.f32 0.0, %v3110
      %v3112 = vpop.f32.mrb[0].mxu0
      %v3113 = vadd.f32 0.0, %v3112
      %3114 = vmatprep.mubr.f32.mxu0 %v2869
      %3115 = vmatmul.mubr.f32.gmra.mrb[0].mxu0 %v2868
      %v3116 = vpop.f32.mrb[0].mxu0
      %v3117 = vadd.f32 0.0, %v3116
      %v3118 = vpop.f32.mrb[0].mxu0
      %v3119 = vadd.f32 0.0, %v3118
      %3120 = vmatprep.mubr.f32.mxu0 %v2873
      %3121 = vmatmul.mubr.f32.gmra.mrb[0].mxu0 %v2872
      %v3122 = vpop.f32.mrb[0].mxu0
      %v3123 = vadd.f32 0.0, %v3122
      %v3124 = vpop.f32.mrb[0].mxu0
      %v3125 = vadd.f32 0.0, %v3124
      %3126 = vmatprep.mubr.f32.mxu0 %v2877
      %3127 = vmatmul.mubr.f32.gmra.mrb[0].mxu0 %v2876
      %v3128 = vpop.f32.mrb[0].mxu0
      %v3129 = vadd.f32 0.0, %v3128
      %v3130 = vpop.f32.mrb[0].mxu0
      %v3131 = vadd.f32 0.0, %v3130
      %3132 = vmatprep.mubr.f32.mxu0 %v2881
      %3133 = vmatmul.mubr.f32.gmra.mrb[0].mxu0 %v2880
      %v3134 = vpop.f32.mrb[0].mxu0
      %v3135 = vadd.f32 0.0, %v3134
      %v3136 = vpop.f32.mrb[0].mxu0
      %v3137 = vadd.f32 0.0, %v3136
      %3138 = vmatprep.mubr.f32.mxu0 %v2885
      %3139 = vmatmul.mubr.f32.gmra.mrb[0].mxu0 %v2884
      %v3140 = vpop.f32.mrb[0].mxu0
      %v3141 = vadd.f32 0.0, %v3140
      %v3142 = vpop.f32.mrb[0].mxu0
      %v3143 = vadd.f32 0.0, %v3142
      %3144 = vdwg.mxu0
      %3145 = vmatprep.subr.mxu0 %v2665
      %3146 = vmatpush1.msra.mxu0 %v2664
      %3147 = vmatprep.subr.mxu0 %v2668
      %3148 = vmatpush1.msra.mxu0 %v2667
      %3149 = vmatprep.subr.mxu0 %v2671
      %3150 = vmatpush1.msra.mxu0 %v2670
      %3151 = vmatprep.subr.mxu0 %v2674
      %3152 = vmatpush1.msra.mxu0 %v2673
      %3153 = vmatprep.subr.mxu0 %v2677
      %3154 = vmatpush1.msra.mxu0 %v2676
      %3155 = vmatprep.subr.mxu0 %v2680
      %3156 = vmatpush1.msra.mxu0 %v2679
      %3157 = vmatprep.subr.mxu0 %v2683
      %3158 = vmatpush1.msra.mxu0 %v2682
      %3159 = vmatprep.subr.mxu0 %v2686
      %3160 = vmatpush1.msra.mxu0 %v2685
      %3161 = vmatprep.subr.mxu0 %v2689
      %3162 = vmatpush1.msra.mxu0 %v2688
      %3163 = vmatprep.subr.mxu0 %v2692
      %3164 = vmatpush1.msra.mxu0 %v2691
      %3165 = vmatprep.subr.mxu0 %v2695
      %3166 = vmatpush1.msra.mxu0 %v2694
      %3167 = vmatprep.subr.mxu0 %v2698
      %3168 = vmatpush1.msra.mxu0 %v2697
      %3169 = vmatprep.subr.mxu0 %v2701
      %3170 = vmatpush1.msra.mxu0 %v2700
      %3171 = vmatprep.subr.mxu0 %v2704
      %3172 = vmatpush1.msra.mxu0 %v2703
      %3173 = vmatprep.subr.mxu0 %v2707
      %3174 = vmatpush1.msra.mxu0 %v2706
      %3175 = vmatprep.subr.mxu0 %v2710
      %3176 = vmatpush1.msra.mxu0 %v2709
      %3177 = vmatprep.subr.mxu0 %v2713
      %3178 = vmatpush1.msra.mxu0 %v2712
      %3179 = vmatprep.subr.mxu0 %v2716
      %3180 = vmatpush1.msra.mxu0 %v2715
      %3181 = vmatprep.subr.mxu0 %v2719
      %3182 = vmatpush1.msra.mxu0 %v2718
      %3183 = vmatprep.subr.mxu0 %v2722
      %3184 = vmatpush1.msra.mxu0 %v2721
      %3185 = vmatprep.subr.mxu0 %v2725
      %3186 = vmatpush1.msra.mxu0 %v2724
      %3187 = vmatprep.subr.mxu0 %v2728
      %3188 = vmatpush1.msra.mxu0 %v2727
      %3189 = vmatprep.subr.mxu0 %v2731
      %3190 = vmatpush1.msra.mxu0 %v2730
      %3191 = vmatprep.subr.mxu0 %v2734
      %3192 = vmatpush1.msra.mxu0 %v2733
      %3193 = vmatprep.subr.mxu0 %v2737
      %3194 = vmatpush1.msra.mxu0 %v2736
      %3195 = vmatprep.subr.mxu0 %v2740
      %3196 = vmatpush1.msra.mxu0 %v2739
      %3197 = vmatprep.subr.mxu0 %v2743
      %3198 = vmatpush1.msra.mxu0 %v2742
      %3199 = vmatprep.subr.mxu0 %v2746
      %3200 = vmatpush1.msra.mxu0 %v2745
      %3201 = vmatprep.subr.mxu0 %v2749
      %3202 = vmatpush1.msra.mxu0 %v2748
      %3203 = vmatprep.subr.mxu0 %v2752
      %3204 = vmatpush1.msra.mxu0 %v2751
      %3205 = vmatprep.subr.mxu0 %v2755
      %3206 = vmatpush1.msra.mxu0 %v2754
      %3207 = vmatprep.subr.mxu0 %v2758
      %3208 = vmatpush1.msra.mxu0 %v2757
      %3209 = vmatprep.mubr.f32.mxu0 %v2763
      %3210 = vmatmul.mubr.f32.gmra.mrb[0].mxu0 %v2762
      %v3211 = vpop.f32.mrb[0].mxu0
      %v3212 = vadd.f32 %v2955, %v3211
      %v3213 = vpop.f32.mrb[0].mxu0
      %v3214 = vadd.f32 %v2957, %v3213
      %3215 = vmatprep.mubr.f32.mxu0 %v2767
      %3216 = vmatmul.mubr.f32.gmra.mrb[0].mxu0 %v2766
      %v3217 = vpop.f32.mrb[0].mxu0
      %v3218 = vadd.f32 %v2961, %v3217
      %v3219 = vpop.f32.mrb[0].mxu0
      %v3220 = vadd.f32 %v2963, %v3219
      %3221 = vmatprep.mubr.f32.mxu0 %v2771
      %3222 = vmatmul.mubr.f32.gmra.mrb[0].mxu0 %v2770
      %v3223 = vpop.f32.mrb[0].mxu0
      %v3224 = vadd.f32 %v2967, %v3223
      %v3225 = vpop.f32.mrb[0].mxu0
      %v3226 = vadd.f32 %v2969, %v3225
      %3227 = vmatprep.mubr.f32.mxu0 %v2775
      %3228 = vmatmul.mubr.f32.gmra.mrb[0].mxu0 %v2774
      %v3229 = vpop.f32.mrb[0].mxu0
      %v3230 = vadd.f32 %v2973, %v3229
      %v3231 = vpop.f32.mrb[0].mxu0
      %v3232 = vadd.f32 %v2975, %v3231
      %3233 = vmatprep.mubr.f32.mxu0 %v2779
      %3234 = vmatmul.mubr.f32.gmra.mrb[0].mxu0 %v2778
      %v3235 = vpop.f32.mrb[0].mxu0
      %v3236 = vadd.f32 %v2979, %v3235
      %v3237 = vpop.f32.mrb[0].mxu0
      %v3238 = vadd.f32 %v2981, %v3237
      %3239 = vmatprep.mubr.f32.mxu0 %v2783
      %3240 = vmatmul.mubr.f32.gmra.mrb[0].mxu0 %v2782
      %v3241 = vpop.f32.mrb[0].mxu0
      %v3242 = vadd.f32 %v2985, %v3241
      %v3243 = vpop.f32.mrb[0].mxu0
      %v3244 = vadd.f32 %v2987, %v3243
      %3245 = vmatprep.mubr.f32.mxu0 %v2787
      %3246 = vmatmul.mubr.f32.gmra.mrb[0].mxu0 %v2786
      %v3247 = vpop.f32.mrb[0].mxu0
      %v3248 = vadd.f32 %v2991, %v3247
      %v3249 = vpop.f32.mrb[0].mxu0
      %v3250 = vadd.f32 %v2993, %v3249
      %3251 = vmatprep.mubr.f32.mxu0 %v2791
      %3252 = vmatmul.mubr.f32.gmra.mrb[0].mxu0 %v2790
      %v3253 = vpop.f32.mrb[0].mxu0
      %v3254 = vadd.f32 %v2997, %v3253
      %v3255 = vpop.f32.mrb[0].mxu0
      %v3256 = vadd.f32 %v2999, %v3255
      %3257 = vmatprep.mubr.f32.mxu0 %v2795
      %3258 = vmatmul.mubr.f32.gmra.mrb[0].mxu0 %v2794
      %v3259 = vpop.f32.mrb[0].mxu0
      %v3260 = vadd.f32 %v3003, %v3259
      %v3261 = vpop.f32.mrb[0].mxu0
      %v3262 = vadd.f32 %v3005, %v3261
      %3263 = vmatprep.mubr.f32.mxu0 %v2799
      %3264 = vmatmul.mubr.f32.gmra.mrb[0].mxu0 %v2798
      %v3265 = vpop.f32.mrb[0].mxu0
      %v3266 = vadd.f32 %v3009, %v3265
      %v3267 = vpop.f32.mrb[0].mxu0
      %v3268 = vadd.f32 %v3011, %v3267
      %3269 = vmatprep.mubr.f32.mxu0 %v2803
      %3270 = vmatmul.mubr.f32.gmra.mrb[0].mxu0 %v2802
      %v3271 = vpop.f32.mrb[0].mxu0
      %v3272 = vadd.f32 %v3015, %v3271
      %v3273 = vpop.f32.mrb[0].mxu0
      %v3274 = vadd.f32 %v3017, %v3273
      %3275 = vmatprep.mubr.f32.mxu0 %v2807
      %3276 = vmatmul.mubr.f32.gmra.mrb[0].mxu0 %v2806
      %v3277 = vpop.f32.mrb[0].mxu0
      %v3278 = vadd.f32 %v3021, %v3277
      %v3279 = vpop.f32.mrb[0].mxu0
      %v3280 = vadd.f32 %v3023, %v3279
      %3281 = vmatprep.mubr.f32.mxu0 %v2811
      %3282 = vmatmul.mubr.f32.gmra.mrb[0].mxu0 %v2810
      %v3283 = vpop.f32.mrb[0].mxu0
      %v3284 = vadd.f32 %v3027, %v3283
      %v3285 = vpop.f32.mrb[0].mxu0
      %v3286 = vadd.f32 %v3029, %v3285
      %3287 = vmatprep.mubr.f32.mxu0 %v2815
      %3288 = vmatmul.mubr.f32.gmra.mrb[0].mxu0 %v2814
      %v3289 = vpop.f32.mrb[0].mxu0
      %v3290 = vadd.f32 %v3033, %v3289
      %v3291 = vpop.f32.mrb[0].mxu0
      %v3292 = vadd.f32 %v3035, %v3291
      %3293 = vmatprep.mubr.f32.mxu0 %v2819
      %3294 = vmatmul.mubr.f32.gmra.mrb[0].mxu0 %v2818
      %v3295 = vpop.f32.mrb[0].mxu0
      %v3296 = vadd.f32 %v3039, %v3295
      %v3297 = vpop.f32.mrb[0].mxu0
      %v3298 = vadd.f32 %v3041, %v3297
      %3299 = vmatprep.mubr.f32.mxu0 %v2823
      %3300 = vmatmul.mubr.f32.gmra.mrb[0].mxu0 %v2822
      %v3301 = vpop.f32.mrb[0].mxu0
      %v3302 = vadd.f32 %v3045, %v3301
      %v3303 = vpop.f32.mrb[0].mxu0
      %v3304 = vadd.f32 %v3047, %v3303
      %3305 = vmatprep.mubr.f32.mxu0 %v2827
      %3306 = vmatmul.mubr.f32.gmra.mrb[0].mxu0 %v2826
      %v3307 = vpop.f32.mrb[0].mxu0
      %v3308 = vadd.f32 %v3051, %v3307
      %v3309 = vpop.f32.mrb[0].mxu0
      %v3310 = vadd.f32 %v3053, %v3309
      %3311 = vmatprep.mubr.f32.mxu0 %v2831
      %3312 = vmatmul.mubr.f32.gmra.mrb[0].mxu0 %v2830
      %v3313 = vpop.f32.mrb[0].mxu0
      %v3314 = vadd.f32 %v3057, %v3313
      %v3315 = vpop.f32.mrb[0].mxu0
      %v3316 = vadd.f32 %v3059, %v3315
      %3317 = vmatprep.mubr.f32.mxu0 %v2835
      %3318 = vmatmul.mubr.f32.gmra.mrb[0].mxu0 %v2834
      %v3319 = vpop.f32.mrb[0].mxu0
      %v3320 = vadd.f32 %v3063, %v3319
      %v3321 = vpop.f32.mrb[0].mxu0
      %v3322 = vadd.f32 %v3065, %v3321
      %3323 = vmatprep.mubr.f32.mxu0 %v2839
      %3324 = vmatmul.mubr.f32.gmra.mrb[0].mxu0 %v2838
      %v3325 = vpop.f32.mrb[0].mxu0
      %v3326 = vadd.f32 %v3069, %v3325
      %v3327 = vpop.f32.mrb[0].mxu0
      %v3328 = vadd.f32 %v3071, %v3327
      %3329 = vmatprep.mubr.f32.mxu0 %v2843
      %3330 = vmatmul.mubr.f32.gmra.mrb[0].mxu0 %v2842
      %v3331 = vpop.f32.mrb[0].mxu0
      %v3332 = vadd.f32 %v3075, %v3331
      %v3333 = vpop.f32.mrb[0].mxu0
      %v3334 = vadd.f32 %v3077, %v3333
      %3335 = vmatprep.mubr.f32.mxu0 %v2847
      %3336 = vmatmul.mubr.f32.gmra.mrb[0].mxu0 %v2846
      %v3337 = vpop.f32.mrb[0].mxu0
      %v3338 = vadd.f32 %v3081, %v3337
      %v3339 = vpop.f32.mrb[0].mxu0
      %v3340 = vadd.f32 %v3083, %v3339
      %3341 = vmatprep.mubr.f32.mxu0 %v2851
      %3342 = vmatmul.mubr.f32.gmra.mrb[0].mxu0 %v2850
      %v3343 = vpop.f32.mrb[0].mxu0
      %v3344 = vadd.f32 %v3087, %v3343
      %v3345 = vpop.f32.mrb[0].mxu0
      %v3346 = vadd.f32 %v3089, %v3345
      %3347 = vmatprep.mubr.f32.mxu0 %v2855
      %3348 = vmatmul.mubr.f32.gmra.mrb[0].mxu0 %v2854
      %v3349 = vpop.f32.mrb[0].mxu0
      %v3350 = vadd.f32 %v3093, %v3349
      %v3351 = vpop.f32.mrb[0].mxu0
      %v3352 = vadd.f32 %v3095, %v3351
      %3353 = vmatprep.mubr.f32.mxu0 %v2859
      %3354 = vmatmul.mubr.f32.gmra.mrb[0].mxu0 %v2858
      %v3355 = vpop.f32.mrb[0].mxu0
      %v3356 = vadd.f32 %v3099, %v3355
      %v3357 = vpop.f32.mrb[0].mxu0
      %v3358 = vadd.f32 %v3101, %v3357
      %3359 = vmatprep.mubr.f32.mxu0 %v2863
      %3360 = vmatmul.mubr.f32.gmra.mrb[0].mxu0 %v2862
      %v3361 = vpop.f32.mrb[0].mxu0
      %v3362 = vadd.f32 %v3105, %v3361
      %v3363 = vpop.f32.mrb[0].mxu0
      %v3364 = vadd.f32 %v3107, %v3363
      %3365 = vmatprep.mubr.f32.mxu0 %v2867
      %3366 = vmatmul.mubr.f32.gmra.mrb[0].mxu0 %v2866
      %v3367 = vpop.f32.mrb[0].mxu0
      %v3368 = vadd.f32 %v3111, %v3367
      %v3369 = vpop.f32.mrb[0].mxu0
      %v3370 = vadd.f32 %v3113, %v3369
      %3371 = vmatprep.mubr.f32.mxu0 %v2871
      %3372 = vmatmul.mubr.f32.gmra.mrb[0].mxu0 %v2870
      %v3373 = vpop.f32.mrb[0].mxu0
      %v3374 = vadd.f32 %v3117, %v3373
      %v3375 = vpop.f32.mrb[0].mxu0
      %v3376 = vadd.f32 %v3119, %v3375
      %3377 = vmatprep.mubr.f32.mxu0 %v2875
      %3378 = vmatmul.mubr.f32.gmra.mrb[0].mxu0 %v2874
      %v3379 = vpop.f32.mrb[0].mxu0
      %v3380 = vadd.f32 %v3123, %v3379
      %v3381 = vpop.f32.mrb[0].mxu0
      %v3382 = vadd.f32 %v3125, %v3381
      %3383 = vmatprep.mubr.f32.mxu0 %v2879
      %3384 = vmatmul.mubr.f32.gmra.mrb[0].mxu0 %v2878
      %v3385 = vpop.f32.mrb[0].mxu0
      %v3386 = vadd.f32 %v3129, %v3385
      %v3387 = vpop.f32.mrb[0].mxu0
      %v3388 = vadd.f32 %v3131, %v3387
      %3389 = vmatprep.mubr.f32.mxu0 %v2883
      %3390 = vmatmul.mubr.f32.gmra.mrb[0].mxu0 %v2882
      %v3391 = vpop.f32.mrb[0].mxu0
      %v3392 = vadd.f32 %v3135, %v3391
      %v3393 = vpop.f32.mrb[0].mxu0
      %v3394 = vadd.f32 %v3137, %v3393
      %3395 = vmatprep.mubr.f32.mxu0 %v2887
      %3396 = vmatmul.mubr.f32.gmra.mrb[0].mxu0 %v2886
      %v3397 = vpop.f32.mrb[0].mxu0
      %v3398 = vadd.f32 %v3141, %v3397
      %v3399 = vpop.f32.mrb[0].mxu0
      %v3400 = vadd.f32 %v3143, %v3399
      %3401 = vdwg.mxu0
      %3402 = vmatprep.subr.mxu0 0.0
      %3403 = vmatpush1.msra.mxu0 %v2570
      %3404 = vmatprep.subr.mxu0 0.0
      %3405 = vmatpush1.msra.mxu0 %v2573
      %3406 = vmatprep.subr.mxu0 0.0
      %3407 = vmatpush1.msra.mxu0 %v2576
      %3408 = vmatprep.subr.mxu0 0.0
      %3409 = vmatpush1.msra.mxu0 %v2579
      %3410 = vmatprep.subr.mxu0 0.0
      %3411 = vmatpush1.msra.mxu0 %v2582
      %3412 = vmatprep.subr.mxu0 0.0
      %3413 = vmatpush1.msra.mxu0 %v2585
      %3414 = vmatprep.subr.mxu0 0.0
      %3415 = vmatpush1.msra.mxu0 %v2588
      %3416 = vmatprep.subr.mxu0 0.0
      %3417 = vmatpush1.msra.mxu0 %v2591
      %3418 = vmatprep.subr.mxu0 0.0
      %3419 = vmatpush1.msra.mxu0 %v2594
      %3420 = vmatprep.subr.mxu0 0.0
      %3421 = vmatpush1.msra.mxu0 %v2597
      %3422 = vmatprep.subr.mxu0 0.0
      %3423 = vmatpush1.msra.mxu0 %v2600
      %3424 = vmatprep.subr.mxu0 0.0
      %3425 = vmatpush1.msra.mxu0 %v2603
      %3426 = vmatprep.subr.mxu0 0.0
      %3427 = vmatpush1.msra.mxu0 %v2606
      %3428 = vmatprep.subr.mxu0 0.0
      %3429 = vmatpush1.msra.mxu0 %v2609
      %3430 = vmatprep.subr.mxu0 0.0
      %3431 = vmatpush1.msra.mxu0 %v2612
      %3432 = vmatprep.subr.mxu0 0.0
      %3433 = vmatpush1.msra.mxu0 %v2615
      %3434 = vmatprep.subr.mxu0 0.0
      %3435 = vmatpush1.msra.mxu0 %v2618
      %3436 = vmatprep.subr.mxu0 0.0
      %3437 = vmatpush1.msra.mxu0 %v2621
      %3438 = vmatprep.subr.mxu0 0.0
      %3439 = vmatpush1.msra.mxu0 %v2624
      %3440 = vmatprep.subr.mxu0 0.0
      %3441 = vmatpush1.msra.mxu0 %v2627
      %3442 = vmatprep.subr.mxu0 0.0
      %3443 = vmatpush1.msra.mxu0 %v2630
      %3444 = vmatprep.subr.mxu0 0.0
      %3445 = vmatpush1.msra.mxu0 %v2633
      %3446 = vmatprep.subr.mxu0 0.0
      %3447 = vmatpush1.msra.mxu0 %v2636
      %3448 = vmatprep.subr.mxu0 0.0
      %3449 = vmatpush1.msra.mxu0 %v2639
      %3450 = vmatprep.subr.mxu0 0.0
      %3451 = vmatpush1.msra.mxu0 %v2642
      %3452 = vmatprep.subr.mxu0 0.0
      %3453 = vmatpush1.msra.mxu0 %v2645
      %3454 = vmatprep.subr.mxu0 0.0
      %3455 = vmatpush1.msra.mxu0 %v2648
      %3456 = vmatprep.subr.mxu0 0.0
      %3457 = vmatpush1.msra.mxu0 %v2651
      %3458 = vmatprep.subr.mxu0 0.0
      %3459 = vmatpush1.msra.mxu0 %v2654
      %3460 = vmatprep.subr.mxu0 0.0
      %3461 = vmatpush1.msra.mxu0 %v2657
      %3462 = vmatprep.subr.mxu0 0.0
      %3463 = vmatpush1.msra.mxu0 %v2660
      %3464 = vmatprep.subr.mxu0 0.0
      %3465 = vmatpush1.msra.mxu0 %v2663
      %3466 = vmatprep.mubr.f32.mxu0 %v2761
      %3467 = vmatmul.mubr.f32.gmra.mrb[0].mxu0 %v2760
      %v3468 = vpop.f32.mrb[0].mxu0
      %v3469 = vadd.f32 0.0, %v3468
      %v3470 = vpop.f32.mrb[0].mxu0
      %3471 = vmatprep.mubr.f32.mxu0 %v2765
      %3472 = vmatmul.mubr.f32.gmra.mrb[0].mxu0 %v2764
      %v3473 = vpop.f32.mrb[0].mxu0
      %v3474 = vadd.f32 0.0, %v3473
      %v3475 = vpop.f32.mrb[0].mxu0
      %3476 = vmatprep.mubr.f32.mxu0 %v2769
      %3477 = vmatmul.mubr.f32.gmra.mrb[0].mxu0 %v2768
      %v3478 = vpop.f32.mrb[0].mxu0
      %v3479 = vadd.f32 0.0, %v3478
      %v3480 = vpop.f32.mrb[0].mxu0
      %3481 = vmatprep.mubr.f32.mxu0 %v2773
      %3482 = vmatmul.mubr.f32.gmra.mrb[0].mxu0 %v2772
      %v3483 = vpop.f32.mrb[0].mxu0
      %v3484 = vadd.f32 0.0, %v3483
      %v3485 = vpop.f32.mrb[0].mxu0
      %3486 = vmatprep.mubr.f32.mxu0 %v2777
      %3487 = vmatmul.mubr.f32.gmra.mrb[0].mxu0 %v2776
      %v3488 = vpop.f32.mrb[0].mxu0
      %v3489 = vadd.f32 0.0, %v3488
      %v3490 = vpop.f32.mrb[0].mxu0
      %3491 = vmatprep.mubr.f32.mxu0 %v2781
      %3492 = vmatmul.mubr.f32.gmra.mrb[0].mxu0 %v2780
      %v3493 = vpop.f32.mrb[0].mxu0
      %v3494 = vadd.f32 0.0, %v3493
      %v3495 = vpop.f32.mrb[0].mxu0
      %3496 = vmatprep.mubr.f32.mxu0 %v2785
      %3497 = vmatmul.mubr.f32.gmra.mrb[0].mxu0 %v2784
      %v3498 = vpop.f32.mrb[0].mxu0
      %v3499 = vadd.f32 0.0, %v3498
      %v3500 = vpop.f32.mrb[0].mxu0
      %3501 = vmatprep.mubr.f32.mxu0 %v2789
      %3502 = vmatmul.mubr.f32.gmra.mrb[0].mxu0 %v2788
      %v3503 = vpop.f32.mrb[0].mxu0
      %v3504 = vadd.f32 0.0, %v3503
      %v3505 = vpop.f32.mrb[0].mxu0
      %3506 = vmatprep.mubr.f32.mxu0 %v2793
      %3507 = vmatmul.mubr.f32.gmra.mrb[0].mxu0 %v2792
      %v3508 = vpop.f32.mrb[0].mxu0
      %v3509 = vadd.f32 0.0, %v3508
      %v3510 = vpop.f32.mrb[0].mxu0
      %3511 = vmatprep.mubr.f32.mxu0 %v2797
      %3512 = vmatmul.mubr.f32.gmra.mrb[0].mxu0 %v2796
      %v3513 = vpop.f32.mrb[0].mxu0
      %v3514 = vadd.f32 0.0, %v3513
      %v3515 = vpop.f32.mrb[0].mxu0
      %3516 = vmatprep.mubr.f32.mxu0 %v2801
      %3517 = vmatmul.mubr.f32.gmra.mrb[0].mxu0 %v2800
      %v3518 = vpop.f32.mrb[0].mxu0
      %v3519 = vadd.f32 0.0, %v3518
      %v3520 = vpop.f32.mrb[0].mxu0
      %3521 = vmatprep.mubr.f32.mxu0 %v2805
      %3522 = vmatmul.mubr.f32.gmra.mrb[0].mxu0 %v2804
      %v3523 = vpop.f32.mrb[0].mxu0
      %v3524 = vadd.f32 0.0, %v3523
      %v3525 = vpop.f32.mrb[0].mxu0
      %3526 = vmatprep.mubr.f32.mxu0 %v2809
      %3527 = vmatmul.mubr.f32.gmra.mrb[0].mxu0 %v2808
      %v3528 = vpop.f32.mrb[0].mxu0
      %v3529 = vadd.f32 0.0, %v3528
      %v3530 = vpop.f32.mrb[0].mxu0
      %3531 = vmatprep.mubr.f32.mxu0 %v2813
      %3532 = vmatmul.mubr.f32.gmra.mrb[0].mxu0 %v2812
      %v3533 = vpop.f32.mrb[0].mxu0
      %v3534 = vadd.f32 0.0, %v3533
      %v3535 = vpop.f32.mrb[0].mxu0
      %3536 = vmatprep.mubr.f32.mxu0 %v2817
      %3537 = vmatmul.mubr.f32.gmra.mrb[0].mxu0 %v2816
      %v3538 = vpop.f32.mrb[0].mxu0
      %v3539 = vadd.f32 0.0, %v3538
      %v3540 = vpop.f32.mrb[0].mxu0
      %3541 = vmatprep.mubr.f32.mxu0 %v2821
      %3542 = vmatmul.mubr.f32.gmra.mrb[0].mxu0 %v2820
      %v3543 = vpop.f32.mrb[0].mxu0
      %v3544 = vadd.f32 0.0, %v3543
      %v3545 = vpop.f32.mrb[0].mxu0
      %3546 = vmatprep.mubr.f32.mxu0 %v2825
      %3547 = vmatmul.mubr.f32.gmra.mrb[0].mxu0 %v2824
      %v3548 = vpop.f32.mrb[0].mxu0
      %v3549 = vadd.f32 0.0, %v3548
      %v3550 = vpop.f32.mrb[0].mxu0
      %3551 = vmatprep.mubr.f32.mxu0 %v2829
      %3552 = vmatmul.mubr.f32.gmra.mrb[0].mxu0 %v2828
      %v3553 = vpop.f32.mrb[0].mxu0
      %v3554 = vadd.f32 0.0, %v3553
      %v3555 = vpop.f32.mrb[0].mxu0
      %3556 = vmatprep.mubr.f32.mxu0 %v2833
      %3557 = vmatmul.mubr.f32.gmra.mrb[0].mxu0 %v2832
      %v3558 = vpop.f32.mrb[0].mxu0
      %v3559 = vadd.f32 0.0, %v3558
      %v3560 = vpop.f32.mrb[0].mxu0
      %3561 = vmatprep.mubr.f32.mxu0 %v2837
      %3562 = vmatmul.mubr.f32.gmra.mrb[0].mxu0 %v2836
      %v3563 = vpop.f32.mrb[0].mxu0
      %v3564 = vadd.f32 0.0, %v3563
      %v3565 = vpop.f32.mrb[0].mxu0
      %3566 = vmatprep.mubr.f32.mxu0 %v2841
      %3567 = vmatmul.mubr.f32.gmra.mrb[0].mxu0 %v2840
      %v3568 = vpop.f32.mrb[0].mxu0
      %v3569 = vadd.f32 0.0, %v3568
      %v3570 = vpop.f32.mrb[0].mxu0
      %3571 = vmatprep.mubr.f32.mxu0 %v2845
      %3572 = vmatmul.mubr.f32.gmra.mrb[0].mxu0 %v2844
      %v3573 = vpop.f32.mrb[0].mxu0
      %v3574 = vadd.f32 0.0, %v3573
      %v3575 = vpop.f32.mrb[0].mxu0
      %3576 = vmatprep.mubr.f32.mxu0 %v2849
      %3577 = vmatmul.mubr.f32.gmra.mrb[0].mxu0 %v2848
      %v3578 = vpop.f32.mrb[0].mxu0
      %v3579 = vadd.f32 0.0, %v3578
      %v3580 = vpop.f32.mrb[0].mxu0
      %3581 = vmatprep.mubr.f32.mxu0 %v2853
      %3582 = vmatmul.mubr.f32.gmra.mrb[0].mxu0 %v2852
      %v3583 = vpop.f32.mrb[0].mxu0
      %v3584 = vadd.f32 0.0, %v3583
      %v3585 = vpop.f32.mrb[0].mxu0
      %3586 = vmatprep.mubr.f32.mxu0 %v2857
      %3587 = vmatmul.mubr.f32.gmra.mrb[0].mxu0 %v2856
      %v3588 = vpop.f32.mrb[0].mxu0
      %v3589 = vadd.f32 0.0, %v3588
      %v3590 = vpop.f32.mrb[0].mxu0
      %3591 = vmatprep.mubr.f32.mxu0 %v2861
      %3592 = vmatmul.mubr.f32.gmra.mrb[0].mxu0 %v2860
      %v3593 = vpop.f32.mrb[0].mxu0
      %v3594 = vadd.f32 0.0, %v3593
      %v3595 = vpop.f32.mrb[0].mxu0
      %3596 = vmatprep.mubr.f32.mxu0 %v2865
      %3597 = vmatmul.mubr.f32.gmra.mrb[0].mxu0 %v2864
      %v3598 = vpop.f32.mrb[0].mxu0
      %v3599 = vadd.f32 0.0, %v3598
      %v3600 = vpop.f32.mrb[0].mxu0
      %3601 = vmatprep.mubr.f32.mxu0 %v2869
      %3602 = vmatmul.mubr.f32.gmra.mrb[0].mxu0 %v2868
      %v3603 = vpop.f32.mrb[0].mxu0
      %v3604 = vadd.f32 0.0, %v3603
      %v3605 = vpop.f32.mrb[0].mxu0
      %3606 = vmatprep.mubr.f32.mxu0 %v2873
      %3607 = vmatmul.mubr.f32.gmra.mrb[0].mxu0 %v2872
      %v3608 = vpop.f32.mrb[0].mxu0
      %v3609 = vadd.f32 0.0, %v3608
      %v3610 = vpop.f32.mrb[0].mxu0
      %3611 = vmatprep.mubr.f32.mxu0 %v2877
      %3612 = vmatmul.mubr.f32.gmra.mrb[0].mxu0 %v2876
      %v3613 = vpop.f32.mrb[0].mxu0
      %v3614 = vadd.f32 0.0, %v3613
      %v3615 = vpop.f32.mrb[0].mxu0
      %3616 = vmatprep.mubr.f32.mxu0 %v2881
      %3617 = vmatmul.mubr.f32.gmra.mrb[0].mxu0 %v2880
      %v3618 = vpop.f32.mrb[0].mxu0
      %v3619 = vadd.f32 0.0, %v3618
      %v3620 = vpop.f32.mrb[0].mxu0
      %3621 = vmatprep.mubr.f32.mxu0 %v2885
      %3622 = vmatmul.mubr.f32.gmra.mrb[0].mxu0 %v2884
      %v3623 = vpop.f32.mrb[0].mxu0
      %v3624 = vadd.f32 0.0, %v3623
      %v3625 = vpop.f32.mrb[0].mxu0
      %3626 = vdwg.mxu0
      %3627 = vmatprep.subr.mxu0 0.0
      %3628 = vmatpush1.msra.mxu0 %v2666
      %3629 = vmatprep.subr.mxu0 0.0
      %3630 = vmatpush1.msra.mxu0 %v2669
      %3631 = vmatprep.subr.mxu0 0.0
      %3632 = vmatpush1.msra.mxu0 %v2672
      %3633 = vmatprep.subr.mxu0 0.0
      %3634 = vmatpush1.msra.mxu0 %v2675
      %3635 = vmatprep.subr.mxu0 0.0
      %3636 = vmatpush1.msra.mxu0 %v2678
      %3637 = vmatprep.subr.mxu0 0.0
      %3638 = vmatpush1.msra.mxu0 %v2681
      %3639 = vmatprep.subr.mxu0 0.0
      %3640 = vmatpush1.msra.mxu0 %v2684
      %3641 = vmatprep.subr.mxu0 0.0
      %3642 = vmatpush1.msra.mxu0 %v2687
      %3643 = vmatprep.subr.mxu0 0.0
      %3644 = vmatpush1.msra.mxu0 %v2690
      %3645 = vmatprep.subr.mxu0 0.0
      %3646 = vmatpush1.msra.mxu0 %v2693
      %3647 = vmatprep.subr.mxu0 0.0
      %3648 = vmatpush1.msra.mxu0 %v2696
      %3649 = vmatprep.subr.mxu0 0.0
      %3650 = vmatpush1.msra.mxu0 %v2699
      %3651 = vmatprep.subr.mxu0 0.0
      %3652 = vmatpush1.msra.mxu0 %v2702
      %3653 = vmatprep.subr.mxu0 0.0
      %3654 = vmatpush1.msra.mxu0 %v2705
      %3655 = vmatprep.subr.mxu0 0.0
      %3656 = vmatpush1.msra.mxu0 %v2708
      %3657 = vmatprep.subr.mxu0 0.0
      %3658 = vmatpush1.msra.mxu0 %v2711
      %3659 = vmatprep.subr.mxu0 0.0
      %3660 = vmatpush1.msra.mxu0 %v2714
      %3661 = vmatprep.subr.mxu0 0.0
      %3662 = vmatpush1.msra.mxu0 %v2717
      %3663 = vmatprep.subr.mxu0 0.0
      %3664 = vmatpush1.msra.mxu0 %v2720
      %3665 = vmatprep.subr.mxu0 0.0
      %3666 = vmatpush1.msra.mxu0 %v2723
      %3667 = vmatprep.subr.mxu0 0.0
      %3668 = vmatpush1.msra.mxu0 %v2726
      %3669 = vmatprep.subr.mxu0 0.0
      %3670 = vmatpush1.msra.mxu0 %v2729
      %3671 = vmatprep.subr.mxu0 0.0
      %3672 = vmatpush1.msra.mxu0 %v2732
      %3673 = vmatprep.subr.mxu0 0.0
      %3674 = vmatpush1.msra.mxu0 %v2735
      %3675 = vmatprep.subr.mxu0 0.0
      %3676 = vmatpush1.msra.mxu0 %v2738
      %3677 = vmatprep.subr.mxu0 0.0
      %3678 = vmatpush1.msra.mxu0 %v2741
      %3679 = vmatprep.subr.mxu0 0.0
      %3680 = vmatpush1.msra.mxu0 %v2744
      %3681 = vmatprep.subr.mxu0 0.0
      %3682 = vmatpush1.msra.mxu0 %v2747
      %3683 = vmatprep.subr.mxu0 0.0
      %3684 = vmatpush1.msra.mxu0 %v2750
      %3685 = vmatprep.subr.mxu0 0.0
      %3686 = vmatpush1.msra.mxu0 %v2753
      %3687 = vmatprep.subr.mxu0 0.0
      %3688 = vmatpush1.msra.mxu0 %v2756
      %3689 = vmatprep.subr.mxu0 0.0
      %3690 = vmatpush1.msra.mxu0 %v2759
      %3691 = vmatprep.mubr.f32.mxu0 %v2763
      %3692 = vmatmul.mubr.f32.gmra.mrb[0].mxu0 %v2762
      %v3693 = vpop.f32.mrb[0].mxu0
      %v3694 = vadd.f32 %v3469, %v3693
      %v3695 = vpop.f32.mrb[0].mxu0
      %3696 = vmatprep.mubr.f32.mxu0 %v2767
      %3697 = vmatmul.mubr.f32.gmra.mrb[0].mxu0 %v2766
      %v3698 = vpop.f32.mrb[0].mxu0
      %v3699 = vadd.f32 %v3474, %v3698
      %v3700 = vpop.f32.mrb[0].mxu0
      %3701 = vmatprep.mubr.f32.mxu0 %v2771
      %3702 = vmatmul.mubr.f32.gmra.mrb[0].mxu0 %v2770
      %v3703 = vpop.f32.mrb[0].mxu0
      %v3704 = vadd.f32 %v3479, %v3703
      %v3705 = vpop.f32.mrb[0].mxu0
      %3706 = vmatprep.mubr.f32.mxu0 %v2775
      %3707 = vmatmul.mubr.f32.gmra.mrb[0].mxu0 %v2774
      %v3708 = vpop.f32.mrb[0].mxu0
      %v3709 = vadd.f32 %v3484, %v3708
      %v3710 = vpop.f32.mrb[0].mxu0
      %3711 = vmatprep.mubr.f32.mxu0 %v2779
      %3712 = vmatmul.mubr.f32.gmra.mrb[0].mxu0 %v2778
      %v3713 = vpop.f32.mrb[0].mxu0
      %v3714 = vadd.f32 %v3489, %v3713
      %v3715 = vpop.f32.mrb[0].mxu0
      %3716 = vmatprep.mubr.f32.mxu0 %v2783
      %3717 = vmatmul.mubr.f32.gmra.mrb[0].mxu0 %v2782
      %v3718 = vpop.f32.mrb[0].mxu0
      %v3719 = vadd.f32 %v3494, %v3718
      %v3720 = vpop.f32.mrb[0].mxu0
      %3721 = vmatprep.mubr.f32.mxu0 %v2787
      %3722 = vmatmul.mubr.f32.gmra.mrb[0].mxu0 %v2786
      %v3723 = vpop.f32.mrb[0].mxu0
      %v3724 = vadd.f32 %v3499, %v3723
      %v3725 = vpop.f32.mrb[0].mxu0
      %3726 = vmatprep.mubr.f32.mxu0 %v2791
      %3727 = vmatmul.mubr.f32.gmra.mrb[0].mxu0 %v2790
      %v3728 = vpop.f32.mrb[0].mxu0
      %v3729 = vadd.f32 %v3504, %v3728
      %v3730 = vpop.f32.mrb[0].mxu0
      %3731 = vmatprep.mubr.f32.mxu0 %v2795
      %3732 = vmatmul.mubr.f32.gmra.mrb[0].mxu0 %v2794
      %v3733 = vpop.f32.mrb[0].mxu0
      %v3734 = vadd.f32 %v3509, %v3733
      %v3735 = vpop.f32.mrb[0].mxu0
      %3736 = vmatprep.mubr.f32.mxu0 %v2799
      %3737 = vmatmul.mubr.f32.gmra.mrb[0].mxu0 %v2798
      %v3738 = vpop.f32.mrb[0].mxu0
      %v3739 = vadd.f32 %v3514, %v3738
      %v3740 = vpop.f32.mrb[0].mxu0
      %3741 = vmatprep.mubr.f32.mxu0 %v2803
      %3742 = vmatmul.mubr.f32.gmra.mrb[0].mxu0 %v2802
      %v3743 = vpop.f32.mrb[0].mxu0
      %v3744 = vadd.f32 %v3519, %v3743
      %v3745 = vpop.f32.mrb[0].mxu0
      %3746 = vmatprep.mubr.f32.mxu0 %v2807
      %3747 = vmatmul.mubr.f32.gmra.mrb[0].mxu0 %v2806
      %v3748 = vpop.f32.mrb[0].mxu0
      %v3749 = vadd.f32 %v3524, %v3748
      %v3750 = vpop.f32.mrb[0].mxu0
      %3751 = vmatprep.mubr.f32.mxu0 %v2811
      %3752 = vmatmul.mubr.f32.gmra.mrb[0].mxu0 %v2810
      %v3753 = vpop.f32.mrb[0].mxu0
      %v3754 = vadd.f32 %v3529, %v3753
      %v3755 = vpop.f32.mrb[0].mxu0
      %3756 = vmatprep.mubr.f32.mxu0 %v2815
      %3757 = vmatmul.mubr.f32.gmra.mrb[0].mxu0 %v2814
      %v3758 = vpop.f32.mrb[0].mxu0
      %v3759 = vadd.f32 %v3534, %v3758
      %v3760 = vpop.f32.mrb[0].mxu0
      %3761 = vmatprep.mubr.f32.mxu0 %v2819
      %3762 = vmatmul.mubr.f32.gmra.mrb[0].mxu0 %v2818
      %v3763 = vpop.f32.mrb[0].mxu0
      %v3764 = vadd.f32 %v3539, %v3763
      %v3765 = vpop.f32.mrb[0].mxu0
      %3766 = vmatprep.mubr.f32.mxu0 %v2823
      %3767 = vmatmul.mubr.f32.gmra.mrb[0].mxu0 %v2822
      %v3768 = vpop.f32.mrb[0].mxu0
      %v3769 = vadd.f32 %v3544, %v3768
      %v3770 = vpop.f32.mrb[0].mxu0
      %3771 = vmatprep.mubr.f32.mxu0 %v2827
      %3772 = vmatmul.mubr.f32.gmra.mrb[0].mxu0 %v2826
      %v3773 = vpop.f32.mrb[0].mxu0
      %v3774 = vadd.f32 %v3549, %v3773
      %v3775 = vpop.f32.mrb[0].mxu0
      %3776 = vmatprep.mubr.f32.mxu0 %v2831
      %3777 = vmatmul.mubr.f32.gmra.mrb[0].mxu0 %v2830
      %v3778 = vpop.f32.mrb[0].mxu0
      %v3779 = vadd.f32 %v3554, %v3778
      %v3780 = vpop.f32.mrb[0].mxu0
      %3781 = vmatprep.mubr.f32.mxu0 %v2835
      %3782 = vmatmul.mubr.f32.gmra.mrb[0].mxu0 %v2834
      %v3783 = vpop.f32.mrb[0].mxu0
      %v3784 = vadd.f32 %v3559, %v3783
      %v3785 = vpop.f32.mrb[0].mxu0
      %3786 = vmatprep.mubr.f32.mxu0 %v2839
      %3787 = vmatmul.mubr.f32.gmra.mrb[0].mxu0 %v2838
      %v3788 = vpop.f32.mrb[0].mxu0
      %v3789 = vadd.f32 %v3564, %v3788
      %v3790 = vpop.f32.mrb[0].mxu0
      %3791 = vmatprep.mubr.f32.mxu0 %v2843
      %3792 = vmatmul.mubr.f32.gmra.mrb[0].mxu0 %v2842
      %v3793 = vpop.f32.mrb[0].mxu0
      %v3794 = vadd.f32 %v3569, %v3793
      %v3795 = vpop.f32.mrb[0].mxu0
      %3796 = vmatprep.mubr.f32.mxu0 %v2847
      %3797 = vmatmul.mubr.f32.gmra.mrb[0].mxu0 %v2846
      %v3798 = vpop.f32.mrb[0].mxu0
      %v3799 = vadd.f32 %v3574, %v3798
      %v3800 = vpop.f32.mrb[0].mxu0
      %3801 = vmatprep.mubr.f32.mxu0 %v2851
      %3802 = vmatmul.mubr.f32.gmra.mrb[0].mxu0 %v2850
      %v3803 = vpop.f32.mrb[0].mxu0
      %v3804 = vadd.f32 %v3579, %v3803
      %v3805 = vpop.f32.mrb[0].mxu0
      %3806 = vmatprep.mubr.f32.mxu0 %v2855
      %3807 = vmatmul.mubr.f32.gmra.mrb[0].mxu0 %v2854
      %v3808 = vpop.f32.mrb[0].mxu0
      %v3809 = vadd.f32 %v3584, %v3808
      %v3810 = vpop.f32.mrb[0].mxu0
      %3811 = vmatprep.mubr.f32.mxu0 %v2859
      %3812 = vmatmul.mubr.f32.gmra.mrb[0].mxu0 %v2858
      %v3813 = vpop.f32.mrb[0].mxu0
      %v3814 = vadd.f32 %v3589, %v3813
      %v3815 = vpop.f32.mrb[0].mxu0
      %3816 = vmatprep.mubr.f32.mxu0 %v2863
      %3817 = vmatmul.mubr.f32.gmra.mrb[0].mxu0 %v2862
      %v3818 = vpop.f32.mrb[0].mxu0
      %v3819 = vadd.f32 %v3594, %v3818
      %v3820 = vpop.f32.mrb[0].mxu0
      %3821 = vmatprep.mubr.f32.mxu0 %v2867
      %3822 = vmatmul.mubr.f32.gmra.mrb[0].mxu0 %v2866
      %v3823 = vpop.f32.mrb[0].mxu0
      %v3824 = vadd.f32 %v3599, %v3823
      %v3825 = vpop.f32.mrb[0].mxu0
      %3826 = vmatprep.mubr.f32.mxu0 %v2871
      %3827 = vmatmul.mubr.f32.gmra.mrb[0].mxu0 %v2870
      %v3828 = vpop.f32.mrb[0].mxu0
      %v3829 = vadd.f32 %v3604, %v3828
      %v3830 = vpop.f32.mrb[0].mxu0
      %3831 = vmatprep.mubr.f32.mxu0 %v2875
      %3832 = vmatmul.mubr.f32.gmra.mrb[0].mxu0 %v2874
      %v3833 = vpop.f32.mrb[0].mxu0
      %v3834 = vadd.f32 %v3609, %v3833
      %v3835 = vpop.f32.mrb[0].mxu0
      %3836 = vmatprep.mubr.f32.mxu0 %v2879
      %3837 = vmatmul.mubr.f32.gmra.mrb[0].mxu0 %v2878
      %v3838 = vpop.f32.mrb[0].mxu0
      %v3839 = vadd.f32 %v3614, %v3838
      %v3840 = vpop.f32.mrb[0].mxu0
      %3841 = vmatprep.mubr.f32.mxu0 %v2883
      %3842 = vmatmul.mubr.f32.gmra.mrb[0].mxu0 %v2882
      %v3843 = vpop.f32.mrb[0].mxu0
      %v3844 = vadd.f32 %v3619, %v3843
      %v3845 = vpop.f32.mrb[0].mxu0
      %3846 = vmatprep.mubr.f32.mxu0 %v2887
      %3847 = vmatmul.mubr.f32.gmra.mrb[0].mxu0 %v2886
      %v3848 = vpop.f32.mrb[0].mxu0
      %v3849 = vadd.f32 %v3624, %v3848
      %v3850 = vpop.f32.mrb[0].mxu0
      %3851 = vdwg.mxu0
      %v3852 = vmax.f32 %v3212, 0.0
      %v3853 = vmax.f32 %v3214, 0.0
      %v3854 = vmax.f32 %v3694, 0.0
      %v3855 = vmax.f32 %v3218, 0.0
      %v3856 = vmax.f32 %v3220, 0.0
      %v3857 = vmax.f32 %v3699, 0.0
      %v3858 = vmax.f32 %v3224, 0.0
      %v3859 = vmax.f32 %v3226, 0.0
      %v3860 = vmax.f32 %v3704, 0.0
      %v3861 = vmax.f32 %v3230, 0.0
      %v3862 = vmax.f32 %v3232, 0.0
      %v3863 = vmax.f32 %v3709, 0.0
      %v3864 = vmax.f32 %v3236, 0.0
      %v3865 = vmax.f32 %v3238, 0.0
      %v3866 = vmax.f32 %v3714, 0.0
      %v3867 = vmax.f32 %v3242, 0.0
      %v3868 = vmax.f32 %v3244, 0.0
      %v3869 = vmax.f32 %v3719, 0.0
      %v3870 = vmax.f32 %v3248, 0.0
      %v3871 = vmax.f32 %v3250, 0.0
      %v3872 = vmax.f32 %v3724, 0.0
      %v3873 = vmax.f32 %v3254, 0.0
      %v3874 = vmax.f32 %v3256, 0.0
      %v3875 = vmax.f32 %v3729, 0.0
      %v3876 = vmax.f32 %v3260, 0.0
      %v3877 = vmax.f32 %v3262, 0.0
      %v3878 = vmax.f32 %v3734, 0.0
      %v3879 = vmax.f32 %v3266, 0.0
      %v3880 = vmax.f32 %v3268, 0.0
      %v3881 = vmax.f32 %v3739, 0.0
      %v3882 = vmax.f32 %v3272, 0.0
      %v3883 = vmax.f32 %v3274, 0.0
      %v3884 = vmax.f32 %v3744, 0.0
      %v3885 = vmax.f32 %v3278, 0.0
      %v3886 = vmax.f32 %v3280, 0.0
      %v3887 = vmax.f32 %v3749, 0.0
      %v3888 = vmax.f32 %v3284, 0.0
      %v3889 = vmax.f32 %v3286, 0.0
      %v3890 = vmax.f32 %v3754, 0.0
      %v3891 = vmax.f32 %v3290, 0.0
      %v3892 = vmax.f32 %v3292, 0.0
      %v3893 = vmax.f32 %v3759, 0.0
      %v3894 = vmax.f32 %v3296, 0.0
      %v3895 = vmax.f32 %v3298, 0.0
      %v3896 = vmax.f32 %v3764, 0.0
      %v3897 = vmax.f32 %v3302, 0.0
      %v3898 = vmax.f32 %v3304, 0.0
      %v3899 = vmax.f32 %v3769, 0.0
      %v3900 = vmax.f32 %v3308, 0.0
      %v3901 = vmax.f32 %v3310, 0.0
      %v3902 = vmax.f32 %v3774, 0.0
      %v3903 = vmax.f32 %v3314, 0.0
      %v3904 = vmax.f32 %v3316, 0.0
      %v3905 = vmax.f32 %v3779, 0.0
      %v3906 = vmax.f32 %v3320, 0.0
      %v3907 = vmax.f32 %v3322, 0.0
      %v3908 = vmax.f32 %v3784, 0.0
      %v3909 = vmax.f32 %v3326, 0.0
      %v3910 = vmax.f32 %v3328, 0.0
      %v3911 = vmax.f32 %v3789, 0.0
      %v3912 = vmax.f32 %v3332, 0.0
      %v3913 = vmax.f32 %v3334, 0.0
      %v3914 = vmax.f32 %v3794, 0.0
      %v3915 = vmax.f32 %v3338, 0.0
      %v3916 = vmax.f32 %v3340, 0.0
      %v3917 = vmax.f32 %v3799, 0.0
      %v3918 = vmax.f32 %v3344, 0.0
      %v3919 = vmax.f32 %v3346, 0.0
      %v3920 = vmax.f32 %v3804, 0.0
      %v3921 = vmax.f32 %v3350, 0.0
      %v3922 = vmax.f32 %v3352, 0.0
      %v3923 = vmax.f32 %v3809, 0.0
      %v3924 = vmax.f32 %v3356, 0.0
      %v3925 = vmax.f32 %v3358, 0.0
      %v3926 = vmax.f32 %v3814, 0.0
      %v3927 = vmax.f32 %v3362, 0.0
      %v3928 = vmax.f32 %v3364, 0.0
      %v3929 = vmax.f32 %v3819, 0.0
      %v3930 = vmax.f32 %v3368, 0.0
      %v3931 = vmax.f32 %v3370, 0.0
      %v3932 = vmax.f32 %v3824, 0.0
      %v3933 = vmax.f32 %v3374, 0.0
      %v3934 = vmax.f32 %v3376, 0.0
      %v3935 = vmax.f32 %v3829, 0.0
      %v3936 = vmax.f32 %v3380, 0.0
      %v3937 = vmax.f32 %v3382, 0.0
      %v3938 = vmax.f32 %v3834, 0.0
      %v3939 = vmax.f32 %v3386, 0.0
      %v3940 = vmax.f32 %v3388, 0.0
      %v3941 = vmax.f32 %v3839, 0.0
      %v3942 = vmax.f32 %v3392, 0.0
      %v3943 = vmax.f32 %v3394, 0.0
      %v3944 = vmax.f32 %v3844, 0.0
      %v3945 = vmax.f32 %v3398, 0.0
      %v3946 = vmax.f32 %v3400, 0.0
      %v3947 = vmax.f32 %v3849, 0.0
      %v3948 = vld [vmem:[%s3] sm:$0xff]
      %v3949 = vld [vmem:[%s3 + $0x8] sm:$0xff]
      %v3950 = vld [vmem:[%s3 + $0x10] sm:$0xff]
      %v3951 = vld [vmem:[%s3 + $0x18] sm:$0xff]
      %v3952 = vld [vmem:[%s3 + $0x20] sm:$0xff]
      %v3953 = vld [vmem:[%s3 + $0x28] sm:$0xff]
      %v3954 = vld [vmem:[%s3 + $0x30] sm:$0xff]
      %v3955 = vld [vmem:[%s3 + $0x38] sm:$0xff]
      %v3956 = vld [vmem:[%s4] sm:$0xff]
      %v3957 = vld [vmem:[%s4 + $0x8] sm:$0xff]
      %v3958 = vld [vmem:[%s4 + $0x10] sm:$0xff]
      %v3959 = vld [vmem:[%s4 + $0x18] sm:$0xff]
      %3961 = vset.pattern.permute.xlu0 0
      %3962 = vperm.xlu0 %3961, %v3956
      %v3963 = vpop.permute.xlu0 %3962
      %3966 = vset.pattern.permute.xlu0 0
      %3967 = vperm.xlu0 %3966, %v3957
      %v3968 = vpop.permute.xlu0 %3967
      %3971 = vset.pattern.permute.xlu0 0
      %3972 = vperm.xlu0 %3971, %v3958
      %v3973 = vpop.permute.xlu0 %3972
      %3976 = vset.pattern.permute.xlu0 0
      %3977 = vperm.xlu0 %3976, %v3959
      %v3978 = vpop.permute.xlu0 %3977
      %3980 = vmatprep.subr.mxu0 %v3853
      %3981 = vmatpush1.msra.mxu0 %v3852
      %3982 = vmatprep.subr.mxu0 %v3856
      %3983 = vmatpush1.msra.mxu0 %v3855
      %3984 = vmatprep.subr.mxu0 %v3859
      %3985 = vmatpush1.msra.mxu0 %v3858
      %3986 = vmatprep.subr.mxu0 %v3862
      %3987 = vmatpush1.msra.mxu0 %v3861
      %3988 = vmatprep.subr.mxu0 %v3865
      %3989 = vmatpush1.msra.mxu0 %v3864
      %3990 = vmatprep.subr.mxu0 %v3868
      %3991 = vmatpush1.msra.mxu0 %v3867
      %3992 = vmatprep.subr.mxu0 %v3871
      %3993 = vmatpush1.msra.mxu0 %v3870
      %3994 = vmatprep.subr.mxu0 %v3874
      %3995 = vmatpush1.msra.mxu0 %v3873
      %3996 = vmatprep.subr.mxu0 %v3877
      %3997 = vmatpush1.msra.mxu0 %v3876
      %3998 = vmatprep.subr.mxu0 %v3880
      %3999 = vmatpush1.msra.mxu0 %v3879
      %4000 = vmatprep.subr.mxu0 %v3883
      %4001 = vmatpush1.msra.mxu0 %v3882
      %4002 = vmatprep.subr.mxu0 %v3886
      %4003 = vmatpush1.msra.mxu0 %v3885
      %4004 = vmatprep.subr.mxu0 %v3889
      %4005 = vmatpush1.msra.mxu0 %v3888
      %4006 = vmatprep.subr.mxu0 %v3892
      %4007 = vmatpush1.msra.mxu0 %v3891
      %4008 = vmatprep.subr.mxu0 %v3895
      %4009 = vmatpush1.msra.mxu0 %v3894
      %4010 = vmatprep.subr.mxu0 %v3898
      %4011 = vmatpush1.msra.mxu0 %v3897
      %4012 = vmatprep.subr.mxu0 %v3901
      %4013 = vmatpush1.msra.mxu0 %v3900
      %4014 = vmatprep.subr.mxu0 %v3904
      %4015 = vmatpush1.msra.mxu0 %v3903
      %4016 = vmatprep.subr.mxu0 %v3907
      %4017 = vmatpush1.msra.mxu0 %v3906
      %4018 = vmatprep.subr.mxu0 %v3910
      %4019 = vmatpush1.msra.mxu0 %v3909
      %4020 = vmatprep.subr.mxu0 %v3913
      %4021 = vmatpush1.msra.mxu0 %v3912
      %4022 = vmatprep.subr.mxu0 %v3916
      %4023 = vmatpush1.msra.mxu0 %v3915
      %4024 = vmatprep.subr.mxu0 %v3919
      %4025 = vmatpush1.msra.mxu0 %v3918
      %4026 = vmatprep.subr.mxu0 %v3922
      %4027 = vmatpush1.msra.mxu0 %v3921
      %4028 = vmatprep.subr.mxu0 %v3925
      %4029 = vmatpush1.msra.mxu0 %v3924
      %4030 = vmatprep.subr.mxu0 %v3928
      %4031 = vmatpush1.msra.mxu0 %v3927
      %4032 = vmatprep.subr.mxu0 %v3931
      %4033 = vmatpush1.msra.mxu0 %v3930
      %4034 = vmatprep.subr.mxu0 %v3934
      %4035 = vmatpush1.msra.mxu0 %v3933
      %4036 = vmatprep.subr.mxu0 %v3937
      %4037 = vmatpush1.msra.mxu0 %v3936
      %4038 = vmatprep.subr.mxu0 %v3940
      %4039 = vmatpush1.msra.mxu0 %v3939
      %4040 = vmatprep.subr.mxu0 %v3943
      %4041 = vmatpush1.msra.mxu0 %v3942
      %4042 = vmatprep.subr.mxu0 %v3946
      %4043 = vmatpush1.msra.mxu0 %v3945
      %4044 = vmatprep.mubr.f32.mxu0 %v3949
      %4045 = vmatmul.mubr.f32.gmra.mrb[0].mxu0 %v3948
      %v4046 = vpop.f32.mrb[0].mxu0
      %v4047 = vadd.f32 %v3963, %v4046
      %v4048 = vpop.f32.mrb[0].mxu0
      %v4049 = vadd.f32 %v3963, %v4048
      %4050 = vmatprep.mubr.f32.mxu0 %v3951
      %4051 = vmatmul.mubr.f32.gmra.mrb[0].mxu0 %v3950
      %v4052 = vpop.f32.mrb[0].mxu0
      %v4053 = vadd.f32 %v3968, %v4052
      %v4054 = vpop.f32.mrb[0].mxu0
      %v4055 = vadd.f32 %v3968, %v4054
      %4056 = vmatprep.mubr.f32.mxu0 %v3953
      %4057 = vmatmul.mubr.f32.gmra.mrb[0].mxu0 %v3952
      %v4058 = vpop.f32.mrb[0].mxu0
      %v4059 = vadd.f32 %v3973, %v4058
      %v4060 = vpop.f32.mrb[0].mxu0
      %v4061 = vadd.f32 %v3973, %v4060
      %4062 = vmatprep.mubr.f32.mxu0 %v3955
      %4063 = vmatmul.mubr.f32.gmra.mrb[0].mxu0 %v3954
      %v4064 = vpop.f32.mrb[0].mxu0
      %v4065 = vadd.f32 %v3978, %v4064
      %v4066 = vpop.f32.mrb[0].mxu0
      %v4067 = vadd.f32 %v3978, %v4066
      %4068 = vdwg.mxu0
      %4069 = vmatprep.subr.mxu0 0.0
      %4070 = vmatpush1.msra.mxu0 %v3854
      %4071 = vmatprep.subr.mxu0 0.0
      %4072 = vmatpush1.msra.mxu0 %v3857
      %4073 = vmatprep.subr.mxu0 0.0
      %4074 = vmatpush1.msra.mxu0 %v3860
      %4075 = vmatprep.subr.mxu0 0.0
      %4076 = vmatpush1.msra.mxu0 %v3863
      %4077 = vmatprep.subr.mxu0 0.0
      %4078 = vmatpush1.msra.mxu0 %v3866
      %4079 = vmatprep.subr.mxu0 0.0
      %4080 = vmatpush1.msra.mxu0 %v3869
      %4081 = vmatprep.subr.mxu0 0.0
      %4082 = vmatpush1.msra.mxu0 %v3872
      %4083 = vmatprep.subr.mxu0 0.0
      %4084 = vmatpush1.msra.mxu0 %v3875
      %4085 = vmatprep.subr.mxu0 0.0
      %4086 = vmatpush1.msra.mxu0 %v3878
      %4087 = vmatprep.subr.mxu0 0.0
      %4088 = vmatpush1.msra.mxu0 %v3881
      %4089 = vmatprep.subr.mxu0 0.0
      %4090 = vmatpush1.msra.mxu0 %v3884
      %4091 = vmatprep.subr.mxu0 0.0
      %4092 = vmatpush1.msra.mxu0 %v3887
      %4093 = vmatprep.subr.mxu0 0.0
      %4094 = vmatpush1.msra.mxu0 %v3890
      %4095 = vmatprep.subr.mxu0 0.0
      %4096 = vmatpush1.msra.mxu0 %v3893
      %4097 = vmatprep.subr.mxu0 0.0
      %4098 = vmatpush1.msra.mxu0 %v3896
      %4099 = vmatprep.subr.mxu0 0.0
      %4100 = vmatpush1.msra.mxu0 %v3899
      %4101 = vmatprep.subr.mxu0 0.0
      %4102 = vmatpush1.msra.mxu0 %v3902
      %4103 = vmatprep.subr.mxu0 0.0
      %4104 = vmatpush1.msra.mxu0 %v3905
      %4105 = vmatprep.subr.mxu0 0.0
      %4106 = vmatpush1.msra.mxu0 %v3908
      %4107 = vmatprep.subr.mxu0 0.0
      %4108 = vmatpush1.msra.mxu0 %v3911
      %4109 = vmatprep.subr.mxu0 0.0
      %4110 = vmatpush1.msra.mxu0 %v3914
      %4111 = vmatprep.subr.mxu0 0.0
      %4112 = vmatpush1.msra.mxu0 %v3917
      %4113 = vmatprep.subr.mxu0 0.0
      %4114 = vmatpush1.msra.mxu0 %v3920
      %4115 = vmatprep.subr.mxu0 0.0
      %4116 = vmatpush1.msra.mxu0 %v3923
      %4117 = vmatprep.subr.mxu0 0.0
      %4118 = vmatpush1.msra.mxu0 %v3926
      %4119 = vmatprep.subr.mxu0 0.0
      %4120 = vmatpush1.msra.mxu0 %v3929
      %4121 = vmatprep.subr.mxu0 0.0
      %4122 = vmatpush1.msra.mxu0 %v3932
      %4123 = vmatprep.subr.mxu0 0.0
      %4124 = vmatpush1.msra.mxu0 %v3935
      %4125 = vmatprep.subr.mxu0 0.0
      %4126 = vmatpush1.msra.mxu0 %v3938
      %4127 = vmatprep.subr.mxu0 0.0
      %4128 = vmatpush1.msra.mxu0 %v3941
      %4129 = vmatprep.subr.mxu0 0.0
      %4130 = vmatpush1.msra.mxu0 %v3944
      %4131 = vmatprep.subr.mxu0 0.0
      %4132 = vmatpush1.msra.mxu0 %v3947
      %4133 = vmatprep.mubr.f32.mxu0 %v3949
      %4134 = vmatmul.mubr.f32.gmra.mrb[0].mxu0 %v3948
      %v4135 = vpop.f32.mrb[0].mxu0
      %v4136 = vadd.f32 %v3963, %v4135
      %v4137 = vpop.f32.mrb[0].mxu0
      %4138 = vmatprep.mubr.f32.mxu0 %v3951
      %4139 = vmatmul.mubr.f32.gmra.mrb[0].mxu0 %v3950
      %v4140 = vpop.f32.mrb[0].mxu0
      %v4141 = vadd.f32 %v3968, %v4140
      %v4142 = vpop.f32.mrb[0].mxu0
      %4143 = vmatprep.mubr.f32.mxu0 %v3953
      %4144 = vmatmul.mubr.f32.gmra.mrb[0].mxu0 %v3952
      %v4145 = vpop.f32.mrb[0].mxu0
      %v4146 = vadd.f32 %v3973, %v4145
      %v4147 = vpop.f32.mrb[0].mxu0
      %4148 = vmatprep.mubr.f32.mxu0 %v3955
      %4149 = vmatmul.mubr.f32.gmra.mrb[0].mxu0 %v3954
      %v4150 = vpop.f32.mrb[0].mxu0
      %v4151 = vadd.f32 %v3978, %v4150
      %v4152 = vpop.f32.mrb[0].mxu0
      %4153 = vdwg.mxu0
      %4154 = vst [vmem:[%s248] sm:$0xff] %v4047
      %4155 = vst [vmem:[%s248 + $0x8] sm:$0xff] %v4049
      %4156 = vst [vmem:[%s248 + $0x10] sm:$0xff] %v4136
      %4157 = vst [vmem:[%s248 + $0x18] sm:$0xff] %v4053
      %4158 = vst [vmem:[%s248 + $0x20] sm:$0xff] %v4055
      %4159 = vst [vmem:[%s248 + $0x28] sm:$0xff] %v4141
      %s4160 = scalar_lea.vmem %s248, 48
      %4161 = vst [vmem:[%s4160] sm:$0xff] %v4059
      %4162 = vst [vmem:[%s4160 + $0x8] sm:$0xff] %v4061
      %4163 = vst [vmem:[%s4160 + $0x10] sm:$0xff] %v4146
      %4164 = vst [vmem:[%s4160 + $0x18] sm:$0xff] %v4065
      %4165 = vst [vmem:[%s4160 + $0x20] sm:$0xff] %v4067
      %4166 = vst [vmem:[%s4160 + $0x28] sm:$0xff] %v4151
      %s4167 = smul.u32 2, %s21
      %p4168 = scmp.lt.s32.totalorder %s20, 1
      %s4169 = scalar_select %p4168, %s20, 1
      %p4170 = scmp.lt.s32.totalorder %s4167, 1
      %s4171 = scalar_select %p4170, %s4167, 1
      %s4172 = smul.addr %s4171, 3
      %s4173 = smul.addr %s4169, 12
      %s4174 = sadd.s32 %s4172, %s4173
      %s4175 = smul.addr %s4174, 8
      %s4176 = scalar_lea.vmem %s5, %s4175
      // Predicated region
      $region41: #{online_model_forward.1} parent=39 // pred_check
        %p4177 = pneg %p158
      $region42: #{online_model_forward.1} parent=39 // pred_check_branch
        %4179 = sbr.rel (%p4177) target = $region44
      $region43: #{online_model_forward.1} parent=39 // pred_region
        %s4180 = smul.u32 2, %s21
      $region44: #{online_model_forward.1} parent=39 // pred_fallthru
        _
    $region40: #{online_model_forward.1} parent=5 // pred_fallthru
      _
    %p4181 = scmp.le.s32.totalorder 2, %s11
    // Predicated region
    $region45: #{online_model_forward.1} parent=5 // pred_check
      %p4182 = pneg %p4181
    $region46: #{online_model_forward.1} parent=5 // pred_check_branch
      %4184 = sbr.rel (%p4182) target = $region48
    $region47: #{online_model_forward.1} parent=5 // pred_region
      %s4185 = ssub.s32 %s11, 2
      // Predicated region
      $region49: #{online_model_forward.1} parent=47 // pred_check
        %p4186 = pneg %p164
      $region50: #{online_model_forward.1} parent=47 // pred_check_branch
        %4188 = sbr.rel (%p4186) target = $region52
      $region51: #{online_model_forward.1} parent=47 // pred_region
        %s4189 = smul.u32 2, %s23
        %p4190 = scmp.lt.s32.totalorder %s22, 1
        %s4191 = scalar_select %p4190, %s22, 1
        %p4192 = scmp.lt.s32.totalorder %s4189, 1
        %s4193 = scalar_select %p4192, %s4189, 1
        %s4194 = smul.addr %s4193, 3
        %s4195 = smul.addr %s4191, 12
        %s4196 = sadd.s32 %s4194, %s4195
        %s4197 = smul.addr %s4196, 8
        %s4198 = scalar_lea.vmem %s5, %s4197
      $region52: #{online_model_forward.1} parent=47 // pred_fallthru
        _
    $region48: #{online_model_forward.1} parent=5 // pred_fallthru
      _
  $region6: #{online_model_forward.1} parent=0 // loop_footer
    %s15 = sadd.s32 1, %s11
  $region7: #{online_model_forward.1} parent=0 // loop_footer_branch
    %10 = sbr.rel target = $region3
  $region8: #{online_model_forward.1} parent=0 // loop_exit
    _

</llo_original>
